<compile_context>
chip_gen: v7x
topology: tpu7x:2x2x1
jax: 0.10.0
libtpu: 0.0.40
codegen_flags: <defaults>
</compile_context>

<pallas_src>
import jax
import jax.numpy as jnp
from jax import lax
from jax.experimental import pallas as pl
from jax.experimental.pallas import tpu as pltpu

# ---- small synthetic BERT config -------------------------------------------
VOCAB = 100
VOCAB_PAD = 128            # word-emb table padded to 128 rows (lane-dense one-hot)
HIDDEN = 32
N_LAYERS = 2
N_HEADS = 2
HEAD_DIM = HIDDEN // N_HEADS
INTER = 64
MAX_POS = 16
CLS_HIDDEN = 256
N_CLASSES = 2
LOGIT_PAD = 128            # lane-dense logits store; sliced to N_CLASSES outside
EPS = 1e-12


# ---------------- in-kernel helpers ------------------------------------------
def _ln(x, g, b):
    mean = jnp.mean(x, axis=-1, keepdims=True)
    xc = x - mean
    var = jnp.mean(xc * xc, axis=-1, keepdims=True)
    return xc * lax.rsqrt(var + EPS) * g + b


def _gelu(x):
    # TODO(synk): reference BERT uses erf-GELU; tanh approximation kept for
    # robust TPU EUP lowering (small numerical difference vs PyTorch).
    return 0.5 * x * (1.0 + jnp.tanh(0.7978845608028654 * (x + 0.044715 * x * x * x)))


# ---------------- single fused forward kernel --------------------------------
def _bert_fwd_kernel(ids_ref, mask_ref,
                     wemb_ref, pemb_ref, temb_ref, eg_ref, eb_ref,
                     wqkv_ref, bqkv_ref, wo_ref, bo_ref,
                     g1_ref, be1_ref, w1_ref, b1_ref, w2_ref, b2_ref,
                     g2_ref, be2_ref,
                     wp_ref, bp_ref, wc1_ref, bc1_ref, wc2_ref, bc2_ref,
                     out_ref):
    B, S = mask_ref.shape
    BS = B * S

    # ---- embeddings: one-hot gather on the MXU (whole table is VMEM-resident)
    ids = ids_ref[...]                                              # (BS, 1) int32
    iota = lax.broadcasted_iota(jnp.int32, (BS, VOCAB_PAD), 1)
    onehot = (iota == ids).astype(jnp.float32)                      # (BS, VOCAB_PAD)
    word = jnp.dot(onehot, wemb_ref[...],
                   preferred_element_type=jnp.float32)              # (BS, H)

    pos = pemb_ref[0:S, :]                                          # (S, H)
    type0 = temb_ref[0:1, :]                                        # token_type_ids == 0
    x3 = word.reshape(B, S, HIDDEN) + pos + type0                   # (B, S, H)
    x_flat = _ln(x3, eg_ref[...], eb_ref[...]).reshape(BS, HIDDEN)  # (BS, H)

    # additive key mask, built in-kernel
    m_add = ((1.0 - mask_ref[...].astype(jnp.float32)) * -1e9)[:, None, :]   # (B,1,S)

    # ---- transformer layers (static unroll; everything stays in vregs/VMEM) --
    for l in range(N_LAYERS):
        # fused QKV projection (scale already folded into Wq/bq at init)
        qkv = jnp.dot(x_flat, wqkv_ref[l],
                      preferred_element_type=jnp.float32) + bqkv_ref[l]      # (BS, 3H)
        wo_l = wo_ref[l]                                                      # (H, H)

        acc = None
        for h in range(N_HEADS):                       # static unroll over heads
            lo = h * HEAD_DIM
            qh = qkv[:, lo:lo + HEAD_DIM].reshape(B, S, HEAD_DIM)
            kh = qkv[:, HIDDEN + lo:HIDDEN + lo + HEAD_DIM].reshape(B, S, HEAD_DIM)
            vh = qkv[:, 2 * HIDDEN + lo:2 * HIDDEN + lo + HEAD_DIM].reshape(B, S, HEAD_DIM)

            s = jnp.einsum('bqd,bkd->bqk', qh, kh,
                           preferred_element_type=jnp.float32) + m_add       # (B,S,S)
            s = s - jnp.max(s, axis=-1, keepdims=True)
            p = jnp.exp(s)
            p = p / jnp.sum(p, axis=-1, keepdims=True)      # exact softmax denom
            ctx = jnp.einsum('bqk,bkd->bqd', p, vh,
                             preferred_element_type=jnp.float32)             # (B,S,D)
            # output projection accumulated per head: concat(ctx)@Wo == sum_h ctx_h@Wo[hD:(h+1)D]
            part = jnp.dot(ctx.reshape(BS, HEAD_DIM), wo_l[lo:lo + HEAD_DIM, :],
                           preferred_element_type=jnp.float32)               # (BS, H)
            acc = part if acc is None else acc + part

        attn_out = acc + bo_ref[l]
        y = _ln(x_flat + attn_out, g1_ref[l], be1_ref[l])                    # residual+LN

        inter = _gelu(jnp.dot(y, w1_ref[l],
                              preferred_element_type=jnp.float32) + b1_ref[l])
        ffn = jnp.dot(inter, w2_ref[l],
                      preferred_element_type=jnp.float32) + b2_ref[l]
        x_flat = _ln(y + ffn, g2_ref[l], be2_ref[l])                         # residual+LN

    # ---- [CLS] pooler + classifier head (Dropout(0.4) = identity in eval) ----
    cls_tok = x_flat.reshape(B, S, HIDDEN)[:, 0, :]                          # (B, H)
    pooled = jnp.tanh(jnp.dot(cls_tok, wp_ref[...],
                              preferred_element_type=jnp.float32) + bp_ref[...])
    hcls = jnp.maximum(jnp.dot(pooled, wc1_ref[...],
                               preferred_element_type=jnp.float32) + bc1_ref[...], 0.0)
    # lane-dense padded logits store (128 wide); real logits are columns [0:2]
    out_ref[...] = jnp.dot(hcls, wc2_ref[...],
                           preferred_element_type=jnp.float32) + bc2_ref[...]


# ---------------- pallas_call wrapper -----------------------------------------
def _full_spec(a):
    nd = a.ndim
    return pl.BlockSpec(a.shape, lambda i, _nd=nd: (0,) * _nd)


ARG_ORDER = ("word_emb", "pos_emb", "type_emb", "emb_g", "emb_b",
             "wqkv", "bqkv", "wo", "bo", "g1", "be1", "w1", "b1",
             "w2", "b2", "g2", "be2", "wp", "bp", "wc1", "bc1", "wc2", "bc2")


def bert_classifier_forward(params, input_ids, attention_mask):
    B, S = input_ids.shape
    ids_col = input_ids.astype(jnp.int32).reshape(B * S, 1)   # trace-time reshape (64 B)
    args = (ids_col, attention_mask.astype(jnp.int32)) + \
           tuple(params[k] for k in ARG_ORDER)

    padded = pl.pallas_call(
        _bert_fwd_kernel,
        out_shape=jax.ShapeDtypeStruct((B, LOGIT_PAD), jnp.float32),
        grid=(1,),
        in_specs=[_full_spec(a) for a in args],
        out_specs=pl.BlockSpec((B, LOGIT_PAD), lambda i: (0, 0)),
        compiler_params=pltpu.CompilerParams(dimension_semantics=("arbitrary",)),
    )(*args)
    return padded[:, :N_CLASSES]


# ---------------- parameter init (deterministic, synthetic) -------------------
def _dense(key, fan_in, fan_out):
    w = 0.02 * jax.random.normal(key, (fan_in, fan_out), jnp.float32)
    b = jnp.zeros((fan_out,), jnp.float32)
    return w, b


def init_params(key):
    keys = jax.random.split(key, 6 + N_LAYERS)

    word = 0.02 * jax.random.normal(keys[0], (VOCAB, HIDDEN), jnp.float32)
    word_pad = jnp.zeros((VOCAB_PAD, HIDDEN), jnp.float32).at[:VOCAB].set(word)

    scale = 1.0 / (HEAD_DIM ** 0.5)
    wqkv, bqkv, wo, bo = [], [], [], []
    g1, be1, w1, b1, w2, b2, g2, be2 = [], [], [], [], [], [], [], []
    for l in range(N_LAYERS):
        lk = jax.random.split(keys[3 + l], 6)
        wq, bq = _dense(lk[0], HIDDEN, HIDDEN)
        wk, bk = _dense(lk[1], HIDDEN, HIDDEN)
        wv, bv = _dense(lk[2], HIDDEN, HIDDEN)
        wo_l, bo_l = _dense(lk[3], HIDDEN, HIDDEN)
        f1w, f1b = _dense(lk[4], HIDDEN, INTER)
        f2w, f2b = _dense(lk[5], INTER, HIDDEN)
        # pre-fused QKV weight/bias with attention scale folded into the Q part
        wqkv.append(jnp.concatenate([wq * scale, wk, wv], axis=1))            # (H, 3H)
        bqkv.append(jnp.concatenate([bq * scale, bk, bv]).reshape(1, 3 * HIDDEN))
        wo.append(wo_l)
        bo.append(bo_l.reshape(1, HIDDEN))
        g1.append(jnp.ones((1, HIDDEN), jnp.float32))
        be1.append(jnp.zeros((1, HIDDEN), jnp.float32))
        w1.append(f1w)
        b1.append(f1b.reshape(1, INTER))
        w2.append(f2w)
        b2.append(f2b.reshape(1, HIDDEN))
        g2.append(jnp.ones((1, HIDDEN), jnp.float32))
        be2.append(jnp.zeros((1, HIDDEN), jnp.float32))

    pk = jax.random.split(keys[3 + N_LAYERS], 3)
    wp, bp = _dense(pk[0], HIDDEN, HIDDEN)
    wc1, bc1 = _dense(pk[1], HIDDEN, CLS_HIDDEN)
    wc2, bc2 = _dense(pk[2], CLS_HIDDEN, N_CLASSES)
    # pad the 2-wide classifier output to 128 lanes (lane-dense store in-kernel)
    wc2_pad = jnp.zeros((CLS_HIDDEN, LOGIT_PAD), jnp.float32).at[:, :N_CLASSES].set(wc2)
    bc2_pad = jnp.zeros((1, LOGIT_PAD), jnp.float32).at[0, :N_CLASSES].set(bc2)

    return {
        "word_emb": word_pad,
        "pos_emb": 0.02 * jax.random.normal(keys[1], (MAX_POS, HIDDEN), jnp.float32),
        "type_emb": 0.02 * jax.random.normal(keys[2], (2, HIDDEN), jnp.float32),
        "emb_g": jnp.ones((1, HIDDEN), jnp.float32),
        "emb_b": jnp.zeros((1, HIDDEN), jnp.float32),
        "wqkv": jnp.stack(wqkv), "bqkv": jnp.stack(bqkv),
        "wo": jnp.stack(wo), "bo": jnp.stack(bo),
        "g1": jnp.stack(g1), "be1": jnp.stack(be1),
        "w1": jnp.stack(w1), "b1": jnp.stack(b1),
        "w2": jnp.stack(w2), "b2": jnp.stack(b2),
        "g2": jnp.stack(g2), "be2": jnp.stack(be2),
        "wp": wp, "bp": bp.reshape(1, HIDDEN),
        "wc1": wc1, "bc1": bc1.reshape(1, CLS_HIDDEN),
        "wc2": wc2_pad, "bc2": bc2_pad,
    }


# ---------------- main ---------------------------------------------------------
if __name__ == "__main__":
    key = jax.random.PRNGKey(0)
    pkey, ikey = jax.random.split(key)
    params = init_params(pkey)

    B, S = 2, 8
    input_ids = jax.random.randint(ikey, (B, S), 0, VOCAB, dtype=jnp.int32)
    attention_mask = jnp.array([[1, 1, 1, 1, 1, 1, 1, 1],
                                [1, 1, 1, 1, 1, 1, 0, 0]], dtype=jnp.int32)

    fwd = jax.jit(bert_classifier_forward)
    logits = fwd(params, input_ids, attention_mask)
    logits = jax.block_until_ready(logits)
    assert logits.shape == (B, N_CLASSES) and logits.dtype == jnp.float32
    print("KERNEL_OK")
</pallas_src>

<mosaic_0001>
module attributes {stable_mosaic.version = 11 : i64} {
  func.func @_bert_fwd_kernel(%arg0: i32, %arg1: memref<16x1xi32, #tpu.memory_space<vmem>>, %arg2: memref<2x8xi32, #tpu.memory_space<vmem>>, %arg3: memref<128x32xf32, #tpu.memory_space<vmem>>, %arg4: memref<16x32xf32, #tpu.memory_space<vmem>>, %arg5: memref<2x32xf32, #tpu.memory_space<vmem>>, %arg6: memref<1x32xf32, #tpu.memory_space<vmem>>, %arg7: memref<1x32xf32, #tpu.memory_space<vmem>>, %arg8: memref<2x32x96xf32, #tpu.memory_space<vmem>>, %arg9: memref<2x1x96xf32, #tpu.memory_space<vmem>>, %arg10: memref<2x32x32xf32, #tpu.memory_space<vmem>>, %arg11: memref<2x1x32xf32, #tpu.memory_space<vmem>>, %arg12: memref<2x1x32xf32, #tpu.memory_space<vmem>>, %arg13: memref<2x1x32xf32, #tpu.memory_space<vmem>>, %arg14: memref<2x32x64xf32, #tpu.memory_space<vmem>>, %arg15: memref<2x1x64xf32, #tpu.memory_space<vmem>>, %arg16: memref<2x64x32xf32, #tpu.memory_space<vmem>>, %arg17: memref<2x1x32xf32, #tpu.memory_space<vmem>>, %arg18: memref<2x1x32xf32, #tpu.memory_space<vmem>>, %arg19: memref<2x1x32xf32, #tpu.memory_space<vmem>>, %arg20: memref<32x32xf32, #tpu.memory_space<vmem>>, %arg21: memref<1x32xf32, #tpu.memory_space<vmem>>, %arg22: memref<32x256xf32, #tpu.memory_space<vmem>>, %arg23: memref<1x256xf32, #tpu.memory_space<vmem>>, %arg24: memref<256x128xf32, #tpu.memory_space<vmem>>, %arg25: memref<1x128xf32, #tpu.memory_space<vmem>>, %arg26: memref<2x128xf32, #tpu.memory_space<vmem>>) attributes {dimension_semantics = [#tpu.dimension_semantics<arbitrary>], iteration_bounds = array<i64: 1>, scalar_prefetch = 0 : i64, scratch_operands = 0 : i64, tpu.core_type = #tpu.core_type<tc>, window_params = [{pipeline_mode = #tpu.pipeline_mode<synchronous>, transform_indices = @transform_0, window_bounds = array<i64: 16, 1>}, {pipeline_mode = #tpu.pipeline_mode<synchronous>, transform_indices = @transform_1, window_bounds = array<i64: 2, 8>}, {pipeline_mode = #tpu.pipeline_mode<synchronous>, transform_indices = @transform_2, window_bounds = array<i64: 128, 32>}, {pipeline_mode = #tpu.pipeline_mode<synchronous>, transform_indices = @transform_3, window_bounds = array<i64: 16, 32>}, {pipeline_mode = #tpu.pipeline_mode<synchronous>, transform_indices = @transform_4, window_bounds = array<i64: 2, 32>}, {pipeline_mode = #tpu.pipeline_mode<synchronous>, transform_indices = @transform_5, window_bounds = array<i64: 1, 32>}, {pipeline_mode = #tpu.pipeline_mode<synchronous>, transform_indices = @transform_6, window_bounds = array<i64: 1, 32>}, {pipeline_mode = #tpu.pipeline_mode<synchronous>, transform_indices = @transform_7, window_bounds = array<i64: 2, 32, 96>}, {pipeline_mode = #tpu.pipeline_mode<synchronous>, transform_indices = @transform_8, window_bounds = array<i64: 2, 1, 96>}, {pipeline_mode = #tpu.pipeline_mode<synchronous>, transform_indices = @transform_9, window_bounds = array<i64: 2, 32, 32>}, {pipeline_mode = #tpu.pipeline_mode<synchronous>, transform_indices = @transform_10, window_bounds = array<i64: 2, 1, 32>}, {pipeline_mode = #tpu.pipeline_mode<synchronous>, transform_indices = @transform_11, window_bounds = array<i64: 2, 1, 32>}, {pipeline_mode = #tpu.pipeline_mode<synchronous>, transform_indices = @transform_12, window_bounds = array<i64: 2, 1, 32>}, {pipeline_mode = #tpu.pipeline_mode<synchronous>, transform_indices = @transform_13, window_bounds = array<i64: 2, 32, 64>}, {pipeline_mode = #tpu.pipeline_mode<synchronous>, transform_indices = @transform_14, window_bounds = array<i64: 2, 1, 64>}, {pipeline_mode = #tpu.pipeline_mode<synchronous>, transform_indices = @transform_15, window_bounds = array<i64: 2, 64, 32>}, {pipeline_mode = #tpu.pipeline_mode<synchronous>, transform_indices = @transform_16, window_bounds = array<i64: 2, 1, 32>}, {pipeline_mode = #tpu.pipeline_mode<synchronous>, transform_indices = @transform_17, window_bounds = array<i64: 2, 1, 32>}, {pipeline_mode = #tpu.pipeline_mode<synchronous>, transform_indices = @transform_18, window_bounds = array<i64: 2, 1, 32>}, {pipeline_mode = #tpu.pipeline_mode<synchronous>, transform_indices = @transform_19, window_bounds = array<i64: 32, 32>}, {pipeline_mode = #tpu.pipeline_mode<synchronous>, transform_indices = @transform_20, window_bounds = array<i64: 1, 32>}, {pipeline_mode = #tpu.pipeline_mode<synchronous>, transform_indices = @transform_21, window_bounds = array<i64: 32, 256>}, {pipeline_mode = #tpu.pipeline_mode<synchronous>, transform_indices = @transform_22, window_bounds = array<i64: 1, 256>}, {pipeline_mode = #tpu.pipeline_mode<synchronous>, transform_indices = @transform_23, window_bounds = array<i64: 256, 128>}, {pipeline_mode = #tpu.pipeline_mode<synchronous>, transform_indices = @transform_24, window_bounds = array<i64: 1, 128>}, {pipeline_mode = #tpu.pipeline_mode<synchronous>, transform_indices = @transform_25, window_bounds = array<i64: 2, 128>}]} {
    %c0 = arith.constant 0 : index
    %c0_0 = arith.constant 0 : index
    %0 = vector.load %arg1[%c0, %c0_0] : memref<16x1xi32, #tpu.memory_space<vmem>>, vector<16x1xi32>
    %1 = tpu.iota {dimensions = array<i32: 1>} : vector<16x128xi32>
    %2 = vector.broadcast %0 : vector<16x1xi32> to vector<16x128xi32>
    %3 = arith.cmpi eq, %1, %2 : vector<16x128xi32>
    %4 = arith.extui %3 : vector<16x128xi1> to vector<16x128xi32>
    %5 = arith.sitofp %4 : vector<16x128xi32> to vector<16x128xf32>
    %c0_1 = arith.constant 0 : index
    %c0_2 = arith.constant 0 : index
    %6 = vector.load %arg3[%c0_1, %c0_2] : memref<128x32xf32, #tpu.memory_space<vmem>>, vector<128x32xf32>
    %cst = arith.constant dense<0.000000e+00> : vector<16x32xf32>
    %7 = tpu.matmul %5, %6, %cst {dimension_numbers = #tpu.dot_dimension_numbers<[1], [0], [0], [1], [0, 0, 1, 1], [], []>} : vector<16x128xf32>, vector<128x32xf32>, vector<16x32xf32> -> vector<16x32xf32>
    %c0_3 = arith.constant 0 : index
    %c0_4 = arith.constant 0 : index
    %8 = vector.load %arg4[%c0_3, %c0_4] : memref<16x32xf32, #tpu.memory_space<vmem>>, vector<8x32xf32>
    %c0_5 = arith.constant 0 : index
    %c0_6 = arith.constant 0 : index
    %9 = vector.load %arg5[%c0_5, %c0_6] : memref<2x32xf32, #tpu.memory_space<vmem>>, vector<1x32xf32>
    %10 = vector.shape_cast %7 : vector<16x32xf32> to vector<2x8x32xf32>
    %11 = vector.shape_cast %8 : vector<8x32xf32> to vector<1x8x32xf32>
    %12 = vector.broadcast %11 : vector<1x8x32xf32> to vector<2x8x32xf32>
    %13 = arith.addf %10, %12 : vector<2x8x32xf32>
    %14 = vector.shape_cast %9 : vector<1x32xf32> to vector<1x1x32xf32>
    %15 = vector.broadcast %14 : vector<1x1x32xf32> to vector<2x8x32xf32>
    %16 = arith.addf %13, %15 : vector<2x8x32xf32>
    %c0_7 = arith.constant 0 : index
    %c0_8 = arith.constant 0 : index
    %17 = vector.load %arg6[%c0_7, %c0_8] : memref<1x32xf32, #tpu.memory_space<vmem>>, vector<1x32xf32>
    %c0_9 = arith.constant 0 : index
    %c0_10 = arith.constant 0 : index
    %18 = vector.load %arg7[%c0_9, %c0_10] : memref<1x32xf32, #tpu.memory_space<vmem>>, vector<1x32xf32>
    %cst_11 = arith.constant dense<0.000000e+00> : vector<2x8xf32>
    %19 = vector.multi_reduction <add>, %16, %cst_11 [2] : vector<2x8x32xf32> to vector<2x8xf32>
    %20 = vector.shape_cast %19 : vector<2x8xf32> to vector<2x8x1xf32>
    %cst_12 = arith.constant 3.200000e+01 : f32
    %21 = vector.broadcast %cst_12 : f32 to vector<2x8x1xf32>
    %22 = arith.divf %20, %21 : vector<2x8x1xf32>
    %23 = vector.broadcast %22 : vector<2x8x1xf32> to vector<2x8x32xf32>
    %24 = arith.subf %16, %23 : vector<2x8x32xf32>
    %25 = arith.mulf %24, %24 : vector<2x8x32xf32>
    %cst_13 = arith.constant dense<0.000000e+00> : vector<2x8xf32>
    %26 = vector.multi_reduction <add>, %25, %cst_13 [2] : vector<2x8x32xf32> to vector<2x8xf32>
    %27 = vector.shape_cast %26 : vector<2x8xf32> to vector<2x8x1xf32>
    %cst_14 = arith.constant 3.200000e+01 : f32
    %28 = vector.broadcast %cst_14 : f32 to vector<2x8x1xf32>
    %29 = arith.divf %27, %28 : vector<2x8x1xf32>
    %cst_15 = arith.constant 9.99999996E-13 : f32
    %30 = vector.broadcast %cst_15 : f32 to vector<2x8x1xf32>
    %31 = arith.addf %29, %30 : vector<2x8x1xf32>
    %32 = math.rsqrt %31 : vector<2x8x1xf32>
    %33 = vector.broadcast %32 : vector<2x8x1xf32> to vector<2x8x32xf32>
    %34 = arith.mulf %24, %33 : vector<2x8x32xf32>
    %35 = vector.shape_cast %17 : vector<1x32xf32> to vector<1x1x32xf32>
    %36 = vector.broadcast %35 : vector<1x1x32xf32> to vector<2x8x32xf32>
    %37 = arith.mulf %34, %36 : vector<2x8x32xf32>
    %38 = vector.shape_cast %18 : vector<1x32xf32> to vector<1x1x32xf32>
    %39 = vector.broadcast %38 : vector<1x1x32xf32> to vector<2x8x32xf32>
    %40 = arith.addf %37, %39 : vector<2x8x32xf32>
    %41 = vector.shape_cast %40 : vector<2x8x32xf32> to vector<16x32xf32>
    %c0_16 = arith.constant 0 : index
    %c0_17 = arith.constant 0 : index
    %42 = vector.load %arg2[%c0_16, %c0_17] : memref<2x8xi32, #tpu.memory_space<vmem>>, vector<2x8xi32>
    %43 = arith.sitofp %42 : vector<2x8xi32> to vector<2x8xf32>
    %cst_18 = arith.constant 1.000000e+00 : f32
    %44 = vector.broadcast %cst_18 : f32 to vector<2x8xf32>
    %45 = arith.subf %44, %43 : vector<2x8xf32>
    %cst_19 = arith.constant -1.000000e+09 : f32
    %46 = vector.broadcast %cst_19 : f32 to vector<2x8xf32>
    %47 = arith.mulf %45, %46 : vector<2x8xf32>
    %48 = vector.shape_cast %47 : vector<2x8xf32> to vector<2x1x8xf32>
    %c0_20 = arith.constant 0 : index
    %c0_21 = arith.constant 0 : index
    %c0_22 = arith.constant 0 : index
    %49 = vector.load %arg8[%c0_20, %c0_21, %c0_22] : memref<2x32x96xf32, #tpu.memory_space<vmem>>, vector<1x32x96xf32>
    %50 = vector.shape_cast %49 : vector<1x32x96xf32> to vector<32x96xf32>
    %cst_23 = arith.constant dense<0.000000e+00> : vector<16x96xf32>
    %51 = tpu.matmul %41, %50, %cst_23 {dimension_numbers = #tpu.dot_dimension_numbers<[1], [0], [0], [1], [0, 0, 1, 1], [], []>} : vector<16x32xf32>, vector<32x96xf32>, vector<16x96xf32> -> vector<16x96xf32>
    %c0_24 = arith.constant 0 : index
    %c0_25 = arith.constant 0 : index
    %c0_26 = arith.constant 0 : index
    %52 = vector.load %arg9[%c0_24, %c0_25, %c0_26] : memref<2x1x96xf32, #tpu.memory_space<vmem>>, vector<1x1x96xf32>
    %53 = vector.shape_cast %52 : vector<1x1x96xf32> to vector<1x96xf32>
    %54 = vector.broadcast %53 : vector<1x96xf32> to vector<16x96xf32>
    %55 = arith.addf %51, %54 : vector<16x96xf32>
    %c0_27 = arith.constant 0 : index
    %c0_28 = arith.constant 0 : index
    %c0_29 = arith.constant 0 : index
    %56 = vector.load %arg10[%c0_27, %c0_28, %c0_29] : memref<2x32x32xf32, #tpu.memory_space<vmem>>, vector<1x32x32xf32>
    %57 = vector.shape_cast %56 : vector<1x32x32xf32> to vector<32x32xf32>
    %58 = vector.extract_strided_slice %55 {offsets = [0, 0], sizes = [16, 16], strides = [1, 1]} : vector<16x96xf32> to vector<16x16xf32>
    %59 = vector.shape_cast %58 : vector<16x16xf32> to vector<2x8x16xf32>
    %60 = vector.extract_strided_slice %55 {offsets = [0, 32], sizes = [16, 16], strides = [1, 1]} : vector<16x96xf32> to vector<16x16xf32>
    %61 = vector.shape_cast %60 : vector<16x16xf32> to vector<2x8x16xf32>
    %62 = vector.extract_strided_slice %55 {offsets = [0, 64], sizes = [16, 16], strides = [1, 1]} : vector<16x96xf32> to vector<16x16xf32>
    %63 = vector.shape_cast %62 : vector<16x16xf32> to vector<2x8x16xf32>
    "tpu.trace_start"() <{level = 10 : i32, message = "bqd,bkd->bqk"}> : () -> ()
    %cst_30 = arith.constant dense<0.000000e+00> : vector<2x8x8xf32>
    %64 = tpu.matmul %59, %61, %cst_30 {dimension_numbers = #tpu.dot_dimension_numbers<[2], [2], [1], [1], [0, 0, 0, 1, 1, 1], [0], [0]>} : vector<2x8x16xf32>, vector<2x8x16xf32>, vector<2x8x8xf32> -> vector<2x8x8xf32>
    "tpu.trace_stop"() : () -> ()
    %65 = vector.broadcast %48 : vector<2x1x8xf32> to vector<2x8x8xf32>
    %66 = arith.addf %64, %65 : vector<2x8x8xf32>
    %cst_31 = arith.constant dense<0xFF800000> : vector<2x8xf32>
    %67 = vector.multi_reduction <maximumf>, %66, %cst_31 [2] : vector<2x8x8xf32> to vector<2x8xf32>
    %68 = vector.shape_cast %67 : vector<2x8xf32> to vector<2x8x1xf32>
    %69 = vector.broadcast %68 : vector<2x8x1xf32> to vector<2x8x8xf32>
    %70 = arith.subf %66, %69 : vector<2x8x8xf32>
    %71 = math.exp %70 : vector<2x8x8xf32>
    %cst_32 = arith.constant dense<0.000000e+00> : vector<2x8xf32>
    %72 = vector.multi_reduction <add>, %71, %cst_32 [2] : vector<2x8x8xf32> to vector<2x8xf32>
    %73 = vector.shape_cast %72 : vector<2x8xf32> to vector<2x8x1xf32>
    %74 = vector.broadcast %73 : vector<2x8x1xf32> to vector<2x8x8xf32>
    %75 = arith.divf %71, %74 : vector<2x8x8xf32>
    "tpu.trace_start"() <{level = 10 : i32, message = "bqk,bkd->bqd"}> : () -> ()
    %cst_33 = arith.constant dense<0.000000e+00> : vector<2x8x16xf32>
    %76 = tpu.matmul %75, %63, %cst_33 {dimension_numbers = #tpu.dot_dimension_numbers<[2], [1], [1], [2], [0, 0, 0, 1, 1, 2], [0], [0]>} : vector<2x8x8xf32>, vector<2x8x16xf32>, vector<2x8x16xf32> -> vector<2x8x16xf32>
    "tpu.trace_stop"() : () -> ()
    %77 = vector.shape_cast %76 : vector<2x8x16xf32> to vector<16x16xf32>
    %78 = vector.extract_strided_slice %57 {offsets = [0, 0], sizes = [16, 32], strides = [1, 1]} : vector<32x32xf32> to vector<16x32xf32>
    %cst_34 = arith.constant dense<0.000000e+00> : vector<16x32xf32>
    %79 = tpu.matmul %77, %78, %cst_34 {dimension_numbers = #tpu.dot_dimension_numbers<[1], [0], [0], [1], [0, 0, 1, 1], [], []>} : vector<16x16xf32>, vector<16x32xf32>, vector<16x32xf32> -> vector<16x32xf32>
    %80 = vector.extract_strided_slice %55 {offsets = [0, 16], sizes = [16, 16], strides = [1, 1]} : vector<16x96xf32> to vector<16x16xf32>
    %81 = vector.shape_cast %80 : vector<16x16xf32> to vector<2x8x16xf32>
    %82 = vector.extract_strided_slice %55 {offsets = [0, 48], sizes = [16, 16], strides = [1, 1]} : vector<16x96xf32> to vector<16x16xf32>
    %83 = vector.shape_cast %82 : vector<16x16xf32> to vector<2x8x16xf32>
    %84 = vector.extract_strided_slice %55 {offsets = [0, 80], sizes = [16, 16], strides = [1, 1]} : vector<16x96xf32> to vector<16x16xf32>
    %85 = vector.shape_cast %84 : vector<16x16xf32> to vector<2x8x16xf32>
    "tpu.trace_start"() <{level = 10 : i32, message = "bqd,bkd->bqk"}> : () -> ()
    %cst_35 = arith.constant dense<0.000000e+00> : vector<2x8x8xf32>
    %86 = tpu.matmul %81, %83, %cst_35 {dimension_numbers = #tpu.dot_dimension_numbers<[2], [2], [1], [1], [0, 0, 0, 1, 1, 1], [0], [0]>} : vector<2x8x16xf32>, vector<2x8x16xf32>, vector<2x8x8xf32> -> vector<2x8x8xf32>
    "tpu.trace_stop"() : () -> ()
    %87 = vector.broadcast %48 : vector<2x1x8xf32> to vector<2x8x8xf32>
    %88 = arith.addf %86, %87 : vector<2x8x8xf32>
    %cst_36 = arith.constant dense<0xFF800000> : vector<2x8xf32>
    %89 = vector.multi_reduction <maximumf>, %88, %cst_36 [2] : vector<2x8x8xf32> to vector<2x8xf32>
    %90 = vector.shape_cast %89 : vector<2x8xf32> to vector<2x8x1xf32>
    %91 = vector.broadcast %90 : vector<2x8x1xf32> to vector<2x8x8xf32>
    %92 = arith.subf %88, %91 : vector<2x8x8xf32>
    %93 = math.exp %92 : vector<2x8x8xf32>
    %cst_37 = arith.constant dense<0.000000e+00> : vector<2x8xf32>
    %94 = vector.multi_reduction <add>, %93, %cst_37 [2] : vector<2x8x8xf32> to vector<2x8xf32>
    %95 = vector.shape_cast %94 : vector<2x8xf32> to vector<2x8x1xf32>
    %96 = vector.broadcast %95 : vector<2x8x1xf32> to vector<2x8x8xf32>
    %97 = arith.divf %93, %96 : vector<2x8x8xf32>
    "tpu.trace_start"() <{level = 10 : i32, message = "bqk,bkd->bqd"}> : () -> ()
    %cst_38 = arith.constant dense<0.000000e+00> : vector<2x8x16xf32>
    %98 = tpu.matmul %97, %85, %cst_38 {dimension_numbers = #tpu.dot_dimension_numbers<[2], [1], [1], [2], [0, 0, 0, 1, 1, 2], [0], [0]>} : vector<2x8x8xf32>, vector<2x8x16xf32>, vector<2x8x16xf32> -> vector<2x8x16xf32>
    "tpu.trace_stop"() : () -> ()
    %99 = vector.shape_cast %98 : vector<2x8x16xf32> to vector<16x16xf32>
    %100 = vector.extract_strided_slice %57 {offsets = [16, 0], sizes = [16, 32], strides = [1, 1]} : vector<32x32xf32> to vector<16x32xf32>
    %cst_39 = arith.constant dense<0.000000e+00> : vector<16x32xf32>
    %101 = tpu.matmul %99, %100, %cst_39 {dimension_numbers = #tpu.dot_dimension_numbers<[1], [0], [0], [1], [0, 0, 1, 1], [], []>} : vector<16x16xf32>, vector<16x32xf32>, vector<16x32xf32> -> vector<16x32xf32>
    %102 = arith.addf %79, %101 : vector<16x32xf32>
    %c0_40 = arith.constant 0 : index
    %c0_41 = arith.constant 0 : index
    %c0_42 = arith.constant 0 : index
    %103 = vector.load %arg11[%c0_40, %c0_41, %c0_42] : memref<2x1x32xf32, #tpu.memory_space<vmem>>, vector<1x1x32xf32>
    %104 = vector.shape_cast %103 : vector<1x1x32xf32> to vector<1x32xf32>
    %105 = vector.broadcast %104 : vector<1x32xf32> to vector<16x32xf32>
    %106 = arith.addf %102, %105 : vector<16x32xf32>
    %107 = arith.addf %41, %106 : vector<16x32xf32>
    %c0_43 = arith.constant 0 : index
    %c0_44 = arith.constant 0 : index
    %c0_45 = arith.constant 0 : index
    %108 = vector.load %arg12[%c0_43, %c0_44, %c0_45] : memref<2x1x32xf32, #tpu.memory_space<vmem>>, vector<1x1x32xf32>
    %109 = vector.shape_cast %108 : vector<1x1x32xf32> to vector<1x32xf32>
    %c0_46 = arith.constant 0 : index
    %c0_47 = arith.constant 0 : index
    %c0_48 = arith.constant 0 : index
    %110 = vector.load %arg13[%c0_46, %c0_47, %c0_48] : memref<2x1x32xf32, #tpu.memory_space<vmem>>, vector<1x1x32xf32>
    %111 = vector.shape_cast %110 : vector<1x1x32xf32> to vector<1x32xf32>
    %cst_49 = arith.constant dense<0.000000e+00> : vector<16xf32>
    %112 = vector.multi_reduction <add>, %107, %cst_49 [1] : vector<16x32xf32> to vector<16xf32>
    %113 = vector.shape_cast %112 : vector<16xf32> to vector<16x1xf32>
    %cst_50 = arith.constant 3.200000e+01 : f32
    %114 = vector.broadcast %cst_50 : f32 to vector<16x1xf32>
    %115 = arith.divf %113, %114 : vector<16x1xf32>
    %116 = vector.broadcast %115 : vector<16x1xf32> to vector<16x32xf32>
    %117 = arith.subf %107, %116 : vector<16x32xf32>
    %118 = arith.mulf %117, %117 : vector<16x32xf32>
    %cst_51 = arith.constant dense<0.000000e+00> : vector<16xf32>
    %119 = vector.multi_reduction <add>, %118, %cst_51 [1] : vector<16x32xf32> to vector<16xf32>
    %120 = vector.shape_cast %119 : vector<16xf32> to vector<16x1xf32>
    %cst_52 = arith.constant 3.200000e+01 : f32
    %121 = vector.broadcast %cst_52 : f32 to vector<16x1xf32>
    %122 = arith.divf %120, %121 : vector<16x1xf32>
    %cst_53 = arith.constant 9.99999996E-13 : f32
    %123 = vector.broadcast %cst_53 : f32 to vector<16x1xf32>
    %124 = arith.addf %122, %123 : vector<16x1xf32>
    %125 = math.rsqrt %124 : vector<16x1xf32>
    %126 = vector.broadcast %125 : vector<16x1xf32> to vector<16x32xf32>
    %127 = arith.mulf %117, %126 : vector<16x32xf32>
    %128 = vector.broadcast %109 : vector<1x32xf32> to vector<16x32xf32>
    %129 = arith.mulf %127, %128 : vector<16x32xf32>
    %130 = vector.broadcast %111 : vector<1x32xf32> to vector<16x32xf32>
    %131 = arith.addf %129, %130 : vector<16x32xf32>
    %c0_54 = arith.constant 0 : index
    %c0_55 = arith.constant 0 : index
    %c0_56 = arith.constant 0 : index
    %132 = vector.load %arg14[%c0_54, %c0_55, %c0_56] : memref<2x32x64xf32, #tpu.memory_space<vmem>>, vector<1x32x64xf32>
    %133 = vector.shape_cast %132 : vector<1x32x64xf32> to vector<32x64xf32>
    %cst_57 = arith.constant dense<0.000000e+00> : vector<16x64xf32>
    %134 = tpu.matmul %131, %133, %cst_57 {dimension_numbers = #tpu.dot_dimension_numbers<[1], [0], [0], [1], [0, 0, 1, 1], [], []>} : vector<16x32xf32>, vector<32x64xf32>, vector<16x64xf32> -> vector<16x64xf32>
    %c0_58 = arith.constant 0 : index
    %c0_59 = arith.constant 0 : index
    %c0_60 = arith.constant 0 : index
    %135 = vector.load %arg15[%c0_58, %c0_59, %c0_60] : memref<2x1x64xf32, #tpu.memory_space<vmem>>, vector<1x1x64xf32>
    %136 = vector.shape_cast %135 : vector<1x1x64xf32> to vector<1x64xf32>
    %137 = vector.broadcast %136 : vector<1x64xf32> to vector<16x64xf32>
    %138 = arith.addf %134, %137 : vector<16x64xf32>
    %cst_61 = arith.constant 5.000000e-01 : f32
    %139 = vector.broadcast %cst_61 : f32 to vector<16x64xf32>
    %140 = arith.mulf %139, %138 : vector<16x64xf32>
    %cst_62 = arith.constant 4.471500e-02 : f32
    %141 = vector.broadcast %cst_62 : f32 to vector<16x64xf32>
    %142 = arith.mulf %141, %138 : vector<16x64xf32>
    %143 = arith.mulf %142, %138 : vector<16x64xf32>
    %144 = arith.mulf %143, %138 : vector<16x64xf32>
    %145 = arith.addf %138, %144 : vector<16x64xf32>
    %cst_63 = arith.constant 0.797884583 : f32
    %146 = vector.broadcast %cst_63 : f32 to vector<16x64xf32>
    %147 = arith.mulf %146, %145 : vector<16x64xf32>
    %148 = math.tanh %147 : vector<16x64xf32>
    %cst_64 = arith.constant 1.000000e+00 : f32
    %149 = vector.broadcast %cst_64 : f32 to vector<16x64xf32>
    %150 = arith.addf %149, %148 : vector<16x64xf32>
    %151 = arith.mulf %140, %150 : vector<16x64xf32>
    %c0_65 = arith.constant 0 : index
    %c0_66 = arith.constant 0 : index
    %c0_67 = arith.constant 0 : index
    %152 = vector.load %arg16[%c0_65, %c0_66, %c0_67] : memref<2x64x32xf32, #tpu.memory_space<vmem>>, vector<1x64x32xf32>
    %153 = vector.shape_cast %152 : vector<1x64x32xf32> to vector<64x32xf32>
    %cst_68 = arith.constant dense<0.000000e+00> : vector<16x32xf32>
    %154 = tpu.matmul %151, %153, %cst_68 {dimension_numbers = #tpu.dot_dimension_numbers<[1], [0], [0], [1], [0, 0, 1, 1], [], []>} : vector<16x64xf32>, vector<64x32xf32>, vector<16x32xf32> -> vector<16x32xf32>
    %c0_69 = arith.constant 0 : index
    %c0_70 = arith.constant 0 : index
    %c0_71 = arith.constant 0 : index
    %155 = vector.load %arg17[%c0_69, %c0_70, %c0_71] : memref<2x1x32xf32, #tpu.memory_space<vmem>>, vector<1x1x32xf32>
    %156 = vector.shape_cast %155 : vector<1x1x32xf32> to vector<1x32xf32>
    %157 = vector.broadcast %156 : vector<1x32xf32> to vector<16x32xf32>
    %158 = arith.addf %154, %157 : vector<16x32xf32>
    %159 = arith.addf %131, %158 : vector<16x32xf32>
    %c0_72 = arith.constant 0 : index
    %c0_73 = arith.constant 0 : index
    %c0_74 = arith.constant 0 : index
    %160 = vector.load %arg18[%c0_72, %c0_73, %c0_74] : memref<2x1x32xf32, #tpu.memory_space<vmem>>, vector<1x1x32xf32>
    %161 = vector.shape_cast %160 : vector<1x1x32xf32> to vector<1x32xf32>
    %c0_75 = arith.constant 0 : index
    %c0_76 = arith.constant 0 : index
    %c0_77 = arith.constant 0 : index
    %162 = vector.load %arg19[%c0_75, %c0_76, %c0_77] : memref<2x1x32xf32, #tpu.memory_space<vmem>>, vector<1x1x32xf32>
    %163 = vector.shape_cast %162 : vector<1x1x32xf32> to vector<1x32xf32>
    %cst_78 = arith.constant dense<0.000000e+00> : vector<16xf32>
    %164 = vector.multi_reduction <add>, %159, %cst_78 [1] : vector<16x32xf32> to vector<16xf32>
    %165 = vector.shape_cast %164 : vector<16xf32> to vector<16x1xf32>
    %cst_79 = arith.constant 3.200000e+01 : f32
    %166 = vector.broadcast %cst_79 : f32 to vector<16x1xf32>
    %167 = arith.divf %165, %166 : vector<16x1xf32>
    %168 = vector.broadcast %167 : vector<16x1xf32> to vector<16x32xf32>
    %169 = arith.subf %159, %168 : vector<16x32xf32>
    %170 = arith.mulf %169, %169 : vector<16x32xf32>
    %cst_80 = arith.constant dense<0.000000e+00> : vector<16xf32>
    %171 = vector.multi_reduction <add>, %170, %cst_80 [1] : vector<16x32xf32> to vector<16xf32>
    %172 = vector.shape_cast %171 : vector<16xf32> to vector<16x1xf32>
    %cst_81 = arith.constant 3.200000e+01 : f32
    %173 = vector.broadcast %cst_81 : f32 to vector<16x1xf32>
    %174 = arith.divf %172, %173 : vector<16x1xf32>
    %cst_82 = arith.constant 9.99999996E-13 : f32
    %175 = vector.broadcast %cst_82 : f32 to vector<16x1xf32>
    %176 = arith.addf %174, %175 : vector<16x1xf32>
    %177 = math.rsqrt %176 : vector<16x1xf32>
    %178 = vector.broadcast %177 : vector<16x1xf32> to vector<16x32xf32>
    %179 = arith.mulf %169, %178 : vector<16x32xf32>
    %180 = vector.broadcast %161 : vector<1x32xf32> to vector<16x32xf32>
    %181 = arith.mulf %179, %180 : vector<16x32xf32>
    %182 = vector.broadcast %163 : vector<1x32xf32> to vector<16x32xf32>
    %183 = arith.addf %181, %182 : vector<16x32xf32>
    %c1 = arith.constant 1 : index
    %c0_83 = arith.constant 0 : index
    %c0_84 = arith.constant 0 : index
    %184 = vector.load %arg8[%c1, %c0_83, %c0_84] : memref<2x32x96xf32, #tpu.memory_space<vmem>>, vector<1x32x96xf32>
    %185 = vector.shape_cast %184 : vector<1x32x96xf32> to vector<32x96xf32>
    %cst_85 = arith.constant dense<0.000000e+00> : vector<16x96xf32>
    %186 = tpu.matmul %183, %185, %cst_85 {dimension_numbers = #tpu.dot_dimension_numbers<[1], [0], [0], [1], [0, 0, 1, 1], [], []>} : vector<16x32xf32>, vector<32x96xf32>, vector<16x96xf32> -> vector<16x96xf32>
    %c1_86 = arith.constant 1 : index
    %c0_87 = arith.constant 0 : index
    %c0_88 = arith.constant 0 : index
    %187 = vector.load %arg9[%c1_86, %c0_87, %c0_88] : memref<2x1x96xf32, #tpu.memory_space<vmem>>, vector<1x1x96xf32>
    %188 = vector.shape_cast %187 : vector<1x1x96xf32> to vector<1x96xf32>
    %189 = vector.broadcast %188 : vector<1x96xf32> to vector<16x96xf32>
    %190 = arith.addf %186, %189 : vector<16x96xf32>
    %c1_89 = arith.constant 1 : index
    %c0_90 = arith.constant 0 : index
    %c0_91 = arith.constant 0 : index
    %191 = vector.load %arg10[%c1_89, %c0_90, %c0_91] : memref<2x32x32xf32, #tpu.memory_space<vmem>>, vector<1x32x32xf32>
    %192 = vector.shape_cast %191 : vector<1x32x32xf32> to vector<32x32xf32>
    %193 = vector.extract_strided_slice %190 {offsets = [0, 0], sizes = [16, 16], strides = [1, 1]} : vector<16x96xf32> to vector<16x16xf32>
    %194 = vector.shape_cast %193 : vector<16x16xf32> to vector<2x8x16xf32>
    %195 = vector.extract_strided_slice %190 {offsets = [0, 32], sizes = [16, 16], strides = [1, 1]} : vector<16x96xf32> to vector<16x16xf32>
    %196 = vector.shape_cast %195 : vector<16x16xf32> to vector<2x8x16xf32>
    %197 = vector.extract_strided_slice %190 {offsets = [0, 64], sizes = [16, 16], strides = [1, 1]} : vector<16x96xf32> to vector<16x16xf32>
    %198 = vector.shape_cast %197 : vector<16x16xf32> to vector<2x8x16xf32>
    "tpu.trace_start"() <{level = 10 : i32, message = "bqd,bkd->bqk"}> : () -> ()
    %cst_92 = arith.constant dense<0.000000e+00> : vector<2x8x8xf32>
    %199 = tpu.matmul %194, %196, %cst_92 {dimension_numbers = #tpu.dot_dimension_numbers<[2], [2], [1], [1], [0, 0, 0, 1, 1, 1], [0], [0]>} : vector<2x8x16xf32>, vector<2x8x16xf32>, vector<2x8x8xf32> -> vector<2x8x8xf32>
    "tpu.trace_stop"() : () -> ()
    %200 = vector.broadcast %48 : vector<2x1x8xf32> to vector<2x8x8xf32>
    %201 = arith.addf %199, %200 : vector<2x8x8xf32>
    %cst_93 = arith.constant dense<0xFF800000> : vector<2x8xf32>
    %202 = vector.multi_reduction <maximumf>, %201, %cst_93 [2] : vector<2x8x8xf32> to vector<2x8xf32>
    %203 = vector.shape_cast %202 : vector<2x8xf32> to vector<2x8x1xf32>
    %204 = vector.broadcast %203 : vector<2x8x1xf32> to vector<2x8x8xf32>
    %205 = arith.subf %201, %204 : vector<2x8x8xf32>
    %206 = math.exp %205 : vector<2x8x8xf32>
    %cst_94 = arith.constant dense<0.000000e+00> : vector<2x8xf32>
    %207 = vector.multi_reduction <add>, %206, %cst_94 [2] : vector<2x8x8xf32> to vector<2x8xf32>
    %208 = vector.shape_cast %207 : vector<2x8xf32> to vector<2x8x1xf32>
    %209 = vector.broadcast %208 : vector<2x8x1xf32> to vector<2x8x8xf32>
    %210 = arith.divf %206, %209 : vector<2x8x8xf32>
    "tpu.trace_start"() <{level = 10 : i32, message = "bqk,bkd->bqd"}> : () -> ()
    %cst_95 = arith.constant dense<0.000000e+00> : vector<2x8x16xf32>
    %211 = tpu.matmul %210, %198, %cst_95 {dimension_numbers = #tpu.dot_dimension_numbers<[2], [1], [1], [2], [0, 0, 0, 1, 1, 2], [0], [0]>} : vector<2x8x8xf32>, vector<2x8x16xf32>, vector<2x8x16xf32> -> vector<2x8x16xf32>
    "tpu.trace_stop"() : () -> ()
    %212 = vector.shape_cast %211 : vector<2x8x16xf32> to vector<16x16xf32>
    %213 = vector.extract_strided_slice %192 {offsets = [0, 0], sizes = [16, 32], strides = [1, 1]} : vector<32x32xf32> to vector<16x32xf32>
    %cst_96 = arith.constant dense<0.000000e+00> : vector<16x32xf32>
    %214 = tpu.matmul %212, %213, %cst_96 {dimension_numbers = #tpu.dot_dimension_numbers<[1], [0], [0], [1], [0, 0, 1, 1], [], []>} : vector<16x16xf32>, vector<16x32xf32>, vector<16x32xf32> -> vector<16x32xf32>
    %215 = vector.extract_strided_slice %190 {offsets = [0, 16], sizes = [16, 16], strides = [1, 1]} : vector<16x96xf32> to vector<16x16xf32>
    %216 = vector.shape_cast %215 : vector<16x16xf32> to vector<2x8x16xf32>
    %217 = vector.extract_strided_slice %190 {offsets = [0, 48], sizes = [16, 16], strides = [1, 1]} : vector<16x96xf32> to vector<16x16xf32>
    %218 = vector.shape_cast %217 : vector<16x16xf32> to vector<2x8x16xf32>
    %219 = vector.extract_strided_slice %190 {offsets = [0, 80], sizes = [16, 16], strides = [1, 1]} : vector<16x96xf32> to vector<16x16xf32>
    %220 = vector.shape_cast %219 : vector<16x16xf32> to vector<2x8x16xf32>
    "tpu.trace_start"() <{level = 10 : i32, message = "bqd,bkd->bqk"}> : () -> ()
    %cst_97 = arith.constant dense<0.000000e+00> : vector<2x8x8xf32>
    %221 = tpu.matmul %216, %218, %cst_97 {dimension_numbers = #tpu.dot_dimension_numbers<[2], [2], [1], [1], [0, 0, 0, 1, 1, 1], [0], [0]>} : vector<2x8x16xf32>, vector<2x8x16xf32>, vector<2x8x8xf32> -> vector<2x8x8xf32>
    "tpu.trace_stop"() : () -> ()
    %222 = vector.broadcast %48 : vector<2x1x8xf32> to vector<2x8x8xf32>
    %223 = arith.addf %221, %222 : vector<2x8x8xf32>
    %cst_98 = arith.constant dense<0xFF800000> : vector<2x8xf32>
    %224 = vector.multi_reduction <maximumf>, %223, %cst_98 [2] : vector<2x8x8xf32> to vector<2x8xf32>
    %225 = vector.shape_cast %224 : vector<2x8xf32> to vector<2x8x1xf32>
    %226 = vector.broadcast %225 : vector<2x8x1xf32> to vector<2x8x8xf32>
    %227 = arith.subf %223, %226 : vector<2x8x8xf32>
    %228 = math.exp %227 : vector<2x8x8xf32>
    %cst_99 = arith.constant dense<0.000000e+00> : vector<2x8xf32>
    %229 = vector.multi_reduction <add>, %228, %cst_99 [2] : vector<2x8x8xf32> to vector<2x8xf32>
    %230 = vector.shape_cast %229 : vector<2x8xf32> to vector<2x8x1xf32>
    %231 = vector.broadcast %230 : vector<2x8x1xf32> to vector<2x8x8xf32>
    %232 = arith.divf %228, %231 : vector<2x8x8xf32>
    "tpu.trace_start"() <{level = 10 : i32, message = "bqk,bkd->bqd"}> : () -> ()
    %cst_100 = arith.constant dense<0.000000e+00> : vector<2x8x16xf32>
    %233 = tpu.matmul %232, %220, %cst_100 {dimension_numbers = #tpu.dot_dimension_numbers<[2], [1], [1], [2], [0, 0, 0, 1, 1, 2], [0], [0]>} : vector<2x8x8xf32>, vector<2x8x16xf32>, vector<2x8x16xf32> -> vector<2x8x16xf32>
    "tpu.trace_stop"() : () -> ()
    %234 = vector.shape_cast %233 : vector<2x8x16xf32> to vector<16x16xf32>
    %235 = vector.extract_strided_slice %192 {offsets = [16, 0], sizes = [16, 32], strides = [1, 1]} : vector<32x32xf32> to vector<16x32xf32>
    %cst_101 = arith.constant dense<0.000000e+00> : vector<16x32xf32>
    %236 = tpu.matmul %234, %235, %cst_101 {dimension_numbers = #tpu.dot_dimension_numbers<[1], [0], [0], [1], [0, 0, 1, 1], [], []>} : vector<16x16xf32>, vector<16x32xf32>, vector<16x32xf32> -> vector<16x32xf32>
    %237 = arith.addf %214, %236 : vector<16x32xf32>
    %c1_102 = arith.constant 1 : index
    %c0_103 = arith.constant 0 : index
    %c0_104 = arith.constant 0 : index
    %238 = vector.load %arg11[%c1_102, %c0_103, %c0_104] : memref<2x1x32xf32, #tpu.memory_space<vmem>>, vector<1x1x32xf32>
    %239 = vector.shape_cast %238 : vector<1x1x32xf32> to vector<1x32xf32>
    %240 = vector.broadcast %239 : vector<1x32xf32> to vector<16x32xf32>
    %241 = arith.addf %237, %240 : vector<16x32xf32>
    %242 = arith.addf %183, %241 : vector<16x32xf32>
    %c1_105 = arith.constant 1 : index
    %c0_106 = arith.constant 0 : index
    %c0_107 = arith.constant 0 : index
    %243 = vector.load %arg12[%c1_105, %c0_106, %c0_107] : memref<2x1x32xf32, #tpu.memory_space<vmem>>, vector<1x1x32xf32>
    %244 = vector.shape_cast %243 : vector<1x1x32xf32> to vector<1x32xf32>
    %c1_108 = arith.constant 1 : index
    %c0_109 = arith.constant 0 : index
    %c0_110 = arith.constant 0 : index
    %245 = vector.load %arg13[%c1_108, %c0_109, %c0_110] : memref<2x1x32xf32, #tpu.memory_space<vmem>>, vector<1x1x32xf32>
    %246 = vector.shape_cast %245 : vector<1x1x32xf32> to vector<1x32xf32>
    %cst_111 = arith.constant dense<0.000000e+00> : vector<16xf32>
    %247 = vector.multi_reduction <add>, %242, %cst_111 [1] : vector<16x32xf32> to vector<16xf32>
    %248 = vector.shape_cast %247 : vector<16xf32> to vector<16x1xf32>
    %cst_112 = arith.constant 3.200000e+01 : f32
    %249 = vector.broadcast %cst_112 : f32 to vector<16x1xf32>
    %250 = arith.divf %248, %249 : vector<16x1xf32>
    %251 = vector.broadcast %250 : vector<16x1xf32> to vector<16x32xf32>
    %252 = arith.subf %242, %251 : vector<16x32xf32>
    %253 = arith.mulf %252, %252 : vector<16x32xf32>
    %cst_113 = arith.constant dense<0.000000e+00> : vector<16xf32>
    %254 = vector.multi_reduction <add>, %253, %cst_113 [1] : vector<16x32xf32> to vector<16xf32>
    %255 = vector.shape_cast %254 : vector<16xf32> to vector<16x1xf32>
    %cst_114 = arith.constant 3.200000e+01 : f32
    %256 = vector.broadcast %cst_114 : f32 to vector<16x1xf32>
    %257 = arith.divf %255, %256 : vector<16x1xf32>
    %cst_115 = arith.constant 9.99999996E-13 : f32
    %258 = vector.broadcast %cst_115 : f32 to vector<16x1xf32>
    %259 = arith.addf %257, %258 : vector<16x1xf32>
    %260 = math.rsqrt %259 : vector<16x1xf32>
    %261 = vector.broadcast %260 : vector<16x1xf32> to vector<16x32xf32>
    %262 = arith.mulf %252, %261 : vector<16x32xf32>
    %263 = vector.broadcast %244 : vector<1x32xf32> to vector<16x32xf32>
    %264 = arith.mulf %262, %263 : vector<16x32xf32>
    %265 = vector.broadcast %246 : vector<1x32xf32> to vector<16x32xf32>
    %266 = arith.addf %264, %265 : vector<16x32xf32>
    %c1_116 = arith.constant 1 : index
    %c0_117 = arith.constant 0 : index
    %c0_118 = arith.constant 0 : index
    %267 = vector.load %arg14[%c1_116, %c0_117, %c0_118] : memref<2x32x64xf32, #tpu.memory_space<vmem>>, vector<1x32x64xf32>
    %268 = vector.shape_cast %267 : vector<1x32x64xf32> to vector<32x64xf32>
    %cst_119 = arith.constant dense<0.000000e+00> : vector<16x64xf32>
    %269 = tpu.matmul %266, %268, %cst_119 {dimension_numbers = #tpu.dot_dimension_numbers<[1], [0], [0], [1], [0, 0, 1, 1], [], []>} : vector<16x32xf32>, vector<32x64xf32>, vector<16x64xf32> -> vector<16x64xf32>
    %c1_120 = arith.constant 1 : index
    %c0_121 = arith.constant 0 : index
    %c0_122 = arith.constant 0 : index
    %270 = vector.load %arg15[%c1_120, %c0_121, %c0_122] : memref<2x1x64xf32, #tpu.memory_space<vmem>>, vector<1x1x64xf32>
    %271 = vector.shape_cast %270 : vector<1x1x64xf32> to vector<1x64xf32>
    %272 = vector.broadcast %271 : vector<1x64xf32> to vector<16x64xf32>
    %273 = arith.addf %269, %272 : vector<16x64xf32>
    %cst_123 = arith.constant 5.000000e-01 : f32
    %274 = vector.broadcast %cst_123 : f32 to vector<16x64xf32>
    %275 = arith.mulf %274, %273 : vector<16x64xf32>
    %cst_124 = arith.constant 4.471500e-02 : f32
    %276 = vector.broadcast %cst_124 : f32 to vector<16x64xf32>
    %277 = arith.mulf %276, %273 : vector<16x64xf32>
    %278 = arith.mulf %277, %273 : vector<16x64xf32>
    %279 = arith.mulf %278, %273 : vector<16x64xf32>
    %280 = arith.addf %273, %279 : vector<16x64xf32>
    %cst_125 = arith.constant 0.797884583 : f32
    %281 = vector.broadcast %cst_125 : f32 to vector<16x64xf32>
    %282 = arith.mulf %281, %280 : vector<16x64xf32>
    %283 = math.tanh %282 : vector<16x64xf32>
    %cst_126 = arith.constant 1.000000e+00 : f32
    %284 = vector.broadcast %cst_126 : f32 to vector<16x64xf32>
    %285 = arith.addf %284, %283 : vector<16x64xf32>
    %286 = arith.mulf %275, %285 : vector<16x64xf32>
    %c1_127 = arith.constant 1 : index
    %c0_128 = arith.constant 0 : index
    %c0_129 = arith.constant 0 : index
    %287 = vector.load %arg16[%c1_127, %c0_128, %c0_129] : memref<2x64x32xf32, #tpu.memory_space<vmem>>, vector<1x64x32xf32>
    %288 = vector.shape_cast %287 : vector<1x64x32xf32> to vector<64x32xf32>
    %cst_130 = arith.constant dense<0.000000e+00> : vector<16x32xf32>
    %289 = tpu.matmul %286, %288, %cst_130 {dimension_numbers = #tpu.dot_dimension_numbers<[1], [0], [0], [1], [0, 0, 1, 1], [], []>} : vector<16x64xf32>, vector<64x32xf32>, vector<16x32xf32> -> vector<16x32xf32>
    %c1_131 = arith.constant 1 : index
    %c0_132 = arith.constant 0 : index
    %c0_133 = arith.constant 0 : index
    %290 = vector.load %arg17[%c1_131, %c0_132, %c0_133] : memref<2x1x32xf32, #tpu.memory_space<vmem>>, vector<1x1x32xf32>
    %291 = vector.shape_cast %290 : vector<1x1x32xf32> to vector<1x32xf32>
    %292 = vector.broadcast %291 : vector<1x32xf32> to vector<16x32xf32>
    %293 = arith.addf %289, %292 : vector<16x32xf32>
    %294 = arith.addf %266, %293 : vector<16x32xf32>
    %c1_134 = arith.constant 1 : index
    %c0_135 = arith.constant 0 : index
    %c0_136 = arith.constant 0 : index
    %295 = vector.load %arg18[%c1_134, %c0_135, %c0_136] : memref<2x1x32xf32, #tpu.memory_space<vmem>>, vector<1x1x32xf32>
    %296 = vector.shape_cast %295 : vector<1x1x32xf32> to vector<1x32xf32>
    %c1_137 = arith.constant 1 : index
    %c0_138 = arith.constant 0 : index
    %c0_139 = arith.constant 0 : index
    %297 = vector.load %arg19[%c1_137, %c0_138, %c0_139] : memref<2x1x32xf32, #tpu.memory_space<vmem>>, vector<1x1x32xf32>
    %298 = vector.shape_cast %297 : vector<1x1x32xf32> to vector<1x32xf32>
    %cst_140 = arith.constant dense<0.000000e+00> : vector<16xf32>
    %299 = vector.multi_reduction <add>, %294, %cst_140 [1] : vector<16x32xf32> to vector<16xf32>
    %300 = vector.shape_cast %299 : vector<16xf32> to vector<16x1xf32>
    %cst_141 = arith.constant 3.200000e+01 : f32
    %301 = vector.broadcast %cst_141 : f32 to vector<16x1xf32>
    %302 = arith.divf %300, %301 : vector<16x1xf32>
    %303 = vector.broadcast %302 : vector<16x1xf32> to vector<16x32xf32>
    %304 = arith.subf %294, %303 : vector<16x32xf32>
    %305 = arith.mulf %304, %304 : vector<16x32xf32>
    %cst_142 = arith.constant dense<0.000000e+00> : vector<16xf32>
    %306 = vector.multi_reduction <add>, %305, %cst_142 [1] : vector<16x32xf32> to vector<16xf32>
    %307 = vector.shape_cast %306 : vector<16xf32> to vector<16x1xf32>
    %cst_143 = arith.constant 3.200000e+01 : f32
    %308 = vector.broadcast %cst_143 : f32 to vector<16x1xf32>
    %309 = arith.divf %307, %308 : vector<16x1xf32>
    %cst_144 = arith.constant 9.99999996E-13 : f32
    %310 = vector.broadcast %cst_144 : f32 to vector<16x1xf32>
    %311 = arith.addf %309, %310 : vector<16x1xf32>
    %312 = math.rsqrt %311 : vector<16x1xf32>
    %313 = vector.broadcast %312 : vector<16x1xf32> to vector<16x32xf32>
    %314 = arith.mulf %304, %313 : vector<16x32xf32>
    %315 = vector.broadcast %296 : vector<1x32xf32> to vector<16x32xf32>
    %316 = arith.mulf %314, %315 : vector<16x32xf32>
    %317 = vector.broadcast %298 : vector<1x32xf32> to vector<16x32xf32>
    %318 = arith.addf %316, %317 : vector<16x32xf32>
    %319 = vector.shape_cast %318 : vector<16x32xf32> to vector<2x8x32xf32>
    %320 = vector.extract_strided_slice %319 {offsets = [0, 0, 0], sizes = [2, 1, 32], strides = [1, 1, 1]} : vector<2x8x32xf32> to vector<2x1x32xf32>
    %321 = vector.shape_cast %320 : vector<2x1x32xf32> to vector<2x32xf32>
    %c0_145 = arith.constant 0 : index
    %c0_146 = arith.constant 0 : index
    %322 = vector.load %arg20[%c0_145, %c0_146] : memref<32x32xf32, #tpu.memory_space<vmem>>, vector<32x32xf32>
    %cst_147 = arith.constant dense<0.000000e+00> : vector<2x32xf32>
    %323 = tpu.matmul %321, %322, %cst_147 {dimension_numbers = #tpu.dot_dimension_numbers<[1], [0], [0], [1], [0, 0, 1, 1], [], []>} : vector<2x32xf32>, vector<32x32xf32>, vector<2x32xf32> -> vector<2x32xf32>
    %c0_148 = arith.constant 0 : index
    %c0_149 = arith.constant 0 : index
    %324 = vector.load %arg21[%c0_148, %c0_149] : memref<1x32xf32, #tpu.memory_space<vmem>>, vector<1x32xf32>
    %325 = vector.broadcast %324 : vector<1x32xf32> to vector<2x32xf32>
    %326 = arith.addf %323, %325 : vector<2x32xf32>
    %327 = math.tanh %326 : vector<2x32xf32>
    %c0_150 = arith.constant 0 : index
    %c0_151 = arith.constant 0 : index
    %328 = vector.load %arg22[%c0_150, %c0_151] : memref<32x256xf32, #tpu.memory_space<vmem>>, vector<32x256xf32>
    %cst_152 = arith.constant dense<0.000000e+00> : vector<2x256xf32>
    %329 = tpu.matmul %327, %328, %cst_152 {dimension_numbers = #tpu.dot_dimension_numbers<[1], [0], [0], [1], [0, 0, 1, 1], [], []>} : vector<2x32xf32>, vector<32x256xf32>, vector<2x256xf32> -> vector<2x256xf32>
    %c0_153 = arith.constant 0 : index
    %c0_154 = arith.constant 0 : index
    %330 = vector.load %arg23[%c0_153, %c0_154] : memref<1x256xf32, #tpu.memory_space<vmem>>, vector<1x256xf32>
    %331 = vector.broadcast %330 : vector<1x256xf32> to vector<2x256xf32>
    %332 = arith.addf %329, %331 : vector<2x256xf32>
    %cst_155 = arith.constant 0.000000e+00 : f32
    %333 = vector.broadcast %cst_155 : f32 to vector<2x256xf32>
    %334 = arith.maximumf %332, %333 : vector<2x256xf32>
    %c0_156 = arith.constant 0 : index
    %c0_157 = arith.constant 0 : index
    %335 = vector.load %arg24[%c0_156, %c0_157] : memref<256x128xf32, #tpu.memory_space<vmem>>, vector<256x128xf32>
    %cst_158 = arith.constant dense<0.000000e+00> : vector<2x128xf32>
    %336 = tpu.matmul %334, %335, %cst_158 {dimension_numbers = #tpu.dot_dimension_numbers<[1], [0], [0], [1], [0, 0, 1, 1], [], []>} : vector<2x256xf32>, vector<256x128xf32>, vector<2x128xf32> -> vector<2x128xf32>
    %c0_159 = arith.constant 0 : index
    %c0_160 = arith.constant 0 : index
    %337 = vector.load %arg25[%c0_159, %c0_160] : memref<1x128xf32, #tpu.memory_space<vmem>>, vector<1x128xf32>
    %338 = vector.broadcast %337 : vector<1x128xf32> to vector<2x128xf32>
    %339 = arith.addf %336, %338 : vector<2x128xf32>
    %c0_161 = arith.constant 0 : index
    %c0_162 = arith.constant 0 : index
    %340 = vector.load %arg26[%c0_161, %c0_162] : memref<2x128xf32, #tpu.memory_space<vmem>>, vector<2x128xf32>
    tpu.vector_store %arg26[%c0_161, %c0_162], %339 {strides = array<i32>} : memref<2x128xf32, #tpu.memory_space<vmem>>, vector<2x128xf32>,
    return
  }
  func.func @transform_0(%arg0: i32) -> (i32, i32) {
    %c0_i32 = arith.constant 0 : i32
    %c0_i32_0 = arith.constant 0 : i32
    %c0_i32_1 = arith.constant 0 : i32
    return %c0_i32, %c0_i32_0 : i32, i32
  }
  func.func @transform_1(%arg0: i32) -> (i32, i32) {
    %c0_i32 = arith.constant 0 : i32
    %c0_i32_0 = arith.constant 0 : i32
    %c0_i32_1 = arith.constant 0 : i32
    return %c0_i32, %c0_i32_0 : i32, i32
  }
  func.func @transform_2(%arg0: i32) -> (i32, i32) {
    %c0_i32 = arith.constant 0 : i32
    %c0_i32_0 = arith.constant 0 : i32
    %c0_i32_1 = arith.constant 0 : i32
    return %c0_i32, %c0_i32_0 : i32, i32
  }
  func.func @transform_3(%arg0: i32) -> (i32, i32) {
    %c0_i32 = arith.constant 0 : i32
    %c0_i32_0 = arith.constant 0 : i32
    %c0_i32_1 = arith.constant 0 : i32
    return %c0_i32, %c0_i32_0 : i32, i32
  }
  func.func @transform_4(%arg0: i32) -> (i32, i32) {
    %c0_i32 = arith.constant 0 : i32
    %c0_i32_0 = arith.constant 0 : i32
    %c0_i32_1 = arith.constant 0 : i32
    return %c0_i32, %c0_i32_0 : i32, i32
  }
  func.func @transform_5(%arg0: i32) -> (i32, i32) {
    %c0_i32 = arith.constant 0 : i32
    %c0_i32_0 = arith.constant 0 : i32
    %c0_i32_1 = arith.constant 0 : i32
    return %c0_i32, %c0_i32_0 : i32, i32
  }
  func.func @transform_6(%arg0: i32) -> (i32, i32) {
    %c0_i32 = arith.constant 0 : i32
    %c0_i32_0 = arith.constant 0 : i32
    %c0_i32_1 = arith.constant 0 : i32
    return %c0_i32, %c0_i32_0 : i32, i32
  }
  func.func @transform_7(%arg0: i32) -> (i32, i32, i32) {
    %c0_i32 = arith.constant 0 : i32
    %c0_i32_0 = arith.constant 0 : i32
    %c0_i32_1 = arith.constant 0 : i32
    %c0_i32_2 = arith.constant 0 : i32
    return %c0_i32, %c0_i32_0, %c0_i32_1 : i32, i32, i32
  }
  func.func @transform_8(%arg0: i32) -> (i32, i32, i32) {
    %c0_i32 = arith.constant 0 : i32
    %c0_i32_0 = arith.constant 0 : i32
    %c0_i32_1 = arith.constant 0 : i32
    %c0_i32_2 = arith.constant 0 : i32
    return %c0_i32, %c0_i32_0, %c0_i32_1 : i32, i32, i32
  }
  func.func @transform_9(%arg0: i32) -> (i32, i32, i32) {
    %c0_i32 = arith.constant 0 : i32
    %c0_i32_0 = arith.constant 0 : i32
    %c0_i32_1 = arith.constant 0 : i32
    %c0_i32_2 = arith.constant 0 : i32
    return %c0_i32, %c0_i32_0, %c0_i32_1 : i32, i32, i32
  }
  func.func @transform_10(%arg0: i32) -> (i32, i32, i32) {
    %c0_i32 = arith.constant 0 : i32
    %c0_i32_0 = arith.constant 0 : i32
    %c0_i32_1 = arith.constant 0 : i32
    %c0_i32_2 = arith.constant 0 : i32
    return %c0_i32, %c0_i32_0, %c0_i32_1 : i32, i32, i32
  }
  func.func @transform_11(%arg0: i32) -> (i32, i32, i32) {
    %c0_i32 = arith.constant 0 : i32
    %c0_i32_0 = arith.constant 0 : i32
    %c0_i32_1 = arith.constant 0 : i32
    %c0_i32_2 = arith.constant 0 : i32
    return %c0_i32, %c0_i32_0, %c0_i32_1 : i32, i32, i32
  }
  func.func @transform_12(%arg0: i32) -> (i32, i32, i32) {
    %c0_i32 = arith.constant 0 : i32
    %c0_i32_0 = arith.constant 0 : i32
    %c0_i32_1 = arith.constant 0 : i32
    %c0_i32_2 = arith.constant 0 : i32
    return %c0_i32, %c0_i32_0, %c0_i32_1 : i32, i32, i32
  }
  func.func @transform_13(%arg0: i32) -> (i32, i32, i32) {
    %c0_i32 = arith.constant 0 : i32
    %c0_i32_0 = arith.constant 0 : i32
    %c0_i32_1 = arith.constant 0 : i32
    %c0_i32_2 = arith.constant 0 : i32
    return %c0_i32, %c0_i32_0, %c0_i32_1 : i32, i32, i32
  }
  func.func @transform_14(%arg0: i32) -> (i32, i32, i32) {
    %c0_i32 = arith.constant 0 : i32
    %c0_i32_0 = arith.constant 0 : i32
    %c0_i32_1 = arith.constant 0 : i32
    %c0_i32_2 = arith.constant 0 : i32
    return %c0_i32, %c0_i32_0, %c0_i32_1 : i32, i32, i32
  }
  func.func @transform_15(%arg0: i32) -> (i32, i32, i32) {
    %c0_i32 = arith.constant 0 : i32
    %c0_i32_0 = arith.constant 0 : i32
    %c0_i32_1 = arith.constant 0 : i32
    %c0_i32_2 = arith.constant 0 : i32
    return %c0_i32, %c0_i32_0, %c0_i32_1 : i32, i32, i32
  }
  func.func @transform_16(%arg0: i32) -> (i32, i32, i32) {
    %c0_i32 = arith.constant 0 : i32
    %c0_i32_0 = arith.constant 0 : i32
    %c0_i32_1 = arith.constant 0 : i32
    %c0_i32_2 = arith.constant 0 : i32
    return %c0_i32, %c0_i32_0, %c0_i32_1 : i32, i32, i32
  }
  func.func @transform_17(%arg0: i32) -> (i32, i32, i32) {
    %c0_i32 = arith.constant 0 : i32
    %c0_i32_0 = arith.constant 0 : i32
    %c0_i32_1 = arith.constant 0 : i32
    %c0_i32_2 = arith.constant 0 : i32
    return %c0_i32, %c0_i32_0, %c0_i32_1 : i32, i32, i32
  }
  func.func @transform_18(%arg0: i32) -> (i32, i32, i32) {
    %c0_i32 = arith.constant 0 : i32
    %c0_i32_0 = arith.constant 0 : i32
    %c0_i32_1 = arith.constant 0 : i32
    %c0_i32_2 = arith.constant 0 : i32
    return %c0_i32, %c0_i32_0, %c0_i32_1 : i32, i32, i32
  }
  func.func @transform_19(%arg0: i32) -> (i32, i32) {
    %c0_i32 = arith.constant 0 : i32
    %c0_i32_0 = arith.constant 0 : i32
    %c0_i32_1 = arith.constant 0 : i32
    return %c0_i32, %c0_i32_0 : i32, i32
  }
  func.func @transform_20(%arg0: i32) -> (i32, i32) {
    %c0_i32 = arith.constant 0 : i32
    %c0_i32_0 = arith.constant 0 : i32
    %c0_i32_1 = arith.constant 0 : i32
    return %c0_i32, %c0_i32_0 : i32, i32
  }
  func.func @transform_21(%arg0: i32) -> (i32, i32) {
    %c0_i32 = arith.constant 0 : i32
    %c0_i32_0 = arith.constant 0 : i32
    %c0_i32_1 = arith.constant 0 : i32
    return %c0_i32, %c0_i32_0 : i32, i32
  }
  func.func @transform_22(%arg0: i32) -> (i32, i32) {
    %c0_i32 = arith.constant 0 : i32
    %c0_i32_0 = arith.constant 0 : i32
    %c0_i32_1 = arith.constant 0 : i32
    return %c0_i32, %c0_i32_0 : i32, i32
  }
  func.func @transform_23(%arg0: i32) -> (i32, i32) {
    %c0_i32 = arith.constant 0 : i32
    %c0_i32_0 = arith.constant 0 : i32
    %c0_i32_1 = arith.constant 0 : i32
    return %c0_i32, %c0_i32_0 : i32, i32
  }
  func.func @transform_24(%arg0: i32) -> (i32, i32) {
    %c0_i32 = arith.constant 0 : i32
    %c0_i32_0 = arith.constant 0 : i32
    %c0_i32_1 = arith.constant 0 : i32
    return %c0_i32, %c0_i32_0 : i32, i32
  }
  func.func @transform_25(%arg0: i32) -> (i32, i32) {
    %c0_i32 = arith.constant 0 : i32
    %c0_i32_0 = arith.constant 0 : i32
    %c0_i32_1 = arith.constant 0 : i32
    return %c0_i32, %c0_i32_0 : i32, i32
  }
}

</mosaic_0001>

<llo_original>
// kernel: bert_classifier_forward.1
$region0: #{bert_classifier_forward.1}
  #allocation0 [shape = 'u32[]', space=smem, size = 0x4, offset = 0x4, fixed_abs, tag = 'smem constant byte address 0x4 - core index']
  #allocation1 [shape = 'u32[144,128]{1,0:T(1,128)}', space=vmem, size = 0x12000, scoped, tag = 'internal scratch']
  %s0 = inlined_call_operand.vmem [shape: s32[16,1], index: 0, kind: input, shape index: {}]
  %s1 = inlined_call_operand.vmem [shape: s32[2,8], index: 1, kind: input, shape index: {}]
  %s2 = inlined_call_operand.vmem [shape: f32[128,32], index: 2, kind: input, shape index: {}]
  %s3 = inlined_call_operand.vmem [shape: f32[16,32], index: 3, kind: input, shape index: {}]
  %s4 = inlined_call_operand.vmem [shape: f32[2,32], index: 4, kind: input, shape index: {}]
  %s5 = inlined_call_operand.vmem [shape: f32[1,32], index: 5, kind: input, shape index: {}]
  %s6 = inlined_call_operand.hbm [shape: f32[1,32], index: 6, kind: input, shape index: {}]
  %s7 = inlined_call_operand.vmem [shape: f32[2,32,96], index: 7, kind: input, shape index: {}]
  %s8 = inlined_call_operand.vmem [shape: f32[2,1,96], index: 8, kind: input, shape index: {}]
  %s9 = inlined_call_operand.vmem [shape: f32[2,32,32], index: 9, kind: input, shape index: {}]
  %s10 = inlined_call_operand.vmem [shape: f32[2,1,32], index: 10, kind: input, shape index: {}]
  %s11 = inlined_call_operand.hbm [shape: f32[2,1,32], index: 11, kind: input, shape index: {}]
  %s12 = inlined_call_operand.hbm [shape: f32[2,1,32], index: 12, kind: input, shape index: {}]
  %s13 = inlined_call_operand.hbm [shape: f32[2,32,64], index: 13, kind: input, shape index: {}]
  %s14 = inlined_call_operand.hbm [shape: f32[2,1,64], index: 14, kind: input, shape index: {}]
  %s15 = inlined_call_operand.vmem [shape: f32[2,64,32], index: 15, kind: input, shape index: {}]
  %s16 = inlined_call_operand.hbm [shape: f32[2,1,32], index: 16, kind: input, shape index: {}]
  %s17 = inlined_call_operand.hbm [shape: f32[2,1,32], index: 17, kind: input, shape index: {}]
  %s18 = inlined_call_operand.hbm [shape: f32[2,1,32], index: 18, kind: input, shape index: {}]
  %s19 = inlined_call_operand.hbm [shape: f32[32,32], index: 19, kind: input, shape index: {}]
  %s20 = inlined_call_operand.hbm [shape: f32[1,32], index: 20, kind: input, shape index: {}]
  %s21 = inlined_call_operand.hbm [shape: f32[32,256], index: 21, kind: input, shape index: {}]
  %s22 = inlined_call_operand.hbm [shape: f32[1,256], index: 22, kind: input, shape index: {}]
  %s23 = inlined_call_operand.vmem [shape: f32[256,128], index: 23, kind: input, shape index: {}]
  %s24 = inlined_call_operand.hbm [shape: f32[1,128], index: 24, kind: input, shape index: {}]
  %s25 = inlined_call_operand.hbm [shape: f32[2,128], index: 25, kind: output, shape index: {}]
  %s26 = sld [smem:[#allocation0]]
  $region162: #{bert_classifier_forward.1} parent=0
    _
  %s28 = ssub.s32 1, %s26
  %s29 = scalar_select 0, %s28, %s26
  $region1: #{bert_classifier_forward.1} parent=0
    #allocation2 [shape = 'u8[512]{0}', space=vmem, size = 0x400, scoped, tag = 'input window, operand 6, single buffered']
    #allocation3 [shape = 's32[1]{0}', space=sflag, size = 0x4, scoped, tag = 'scoped memory for bert_classifier_forward.1']
    #allocation4 [shape = 's32[1]{0}', space=sflag, size = 0x4, scoped, tag = 'scoped memory for bert_classifier_forward.1']
    #allocation5 [shape = 'u8[1024]{0}', space=vmem, size = 0x400, scoped, tag = 'input window, operand 11, single buffered']
    #allocation6 [shape = 's32[1]{0}', space=sflag, size = 0x4, scoped, tag = 'scoped memory for bert_classifier_forward.1']
    #allocation7 [shape = 'u8[1024]{0}', space=vmem, size = 0x400, scoped, tag = 'input window, operand 12, single buffered']
    #allocation8 [shape = 'u8[32768]{0}', space=vmem, size = 0x8000, scoped, tag = 'input window, operand 13, single buffered']
    #allocation9 [shape = 's32[1]{0}', space=sflag, size = 0x4, scoped, tag = 'scoped memory for bert_classifier_forward.1']
    #allocation10 [shape = 'u8[1024]{0}', space=vmem, size = 0x400, scoped, tag = 'input window, operand 14, single buffered']
    #allocation11 [shape = 'u8[1024]{0}', space=vmem, size = 0x400, scoped, tag = 'input window, operand 16, single buffered']
    #allocation12 [shape = 's32[1]{0}', space=sflag, size = 0x4, scoped, tag = 'scoped memory for bert_classifier_forward.1']
    #allocation13 [shape = 'u8[1024]{0}', space=vmem, size = 0x400, scoped, tag = 'input window, operand 17, single buffered']
    #allocation14 [shape = 'u8[1024]{0}', space=vmem, size = 0x400, scoped, tag = 'input window, operand 18, single buffered']
    #allocation15 [shape = 's32[1]{0}', space=sflag, size = 0x4, scoped, tag = 'scoped memory for bert_classifier_forward.1']
    #allocation16 [shape = 'u8[16384]{0}', space=vmem, size = 0x4000, scoped, tag = 'input window, operand 19, single buffered']
    #allocation17 [shape = 'u8[512]{0}', space=vmem, size = 0x400, scoped, tag = 'input window, operand 20, single buffered']
    #allocation18 [shape = 's32[1]{0}', space=sflag, size = 0x4, scoped, tag = 'scoped memory for bert_classifier_forward.1']
    #allocation19 [shape = 'u8[32768]{0}', space=vmem, size = 0x8000, scoped, tag = 'input window, operand 21, single buffered']
    #allocation20 [shape = 'u8[1024]{0}', space=vmem, size = 0x400, scoped, tag = 'input window, operand 22, single buffered']
    #allocation21 [shape = 's32[1]{0}', space=sflag, size = 0x4, scoped, tag = 'scoped memory for bert_classifier_forward.1']
    #allocation22 [shape = 'u8[512]{0}', space=vmem, size = 0x400, scoped, tag = 'input window, operand 24, single buffered']
    #allocation23 [shape = 'u8[1024]{0}', space=vmem, size = 0x400, scoped, tag = 'output window, operand 0, single buffered']
    %30 = vsyncpa [#allocation3], 0
    %31 = vsyncpa [#allocation6], 0
    %32 = vsyncpa [#allocation9], 0
    %33 = vsyncpa [#allocation12], 0
    %34 = vsyncpa [#allocation15], 0
    %35 = vsyncpa [#allocation18], 0
    %36 = vsyncpa [#allocation21], 0
    %37 = vsyncpa [#allocation4], 0
    // Predicated region
    $region2: #{bert_classifier_forward.1} parent=1 // pred_check
      _
    $region3: #{bert_classifier_forward.1} parent=1 // pred_check_branch
      %39 = sbr.rel (0) target = $region5
    $region4: #{bert_classifier_forward.1} parent=1 // pred_region
      _
    $region5: #{bert_classifier_forward.1} parent=1 // pred_fallthru
      _
    // Predicated region
    $region6: #{bert_classifier_forward.1} parent=1 // pred_check
      _
    $region7: #{bert_classifier_forward.1} parent=1 // pred_check_branch
      %41 = sbr.rel (0) target = $region9
    $region8: #{bert_classifier_forward.1} parent=1 // pred_region
      _
    $region9: #{bert_classifier_forward.1} parent=1 // pred_fallthru
      _
    // Predicated region
    $region10: #{bert_classifier_forward.1} parent=1 // pred_check
      _
    $region11: #{bert_classifier_forward.1} parent=1 // pred_check_branch
      %43 = sbr.rel (0) target = $region13
    $region12: #{bert_classifier_forward.1} parent=1 // pred_region
      _
    $region13: #{bert_classifier_forward.1} parent=1 // pred_fallthru
      _
    // Predicated region
    $region14: #{bert_classifier_forward.1} parent=1 // pred_check
      _
    $region15: #{bert_classifier_forward.1} parent=1 // pred_check_branch
      %45 = sbr.rel (0) target = $region17
    $region16: #{bert_classifier_forward.1} parent=1 // pred_region
      _
    $region17: #{bert_classifier_forward.1} parent=1 // pred_fallthru
      _
    // Predicated region
    $region18: #{bert_classifier_forward.1} parent=1 // pred_check
      _
    $region19: #{bert_classifier_forward.1} parent=1 // pred_check_branch
      %47 = sbr.rel (0) target = $region21
    $region20: #{bert_classifier_forward.1} parent=1 // pred_region
      _
    $region21: #{bert_classifier_forward.1} parent=1 // pred_fallthru
      _
    // Predicated region
    $region22: #{bert_classifier_forward.1} parent=1 // pred_check
      _
    $region23: #{bert_classifier_forward.1} parent=1 // pred_check_branch
      %49 = sbr.rel (0) target = $region25
    $region24: #{bert_classifier_forward.1} parent=1 // pred_region
      _
    $region25: #{bert_classifier_forward.1} parent=1 // pred_fallthru
      _
    // Predicated region
    $region26: #{bert_classifier_forward.1} parent=1 // pred_check
      _
    $region27: #{bert_classifier_forward.1} parent=1 // pred_check_branch
      %51 = sbr.rel (0) target = $region29
    $region28: #{bert_classifier_forward.1} parent=1 // pred_region
      %s53 = ssub.s32 16, 16
      %54 = vsyncadd [#allocation3], %s53
      %s56 = sshll.u32 [#allocation2], 4
      %s57 = int_to_ptr.vmem [resolvable:$true] %s56
      %59 = dma.hbm_to_vmem [thread:$0]  %s6, 16, %s57, [#allocation3]
    $region29: #{bert_classifier_forward.1} parent=1 // pred_fallthru
      _
    // Predicated region
    $region30: #{bert_classifier_forward.1} parent=1 // pred_check
      _
    $region31: #{bert_classifier_forward.1} parent=1 // pred_check_branch
      %61 = sbr.rel (0) target = $region33
    $region32: #{bert_classifier_forward.1} parent=1 // pred_region
      _
    $region33: #{bert_classifier_forward.1} parent=1 // pred_fallthru
      _
    // Predicated region
    $region34: #{bert_classifier_forward.1} parent=1 // pred_check
      _
    $region35: #{bert_classifier_forward.1} parent=1 // pred_check_branch
      %63 = sbr.rel (0) target = $region37
    $region36: #{bert_classifier_forward.1} parent=1 // pred_region
      _
    $region37: #{bert_classifier_forward.1} parent=1 // pred_fallthru
      _
    // Predicated region
    $region38: #{bert_classifier_forward.1} parent=1 // pred_check
      _
    $region39: #{bert_classifier_forward.1} parent=1 // pred_check_branch
      %65 = sbr.rel (0) target = $region41
    $region40: #{bert_classifier_forward.1} parent=1 // pred_region
      _
    $region41: #{bert_classifier_forward.1} parent=1 // pred_fallthru
      _
    // Predicated region
    $region42: #{bert_classifier_forward.1} parent=1 // pred_check
      _
    $region43: #{bert_classifier_forward.1} parent=1 // pred_check_branch
      %67 = sbr.rel (0) target = $region45
    $region44: #{bert_classifier_forward.1} parent=1 // pred_region
      _
    $region45: #{bert_classifier_forward.1} parent=1 // pred_fallthru
      _
    // Predicated region
    $region46: #{bert_classifier_forward.1} parent=1 // pred_check
      _
    $region47: #{bert_classifier_forward.1} parent=1 // pred_check_branch
      %69 = sbr.rel (0) target = $region49
    $region48: #{bert_classifier_forward.1} parent=1 // pred_region
      %s71 = ssub.s32 32, 32
      %72 = vsyncadd [#allocation6], %s71
      %s73 = sshll.u32 [#allocation5], 4
      %s74 = int_to_ptr.vmem [resolvable:$true] %s73
      %79 = dma.hbm_to_vmem [thread:$0]  %s11, 32, %s74, [#allocation6], 16, 16, 1
    $region49: #{bert_classifier_forward.1} parent=1 // pred_fallthru
      _
    // Predicated region
    $region50: #{bert_classifier_forward.1} parent=1 // pred_check
      _
    $region51: #{bert_classifier_forward.1} parent=1 // pred_check_branch
      %81 = sbr.rel (0) target = $region53
    $region52: #{bert_classifier_forward.1} parent=1 // pred_region
      %s83 = ssub.s32 32, 32
      %84 = vsyncadd [#allocation6], %s83
      %s85 = sshll.u32 [#allocation7], 4
      %s86 = int_to_ptr.vmem [resolvable:$true] %s85
      %91 = dma.hbm_to_vmem [thread:$0]  %s12, 32, %s86, [#allocation6], 16, 16, 1
    $region53: #{bert_classifier_forward.1} parent=1 // pred_fallthru
      _
    // Predicated region
    $region54: #{bert_classifier_forward.1} parent=1 // pred_check
      _
    $region55: #{bert_classifier_forward.1} parent=1 // pred_check_branch
      %93 = sbr.rel (0) target = $region57
    $region56: #{bert_classifier_forward.1} parent=1 // pred_region
      %s95 = ssub.s32 1024, 1024
      %96 = vsyncadd [#allocation9], %s95
      %s97 = sshll.u32 [#allocation8], 4
      %s98 = int_to_ptr.vmem [resolvable:$true] %s97
      %103 = dma.hbm_to_vmem [thread:$0]  %s13, 1024, %s98, [#allocation9], 128, 128, 8
    $region57: #{bert_classifier_forward.1} parent=1 // pred_fallthru
      _
    // Predicated region
    $region58: #{bert_classifier_forward.1} parent=1 // pred_check
      _
    $region59: #{bert_classifier_forward.1} parent=1 // pred_check_branch
      %105 = sbr.rel (0) target = $region61
    $region60: #{bert_classifier_forward.1} parent=1 // pred_region
      %s107 = ssub.s32 32, 32
      %108 = vsyncadd [#allocation9], %s107
      %s109 = sshll.u32 [#allocation10], 4
      %s110 = int_to_ptr.vmem [resolvable:$true] %s109
      %115 = dma.hbm_to_vmem [thread:$0]  %s14, 32, %s110, [#allocation9], 16, 16, 1
    $region61: #{bert_classifier_forward.1} parent=1 // pred_fallthru
      _
    // Predicated region
    $region62: #{bert_classifier_forward.1} parent=1 // pred_check
      _
    $region63: #{bert_classifier_forward.1} parent=1 // pred_check_branch
      %117 = sbr.rel (0) target = $region65
    $region64: #{bert_classifier_forward.1} parent=1 // pred_region
      _
    $region65: #{bert_classifier_forward.1} parent=1 // pred_fallthru
      _
    // Predicated region
    $region66: #{bert_classifier_forward.1} parent=1 // pred_check
      _
    $region67: #{bert_classifier_forward.1} parent=1 // pred_check_branch
      %119 = sbr.rel (0) target = $region69
    $region68: #{bert_classifier_forward.1} parent=1 // pred_region
      %s121 = ssub.s32 32, 32
      %122 = vsyncadd [#allocation12], %s121
      %s123 = sshll.u32 [#allocation11], 4
      %s124 = int_to_ptr.vmem [resolvable:$true] %s123
      %129 = dma.hbm_to_vmem [thread:$0]  %s16, 32, %s124, [#allocation12], 16, 16, 1
    $region69: #{bert_classifier_forward.1} parent=1 // pred_fallthru
      _
    // Predicated region
    $region70: #{bert_classifier_forward.1} parent=1 // pred_check
      _
    $region71: #{bert_classifier_forward.1} parent=1 // pred_check_branch
      %131 = sbr.rel (0) target = $region73
    $region72: #{bert_classifier_forward.1} parent=1 // pred_region
      %s133 = ssub.s32 32, 32
      %134 = vsyncadd [#allocation12], %s133
      %s135 = sshll.u32 [#allocation13], 4
      %s136 = int_to_ptr.vmem [resolvable:$true] %s135
      %141 = dma.hbm_to_vmem [thread:$0]  %s17, 32, %s136, [#allocation12], 16, 16, 1
    $region73: #{bert_classifier_forward.1} parent=1 // pred_fallthru
      _
    // Predicated region
    $region74: #{bert_classifier_forward.1} parent=1 // pred_check
      _
    $region75: #{bert_classifier_forward.1} parent=1 // pred_check_branch
      %143 = sbr.rel (0) target = $region77
    $region76: #{bert_classifier_forward.1} parent=1 // pred_region
      %s145 = ssub.s32 32, 32
      %146 = vsyncadd [#allocation15], %s145
      %s147 = sshll.u32 [#allocation14], 4
      %s148 = int_to_ptr.vmem [resolvable:$true] %s147
      %153 = dma.hbm_to_vmem [thread:$0]  %s18, 32, %s148, [#allocation15], 16, 16, 1
    $region77: #{bert_classifier_forward.1} parent=1 // pred_fallthru
      _
    // Predicated region
    $region78: #{bert_classifier_forward.1} parent=1 // pred_check
      _
    $region79: #{bert_classifier_forward.1} parent=1 // pred_check_branch
      %155 = sbr.rel (0) target = $region81
    $region80: #{bert_classifier_forward.1} parent=1 // pred_region
      %s157 = ssub.s32 512, 512
      %158 = vsyncadd [#allocation15], %s157
      %s159 = sshll.u32 [#allocation16], 4
      %s160 = int_to_ptr.vmem [resolvable:$true] %s159
      %165 = dma.hbm_to_vmem [thread:$0]  %s19, 512, %s160, [#allocation15], 128, 128, 8
    $region81: #{bert_classifier_forward.1} parent=1 // pred_fallthru
      _
    // Predicated region
    $region82: #{bert_classifier_forward.1} parent=1 // pred_check
      _
    $region83: #{bert_classifier_forward.1} parent=1 // pred_check_branch
      %167 = sbr.rel (0) target = $region85
    $region84: #{bert_classifier_forward.1} parent=1 // pred_region
      %s169 = ssub.s32 16, 16
      %170 = vsyncadd [#allocation18], %s169
      %s172 = sshll.u32 [#allocation17], 4
      %s173 = int_to_ptr.vmem [resolvable:$true] %s172
      %175 = dma.hbm_to_vmem [thread:$0]  %s20, 16, %s173, [#allocation18]
    $region85: #{bert_classifier_forward.1} parent=1 // pred_fallthru
      _
    // Predicated region
    $region86: #{bert_classifier_forward.1} parent=1 // pred_check
      _
    $region87: #{bert_classifier_forward.1} parent=1 // pred_check_branch
      %177 = sbr.rel (0) target = $region89
    $region88: #{bert_classifier_forward.1} parent=1 // pred_region
      %s179 = ssub.s32 1024, 1024
      %180 = vsyncadd [#allocation18], %s179
      %s181 = sshll.u32 [#allocation19], 4
      %s182 = int_to_ptr.vmem [resolvable:$true] %s181
      %187 = dma.hbm_to_vmem [thread:$0]  %s21, 1024, %s182, [#allocation18], 256, 256, 16
    $region89: #{bert_classifier_forward.1} parent=1 // pred_fallthru
      _
    // Predicated region
    $region90: #{bert_classifier_forward.1} parent=1 // pred_check
      _
    $region91: #{bert_classifier_forward.1} parent=1 // pred_check_branch
      %189 = sbr.rel (0) target = $region93
    $region92: #{bert_classifier_forward.1} parent=1 // pred_region
      %s191 = ssub.s32 32, 32
      %192 = vsyncadd [#allocation21], %s191
      %s194 = sshll.u32 [#allocation20], 4
      %s195 = int_to_ptr.vmem [resolvable:$true] %s194
      %197 = dma.hbm_to_vmem [thread:$0]  %s22, 32, %s195, [#allocation21]
    $region93: #{bert_classifier_forward.1} parent=1 // pred_fallthru
      _
    // Predicated region
    $region94: #{bert_classifier_forward.1} parent=1 // pred_check
      _
    $region95: #{bert_classifier_forward.1} parent=1 // pred_check_branch
      %199 = sbr.rel (0) target = $region97
    $region96: #{bert_classifier_forward.1} parent=1 // pred_region
      _
    $region97: #{bert_classifier_forward.1} parent=1 // pred_fallthru
      _
    // Predicated region
    $region98: #{bert_classifier_forward.1} parent=1 // pred_check
      _
    $region99: #{bert_classifier_forward.1} parent=1 // pred_check_branch
      %201 = sbr.rel (0) target = $region101
    $region100: #{bert_classifier_forward.1} parent=1 // pred_region
      %s203 = ssub.s32 16, 16
      %204 = vsyncadd [#allocation21], %s203
      %s206 = sshll.u32 [#allocation22], 4
      %s207 = int_to_ptr.vmem [resolvable:$true] %s206
      %209 = dma.hbm_to_vmem [thread:$0]  %s24, 16, %s207, [#allocation21]
    $region101: #{bert_classifier_forward.1} parent=1 // pred_fallthru
      _
    // Predicated region
    $region102: #{bert_classifier_forward.1} parent=1 // pred_check
      _
    $region103: #{bert_classifier_forward.1} parent=1 // pred_check_branch
      %211 = sbr.rel (0) target = $region105
    $region104: #{bert_classifier_forward.1} parent=1 // pred_region
      %212 = dma.done [#allocation3], 16
    $region105: #{bert_classifier_forward.1} parent=1 // pred_fallthru
      _
    // Predicated region
    $region106: #{bert_classifier_forward.1} parent=1 // pred_check
      _
    $region107: #{bert_classifier_forward.1} parent=1 // pred_check_branch
      %214 = sbr.rel (0) target = $region109
    $region108: #{bert_classifier_forward.1} parent=1 // pred_region
      %215 = dma.done [#allocation6], 32
    $region109: #{bert_classifier_forward.1} parent=1 // pred_fallthru
      _
    // Predicated region
    $region110: #{bert_classifier_forward.1} parent=1 // pred_check
      _
    $region111: #{bert_classifier_forward.1} parent=1 // pred_check_branch
      %217 = sbr.rel (0) target = $region113
    $region112: #{bert_classifier_forward.1} parent=1 // pred_region
      %218 = dma.done [#allocation6], 32
    $region113: #{bert_classifier_forward.1} parent=1 // pred_fallthru
      _
    // Predicated region
    $region114: #{bert_classifier_forward.1} parent=1 // pred_check
      _
    $region115: #{bert_classifier_forward.1} parent=1 // pred_check_branch
      %220 = sbr.rel (0) target = $region117
    $region116: #{bert_classifier_forward.1} parent=1 // pred_region
      %221 = dma.done [#allocation9], 1024
    $region117: #{bert_classifier_forward.1} parent=1 // pred_fallthru
      _
    // Predicated region
    $region118: #{bert_classifier_forward.1} parent=1 // pred_check
      _
    $region119: #{bert_classifier_forward.1} parent=1 // pred_check_branch
      %223 = sbr.rel (0) target = $region121
    $region120: #{bert_classifier_forward.1} parent=1 // pred_region
      %224 = dma.done [#allocation9], 32
    $region121: #{bert_classifier_forward.1} parent=1 // pred_fallthru
      _
    // Predicated region
    $region122: #{bert_classifier_forward.1} parent=1 // pred_check
      _
    $region123: #{bert_classifier_forward.1} parent=1 // pred_check_branch
      %226 = sbr.rel (0) target = $region125
    $region124: #{bert_classifier_forward.1} parent=1 // pred_region
      %227 = dma.done [#allocation12], 32
    $region125: #{bert_classifier_forward.1} parent=1 // pred_fallthru
      _
    // Predicated region
    $region126: #{bert_classifier_forward.1} parent=1 // pred_check
      _
    $region127: #{bert_classifier_forward.1} parent=1 // pred_check_branch
      %229 = sbr.rel (0) target = $region129
    $region128: #{bert_classifier_forward.1} parent=1 // pred_region
      %230 = dma.done [#allocation12], 32
    $region129: #{bert_classifier_forward.1} parent=1 // pred_fallthru
      _
    // Predicated region
    $region130: #{bert_classifier_forward.1} parent=1 // pred_check
      _
    $region131: #{bert_classifier_forward.1} parent=1 // pred_check_branch
      %232 = sbr.rel (0) target = $region133
    $region132: #{bert_classifier_forward.1} parent=1 // pred_region
      %233 = dma.done [#allocation15], 32
    $region133: #{bert_classifier_forward.1} parent=1 // pred_fallthru
      _
    // Predicated region
    $region134: #{bert_classifier_forward.1} parent=1 // pred_check
      _
    $region135: #{bert_classifier_forward.1} parent=1 // pred_check_branch
      %235 = sbr.rel (0) target = $region137
    $region136: #{bert_classifier_forward.1} parent=1 // pred_region
      %236 = dma.done [#allocation15], 512
    $region137: #{bert_classifier_forward.1} parent=1 // pred_fallthru
      _
    // Predicated region
    $region138: #{bert_classifier_forward.1} parent=1 // pred_check
      _
    $region139: #{bert_classifier_forward.1} parent=1 // pred_check_branch
      %238 = sbr.rel (0) target = $region141
    $region140: #{bert_classifier_forward.1} parent=1 // pred_region
      %239 = dma.done [#allocation18], 16
    $region141: #{bert_classifier_forward.1} parent=1 // pred_fallthru
      _
    // Predicated region
    $region142: #{bert_classifier_forward.1} parent=1 // pred_check
      _
    $region143: #{bert_classifier_forward.1} parent=1 // pred_check_branch
      %241 = sbr.rel (0) target = $region145
    $region144: #{bert_classifier_forward.1} parent=1 // pred_region
      %242 = dma.done [#allocation18], 1024
    $region145: #{bert_classifier_forward.1} parent=1 // pred_fallthru
      _
    // Predicated region
    $region146: #{bert_classifier_forward.1} parent=1 // pred_check
      _
    $region147: #{bert_classifier_forward.1} parent=1 // pred_check_branch
      %244 = sbr.rel (0) target = $region149
    $region148: #{bert_classifier_forward.1} parent=1 // pred_region
      %245 = dma.done [#allocation21], 32
    $region149: #{bert_classifier_forward.1} parent=1 // pred_fallthru
      _
    // Predicated region
    $region150: #{bert_classifier_forward.1} parent=1 // pred_check
      _
    $region151: #{bert_classifier_forward.1} parent=1 // pred_check_branch
      %247 = sbr.rel (0) target = $region153
    $region152: #{bert_classifier_forward.1} parent=1 // pred_region
      %248 = dma.done [#allocation21], 16
    $region153: #{bert_classifier_forward.1} parent=1 // pred_fallthru
      _
    %v249 = vld [vmem:[%s0] sm:$0xff]
    %v250 = vld [vmem:[%s0 + $0x8] sm:$0xff]
    %v251 = vlaneseq
    %v252 = vand.u32 %v251, 127
    %253 = vset.pattern.permute.xlu0 0
    %254 = vperm.xlu0 %253, %v249
    %v255 = vpop.permute.xlu0 %254
    %256 = vset.pattern.permute.xlu0 0
    %257 = vperm.xlu0 %256, %v250
    %v258 = vpop.permute.xlu0 %257
    %vm259 = vcmp.eq.s32.totalorder %v252, %v255
    %vm260 = vcmp.eq.s32.totalorder %v252, %v258
    %v261 = vsel %vm259, 1, 0
    %v262 = vsel %vm260, 1, 0
    %v263 = vcvt.s32.f32 %v261
    %v264 = vcvt.s32.f32 %v262
    %v265 = vld [vmem:[%s2] sm:$0xff]
    %v266 = vld [vmem:[%s2 + $0x8] sm:$0xff]
    %v267 = vld [vmem:[%s2 + $0x10] sm:$0xff]
    %v268 = vld [vmem:[%s2 + $0x18] sm:$0xff]
    %v269 = vld [vmem:[%s2 + $0x20] sm:$0xff]
    %v270 = vld [vmem:[%s2 + $0x28] sm:$0xff]
    %v271 = vld [vmem:[%s2 + $0x30] sm:$0xff]
    %v272 = vld [vmem:[%s2 + $0x38] sm:$0xff]
    %v273 = vld [vmem:[%s2 + $0x40] sm:$0xff]
    %v274 = vld [vmem:[%s2 + $0x48] sm:$0xff]
    %v275 = vld [vmem:[%s2 + $0x50] sm:$0xff]
    %v276 = vld [vmem:[%s2 + $0x58] sm:$0xff]
    %v277 = vld [vmem:[%s2 + $0x60] sm:$0xff]
    %v278 = vld [vmem:[%s2 + $0x68] sm:$0xff]
    %v279 = vld [vmem:[%s2 + $0x70] sm:$0xff]
    %v280 = vld [vmem:[%s2 + $0x78] sm:$0xff]
    %281 = vmatprep.subr.mxu0 0.0
    %282 = vmatpush1.msra.mxu0 %v265
    %283 = vmatprep.subr.mxu0 0.0
    %284 = vmatpush1.msra.mxu0 %v266
    %285 = vmatprep.subr.mxu0 0.0
    %286 = vmatpush1.msra.mxu0 %v267
    %287 = vmatprep.subr.mxu0 0.0
    %288 = vmatpush1.msra.mxu0 %v268
    %289 = vmatprep.subr.mxu0 0.0
    %290 = vmatpush1.msra.mxu0 %v269
    %291 = vmatprep.subr.mxu0 0.0
    %292 = vmatpush1.msra.mxu0 %v270
    %293 = vmatprep.subr.mxu0 0.0
    %294 = vmatpush1.msra.mxu0 %v271
    %295 = vmatprep.subr.mxu0 0.0
    %296 = vmatpush1.msra.mxu0 %v272
    %297 = vmatprep.subr.mxu0 0.0
    %298 = vmatpush1.msra.mxu0 %v273
    %299 = vmatprep.subr.mxu0 0.0
    %300 = vmatpush1.msra.mxu0 %v274
    %301 = vmatprep.subr.mxu0 0.0
    %302 = vmatpush1.msra.mxu0 %v275
    %303 = vmatprep.subr.mxu0 0.0
    %304 = vmatpush1.msra.mxu0 %v276
    %305 = vmatprep.subr.mxu0 0.0
    %306 = vmatpush1.msra.mxu0 %v277
    %307 = vmatprep.subr.mxu0 0.0
    %308 = vmatpush1.msra.mxu0 %v278
    %309 = vmatprep.subr.mxu0 0.0
    %310 = vmatpush1.msra.mxu0 %v279
    %311 = vmatprep.subr.mxu0 0.0
    %312 = vmatpush1.msra.mxu0 %v280
    %313 = vmatprep.subr.mxu0 0.0
    %314 = vmatpush1.msra.mxu0 0.0
    %315 = vmatprep.subr.mxu0 0.0
    %316 = vmatpush1.msra.mxu0 0.0
    %317 = vmatprep.subr.mxu0 0.0
    %318 = vmatpush1.msra.mxu0 0.0
    %319 = vmatprep.subr.mxu0 0.0
    %320 = vmatpush1.msra.mxu0 0.0
    %321 = vmatprep.subr.mxu0 0.0
    %322 = vmatpush1.msra.mxu0 0.0
    %323 = vmatprep.subr.mxu0 0.0
    %324 = vmatpush1.msra.mxu0 0.0
    %325 = vmatprep.subr.mxu0 0.0
    %326 = vmatpush1.msra.mxu0 0.0
    %327 = vmatprep.subr.mxu0 0.0
    %328 = vmatpush1.msra.mxu0 0.0
    %329 = vmatprep.subr.mxu0 0.0
    %330 = vmatpush1.msra.mxu0 0.0
    %331 = vmatprep.subr.mxu0 0.0
    %332 = vmatpush1.msra.mxu0 0.0
    %333 = vmatprep.subr.mxu0 0.0
    %334 = vmatpush1.msra.mxu0 0.0
    %335 = vmatprep.subr.mxu0 0.0
    %336 = vmatpush1.msra.mxu0 0.0
    %337 = vmatprep.subr.mxu0 0.0
    %338 = vmatpush1.msra.mxu0 0.0
    %339 = vmatprep.subr.mxu0 0.0
    %340 = vmatpush1.msra.mxu0 0.0
    %341 = vmatprep.subr.mxu0 0.0
    %342 = vmatpush1.msra.mxu0 0.0
    %343 = vmatprep.subr.mxu0 0.0
    %344 = vmatpush1.msra.mxu0 0.0
    %345 = vmatprep.mubr.f32.mxu0 0.0
    %346 = vmatmul.mubr.f32.gmra.mrb[0].mxu0 %v263
    %v347 = vpop.f32.mrb[0].mxu0
    %v348 = vadd.f32 0.0, %v347
    %v349 = vpop.f32.mrb[0].mxu0
    %350 = vmatprep.mubr.f32.mxu0 0.0
    %351 = vmatmul.mubr.f32.gmra.mrb[0].mxu0 %v264
    %v352 = vpop.f32.mrb[0].mxu0
    %v353 = vadd.f32 0.0, %v352
    %v354 = vpop.f32.mrb[0].mxu0
    %355 = vdwg.mxu0
    %v356 = vld [vmem:[%s3] sm:$0xff]
    %v357 = vld [vmem:[%s4] sm:$0x1]
    %v358 = vadd.f32 %v348, %v356
    %v359 = vadd.f32 %v353, %v356
    %v360 = vlaneseq
    %v361 = vshrl.u32 %v360, 7
    %v362 = vsub.s32 0, %v361
    %v363 = vrot.slane %v357, %v362
    %v364 = vadd.f32 %v358, %v363
    %v365 = vadd.f32 %v359, %v363
    %v366 = vld [vmem:[%s5] sm:$0x1]
    %v367 = vld [vmem:[#allocation2] sm:$0x1]
    %vm368 = vcmask 261120
    %v369 = vsel %vm368, %v364, 0.0
    %370 = vadd.xlane.f32.xlu0 %v369
    %v371 = vpop.xlane.xlu0 %370
    %v372 = vsel %vm368, %v365, 0.0
    %373 = vadd.xlane.f32.xlu0 %v372
    %v374 = vpop.xlane.xlu0 %373
    %v375 = vrcp.pop 32.0
    %v376 = vmul.f32 %v371, %v375
    %v377 = vmul.f32 %v374, %v375
    %v378 = vsub.f32 %v364, %v376
    %v379 = vsub.f32 %v365, %v377
    %v380 = vmul.f32 %v378, %v378
    %v381 = vmul.f32 %v379, %v379
    %v382 = vsel %vm368, %v380, 0.0
    %383 = vadd.xlane.f32.xlu0 %v382
    %v384 = vpop.xlane.xlu0 %383
    %v385 = vsel %vm368, %v381, 0.0
    %386 = vadd.xlane.f32.xlu0 %v385
    %v387 = vpop.xlane.xlu0 %386
    %v388 = vmul.f32 %v384, %v375
    %v389 = vmul.f32 %v387, %v375
    %v390 = vadd.f32 %v388, 1e-12
    %v391 = vadd.f32 %v389, 1e-12
    %v392 = vrsqrt.pop %v390
    %v393 = vrsqrt.pop %v391
    %v394 = vmul.f32 %v378, %v392
    %v395 = vmul.f32 %v379, %v393
    %v397 = vlaneseq
    %v398 = vshrl.u32 %v397, 7
    %v399 = vsub.s32 0, %v398
    %v400 = vrot.slane %v366, %v399
    %v402 = vmul.f32 %v394, %v400
    %v403 = vmul.f32 %v395, %v400
    %v405 = vlaneseq
    %v406 = vshrl.u32 %v405, 7
    %v407 = vsub.s32 0, %v406
    %v408 = vrot.slane %v367, %v407
    %v410 = vadd.f32 %v402, %v408
    %v411 = vadd.f32 %v403, %v408
    %v412 = vld [vmem:[%s1] sm:$0x3]
    %v413 = vcvt.s32.f32 %v412
    %v414 = vsub.f32 1.0, %v413
    %v415 = vmul.f32 %v414, -1e+09
    %v418 = vunpack.c.l.s4 1966171168
    %v419 = vunpack.c.0.s8 %v418
    %v420 = vlaneseq
    %v421 = vshrl.u32 %v420, 7
    %v422 = vsub.s32 %v419, %v421
    %v423 = vrot.slane %v415, %v422
    %v424 = vcombine.high %v423, %v423
    %v426 = vunpack.c.l.s4 1966171168
    %v427 = vunpack.c.0.s8 %v426
    %v428 = vlaneseq
    %v429 = vshrl.u32 %v428, 7
    %v430 = vsub.s32 %v427, %v429
    %v431 = vrot.slane %v423, %v430
    %v433 = vunpack.c.l.s4 1966171168
    %v434 = vunpack.c.0.s8 %v433
    %v435 = vlaneseq
    %v436 = vshrl.u32 %v435, 7
    %v437 = vsub.s32 %v434, %v436
    %v438 = vrot.slane %v424, %v437
    %v439 = vld [vmem:[%s7] sm:$0xff]
    %v440 = vld [vmem:[%s7 + $0x8] sm:$0xff]
    %v441 = vld [vmem:[%s7 + $0x10] sm:$0xff]
    %v442 = vld [vmem:[%s7 + $0x18] sm:$0xff]
    %v443 = vld [vmem:[%s8] sm:$0x1]
    %v445 = vlaneseq
    %v446 = vshrl.u32 %v445, 7
    %v447 = vsub.s32 0, %v446
    %v448 = vrot.slane %v443, %v447
    %v451 = vsel %vm368, %v410, 0
    %v454 = vsel %vm368, %v411, 0
    %456 = vmatprep.subr.mxu0 0.0
    %457 = vmatpush1.msra.mxu0 %v439
    %458 = vmatprep.subr.mxu0 0.0
    %459 = vmatpush1.msra.mxu0 %v440
    %460 = vmatprep.subr.mxu0 0.0
    %461 = vmatpush1.msra.mxu0 %v441
    %462 = vmatprep.subr.mxu0 0.0
    %463 = vmatpush1.msra.mxu0 %v442
    %464 = vmatprep.subr.mxu0 0.0
    %465 = vmatpush1.msra.mxu0 0.0
    %466 = vmatprep.subr.mxu0 0.0
    %467 = vmatpush1.msra.mxu0 0.0
    %468 = vmatprep.subr.mxu0 0.0
    %469 = vmatpush1.msra.mxu0 0.0
    %470 = vmatprep.subr.mxu0 0.0
    %471 = vmatpush1.msra.mxu0 0.0
    %472 = vmatprep.subr.mxu0 0.0
    %473 = vmatpush1.msra.mxu0 0.0
    %474 = vmatprep.subr.mxu0 0.0
    %475 = vmatpush1.msra.mxu0 0.0
    %476 = vmatprep.subr.mxu0 0.0
    %477 = vmatpush1.msra.mxu0 0.0
    %478 = vmatprep.subr.mxu0 0.0
    %479 = vmatpush1.msra.mxu0 0.0
    %480 = vmatprep.subr.mxu0 0.0
    %481 = vmatpush1.msra.mxu0 0.0
    %482 = vmatprep.subr.mxu0 0.0
    %483 = vmatpush1.msra.mxu0 0.0
    %484 = vmatprep.subr.mxu0 0.0
    %485 = vmatpush1.msra.mxu0 0.0
    %486 = vmatprep.subr.mxu0 0.0
    %487 = vmatpush1.msra.mxu0 0.0
    %488 = vmatprep.subr.mxu0 0.0
    %489 = vmatpush1.msra.mxu0 0.0
    %490 = vmatprep.subr.mxu0 0.0
    %491 = vmatpush1.msra.mxu0 0.0
    %492 = vmatprep.subr.mxu0 0.0
    %493 = vmatpush1.msra.mxu0 0.0
    %494 = vmatprep.subr.mxu0 0.0
    %495 = vmatpush1.msra.mxu0 0.0
    %496 = vmatprep.subr.mxu0 0.0
    %497 = vmatpush1.msra.mxu0 0.0
    %498 = vmatprep.subr.mxu0 0.0
    %499 = vmatpush1.msra.mxu0 0.0
    %500 = vmatprep.subr.mxu0 0.0
    %501 = vmatpush1.msra.mxu0 0.0
    %502 = vmatprep.subr.mxu0 0.0
    %503 = vmatpush1.msra.mxu0 0.0
    %504 = vmatprep.subr.mxu0 0.0
    %505 = vmatpush1.msra.mxu0 0.0
    %506 = vmatprep.subr.mxu0 0.0
    %507 = vmatpush1.msra.mxu0 0.0
    %508 = vmatprep.subr.mxu0 0.0
    %509 = vmatpush1.msra.mxu0 0.0
    %510 = vmatprep.subr.mxu0 0.0
    %511 = vmatpush1.msra.mxu0 0.0
    %512 = vmatprep.subr.mxu0 0.0
    %513 = vmatpush1.msra.mxu0 0.0
    %514 = vmatprep.subr.mxu0 0.0
    %515 = vmatpush1.msra.mxu0 0.0
    %516 = vmatprep.subr.mxu0 0.0
    %517 = vmatpush1.msra.mxu0 0.0
    %518 = vmatprep.subr.mxu0 0.0
    %519 = vmatpush1.msra.mxu0 0.0
    %520 = vmatprep.mubr.f32.mxu0 0.0
    %521 = vmatmul.mubr.f32.gmra.mrb[0].mxu0 %v451
    %v522 = vpop.f32.mrb[0].mxu0
    %v523 = vadd.f32 %v448, %v522
    %v524 = vpop.f32.mrb[0].mxu0
    %525 = vmatprep.mubr.f32.mxu0 0.0
    %526 = vmatmul.mubr.f32.gmra.mrb[0].mxu0 %v454
    %v527 = vpop.f32.mrb[0].mxu0
    %v528 = vadd.f32 %v448, %v527
    %v529 = vpop.f32.mrb[0].mxu0
    %530 = vdwg.mxu0
    %v531 = vld [vmem:[%s9] sm:$0xff]
    %v532 = vld [vmem:[%s9 + $0x8] sm:$0xff]
    %v533 = vld [vmem:[%s9 + $0x10] sm:$0xff]
    %v534 = vld [vmem:[%s9 + $0x18] sm:$0xff]
    %v535 = vlaneseq
    %v536 = vshrl.u32 %v535, 7
    %v537 = vsub.s32 0, %v536
    %v538 = vrot.slane %v431, %v537
    %v539 = vlaneseq
    %v540 = vshrl.u32 %v539, 7
    %v541 = vsub.s32 0, %v540
    %v542 = vrot.slane %v438, %v541
    %546 = vrot.lane.b32.xlu0 %v523, 96
    %v547 = vpop.permute.xlu0 %546
    %vm548 = vcmask 130048
    %v549 = vsel %vm548, %v523, 0
    %v551 = vsel %vm548, %v547, 0
    %553 = vmatprep.subr.mxu0 0.0
    %554 = vmatpush1.xpose.msra.mxu0 %v551
    %555 = vmatprep.subr.mxu0 0.0
    %556 = vmatpush1.xpose.msra.mxu0 0.0
    %557 = vmatprep.subr.mxu0 0.0
    %558 = vmatpush1.xpose.msra.mxu0 0.0
    %559 = vmatprep.subr.mxu0 0.0
    %560 = vmatpush1.xpose.msra.mxu0 0.0
    %561 = vmatprep.subr.mxu0 0.0
    %562 = vmatpush1.xpose.msra.mxu0 0.0
    %563 = vmatprep.subr.mxu0 0.0
    %564 = vmatpush1.xpose.msra.mxu0 0.0
    %565 = vmatprep.subr.mxu0 0.0
    %566 = vmatpush1.xpose.msra.mxu0 0.0
    %567 = vmatprep.subr.mxu0 0.0
    %568 = vmatpush1.xpose.msra.mxu0 0.0
    %569 = vmatprep.subr.mxu0 0.0
    %570 = vmatpush1.xpose.msra.mxu0 0.0
    %571 = vmatprep.subr.mxu0 0.0
    %572 = vmatpush1.xpose.msra.mxu0 0.0
    %573 = vmatprep.subr.mxu0 0.0
    %574 = vmatpush1.xpose.msra.mxu0 0.0
    %575 = vmatprep.subr.mxu0 0.0
    %576 = vmatpush1.xpose.msra.mxu0 0.0
    %577 = vmatprep.subr.mxu0 0.0
    %578 = vmatpush1.xpose.msra.mxu0 0.0
    %579 = vmatprep.subr.mxu0 0.0
    %580 = vmatpush1.xpose.msra.mxu0 0.0
    %581 = vmatprep.subr.mxu0 0.0
    %582 = vmatpush1.xpose.msra.mxu0 0.0
    %583 = vmatprep.subr.mxu0 0.0
    %584 = vmatpush1.xpose.msra.mxu0 0.0
    %585 = vmatprep.subr.mxu0 0.0
    %586 = vmatpush1.xpose.msra.mxu0 0.0
    %587 = vmatprep.subr.mxu0 0.0
    %588 = vmatpush1.xpose.msra.mxu0 0.0
    %589 = vmatprep.subr.mxu0 0.0
    %590 = vmatpush1.xpose.msra.mxu0 0.0
    %591 = vmatprep.subr.mxu0 0.0
    %592 = vmatpush1.xpose.msra.mxu0 0.0
    %593 = vmatprep.subr.mxu0 0.0
    %594 = vmatpush1.xpose.msra.mxu0 0.0
    %595 = vmatprep.subr.mxu0 0.0
    %596 = vmatpush1.xpose.msra.mxu0 0.0
    %597 = vmatprep.subr.mxu0 0.0
    %598 = vmatpush1.xpose.msra.mxu0 0.0
    %599 = vmatprep.subr.mxu0 0.0
    %600 = vmatpush1.xpose.msra.mxu0 0.0
    %601 = vmatprep.subr.mxu0 0.0
    %602 = vmatpush1.xpose.msra.mxu0 0.0
    %603 = vmatprep.subr.mxu0 0.0
    %604 = vmatpush1.xpose.msra.mxu0 0.0
    %605 = vmatprep.subr.mxu0 0.0
    %606 = vmatpush1.xpose.msra.mxu0 0.0
    %607 = vmatprep.subr.mxu0 0.0
    %608 = vmatpush1.xpose.msra.mxu0 0.0
    %609 = vmatprep.subr.mxu0 0.0
    %610 = vmatpush1.xpose.msra.mxu0 0.0
    %611 = vmatprep.subr.mxu0 0.0
    %612 = vmatpush1.xpose.msra.mxu0 0.0
    %613 = vmatprep.subr.mxu0 0.0
    %614 = vmatpush1.xpose.msra.mxu0 0.0
    %615 = vmatprep.subr.mxu0 0.0
    %616 = vmatpush1.xpose.msra.mxu0 0.0
    %617 = vmatprep.mubr.f32.mxu0 0.0
    %618 = vmatmul.mubr.f32.gmra.mrb[0].mxu0 %v549
    %v619 = vpop.f32.mrb[0].mxu0
    %v620 = vadd.f32 %v538, %v619
    %v621 = vpop.f32.mrb[0].mxu0
    %622 = vdwg.mxu0
    %624 = vrot.lane.b32.xlu0 %v528, 96
    %v625 = vpop.permute.xlu0 %624
    %v626 = vsel %vm548, %v528, 0
    %v628 = vsel %vm548, %v625, 0
    %630 = vmatprep.subr.mxu0 0.0
    %631 = vmatpush1.xpose.msra.mxu0 %v628
    %632 = vmatprep.subr.mxu0 0.0
    %633 = vmatpush1.xpose.msra.mxu0 0.0
    %634 = vmatprep.subr.mxu0 0.0
    %635 = vmatpush1.xpose.msra.mxu0 0.0
    %636 = vmatprep.subr.mxu0 0.0
    %637 = vmatpush1.xpose.msra.mxu0 0.0
    %638 = vmatprep.subr.mxu0 0.0
    %639 = vmatpush1.xpose.msra.mxu0 0.0
    %640 = vmatprep.subr.mxu0 0.0
    %641 = vmatpush1.xpose.msra.mxu0 0.0
    %642 = vmatprep.subr.mxu0 0.0
    %643 = vmatpush1.xpose.msra.mxu0 0.0
    %644 = vmatprep.subr.mxu0 0.0
    %645 = vmatpush1.xpose.msra.mxu0 0.0
    %646 = vmatprep.subr.mxu0 0.0
    %647 = vmatpush1.xpose.msra.mxu0 0.0
    %648 = vmatprep.subr.mxu0 0.0
    %649 = vmatpush1.xpose.msra.mxu0 0.0
    %650 = vmatprep.subr.mxu0 0.0
    %651 = vmatpush1.xpose.msra.mxu0 0.0
    %652 = vmatprep.subr.mxu0 0.0
    %653 = vmatpush1.xpose.msra.mxu0 0.0
    %654 = vmatprep.subr.mxu0 0.0
    %655 = vmatpush1.xpose.msra.mxu0 0.0
    %656 = vmatprep.subr.mxu0 0.0
    %657 = vmatpush1.xpose.msra.mxu0 0.0
    %658 = vmatprep.subr.mxu0 0.0
    %659 = vmatpush1.xpose.msra.mxu0 0.0
    %660 = vmatprep.subr.mxu0 0.0
    %661 = vmatpush1.xpose.msra.mxu0 0.0
    %662 = vmatprep.subr.mxu0 0.0
    %663 = vmatpush1.xpose.msra.mxu0 0.0
    %664 = vmatprep.subr.mxu0 0.0
    %665 = vmatpush1.xpose.msra.mxu0 0.0
    %666 = vmatprep.subr.mxu0 0.0
    %667 = vmatpush1.xpose.msra.mxu0 0.0
    %668 = vmatprep.subr.mxu0 0.0
    %669 = vmatpush1.xpose.msra.mxu0 0.0
    %670 = vmatprep.subr.mxu0 0.0
    %671 = vmatpush1.xpose.msra.mxu0 0.0
    %672 = vmatprep.subr.mxu0 0.0
    %673 = vmatpush1.xpose.msra.mxu0 0.0
    %674 = vmatprep.subr.mxu0 0.0
    %675 = vmatpush1.xpose.msra.mxu0 0.0
    %676 = vmatprep.subr.mxu0 0.0
    %677 = vmatpush1.xpose.msra.mxu0 0.0
    %678 = vmatprep.subr.mxu0 0.0
    %679 = vmatpush1.xpose.msra.mxu0 0.0
    %680 = vmatprep.subr.mxu0 0.0
    %681 = vmatpush1.xpose.msra.mxu0 0.0
    %682 = vmatprep.subr.mxu0 0.0
    %683 = vmatpush1.xpose.msra.mxu0 0.0
    %684 = vmatprep.subr.mxu0 0.0
    %685 = vmatpush1.xpose.msra.mxu0 0.0
    %686 = vmatprep.subr.mxu0 0.0
    %687 = vmatpush1.xpose.msra.mxu0 0.0
    %688 = vmatprep.subr.mxu0 0.0
    %689 = vmatpush1.xpose.msra.mxu0 0.0
    %690 = vmatprep.subr.mxu0 0.0
    %691 = vmatpush1.xpose.msra.mxu0 0.0
    %692 = vmatprep.subr.mxu0 0.0
    %693 = vmatpush1.xpose.msra.mxu0 0.0
    %694 = vmatprep.mubr.f32.mxu0 0.0
    %695 = vmatmul.mubr.f32.gmra.mrb[0].mxu0 %v626
    %v696 = vpop.f32.mrb[0].mxu0
    %v697 = vadd.f32 %v542, %v696
    %v698 = vpop.f32.mrb[0].mxu0
    %699 = vdwg.mxu0
    %vm700 = vcmask 64512
    %v701 = vsel %vm700, %v620, -inf
    %702 = vmax.xlane.f32.xlu0 %v701
    %v703 = vpop.xlane.xlu0 %702
    %v704 = vsel %vm700, %v697, -inf
    %705 = vmax.xlane.f32.xlu0 %v704
    %v706 = vpop.xlane.xlu0 %705
    %v707 = vsub.f32 %v620, %v703
    %v708 = vsub.f32 %v697, %v706
    %v709 = vmul.f32 %v707, 1.442695
    %v710 = vpow.pop %v709
    %v711 = vmul.f32 %v708, 1.442695
    %v712 = vpow.pop %v711
    %v713 = vsel %vm700, %v710, 0.0
    %714 = vadd.xlane.f32.xlu0 %v713
    %v715 = vpop.xlane.xlu0 %714
    %v716 = vsel %vm700, %v712, 0.0
    %717 = vadd.xlane.f32.xlu0 %v716
    %v718 = vpop.xlane.xlu0 %717
    %v719 = vrcp.pop %v715
    %v720 = vmul.f32 %v710, %v719
    %v721 = vrcp.pop %v718
    %v722 = vmul.f32 %v712, %v721
    %723 = vrot.lane.b32.xlu0 %v523, 64
    %v724 = vpop.permute.xlu0 %723
    %v727 = vsel %vm700, %v720, 0
    %729 = vmatprep.subr.mxu0 0.0
    %730 = vmatpush1.msra.mxu0 %v724
    %731 = vmatprep.subr.mxu0 0.0
    %732 = vmatpush1.msra.mxu0 0.0
    %733 = vmatprep.subr.mxu0 0.0
    %734 = vmatpush1.msra.mxu0 0.0
    %735 = vmatprep.subr.mxu0 0.0
    %736 = vmatpush1.msra.mxu0 0.0
    %737 = vmatprep.subr.mxu0 0.0
    %738 = vmatpush1.msra.mxu0 0.0
    %739 = vmatprep.subr.mxu0 0.0
    %740 = vmatpush1.msra.mxu0 0.0
    %741 = vmatprep.subr.mxu0 0.0
    %742 = vmatpush1.msra.mxu0 0.0
    %743 = vmatprep.subr.mxu0 0.0
    %744 = vmatpush1.msra.mxu0 0.0
    %745 = vmatprep.subr.mxu0 0.0
    %746 = vmatpush1.msra.mxu0 0.0
    %747 = vmatprep.subr.mxu0 0.0
    %748 = vmatpush1.msra.mxu0 0.0
    %749 = vmatprep.subr.mxu0 0.0
    %750 = vmatpush1.msra.mxu0 0.0
    %751 = vmatprep.subr.mxu0 0.0
    %752 = vmatpush1.msra.mxu0 0.0
    %753 = vmatprep.subr.mxu0 0.0
    %754 = vmatpush1.msra.mxu0 0.0
    %755 = vmatprep.subr.mxu0 0.0
    %756 = vmatpush1.msra.mxu0 0.0
    %757 = vmatprep.subr.mxu0 0.0
    %758 = vmatpush1.msra.mxu0 0.0
    %759 = vmatprep.subr.mxu0 0.0
    %760 = vmatpush1.msra.mxu0 0.0
    %761 = vmatprep.subr.mxu0 0.0
    %762 = vmatpush1.msra.mxu0 0.0
    %763 = vmatprep.subr.mxu0 0.0
    %764 = vmatpush1.msra.mxu0 0.0
    %765 = vmatprep.subr.mxu0 0.0
    %766 = vmatpush1.msra.mxu0 0.0
    %767 = vmatprep.subr.mxu0 0.0
    %768 = vmatpush1.msra.mxu0 0.0
    %769 = vmatprep.subr.mxu0 0.0
    %770 = vmatpush1.msra.mxu0 0.0
    %771 = vmatprep.subr.mxu0 0.0
    %772 = vmatpush1.msra.mxu0 0.0
    %773 = vmatprep.subr.mxu0 0.0
    %774 = vmatpush1.msra.mxu0 0.0
    %775 = vmatprep.subr.mxu0 0.0
    %776 = vmatpush1.msra.mxu0 0.0
    %777 = vmatprep.subr.mxu0 0.0
    %778 = vmatpush1.msra.mxu0 0.0
    %779 = vmatprep.subr.mxu0 0.0
    %780 = vmatpush1.msra.mxu0 0.0
    %781 = vmatprep.subr.mxu0 0.0
    %782 = vmatpush1.msra.mxu0 0.0
    %783 = vmatprep.subr.mxu0 0.0
    %784 = vmatpush1.msra.mxu0 0.0
    %785 = vmatprep.subr.mxu0 0.0
    %786 = vmatpush1.msra.mxu0 0.0
    %787 = vmatprep.subr.mxu0 0.0
    %788 = vmatpush1.msra.mxu0 0.0
    %789 = vmatprep.subr.mxu0 0.0
    %790 = vmatpush1.msra.mxu0 0.0
    %791 = vmatprep.subr.mxu0 0.0
    %792 = vmatpush1.msra.mxu0 0.0
    %793 = vmatprep.mubr.f32.mxu0 0.0
    %794 = vmatmul.mubr.f32.gmra.mrb[0].mxu0 %v727
    %v795 = vpop.f32.mrb[0].mxu0
    %v796 = vadd.f32 0.0, %v795
    %v797 = vpop.f32.mrb[0].mxu0
    %798 = vdwg.mxu0
    %799 = vrot.lane.b32.xlu0 %v528, 64
    %v800 = vpop.permute.xlu0 %799
    %v803 = vsel %vm700, %v722, 0
    %805 = vmatprep.subr.mxu0 0.0
    %806 = vmatpush1.msra.mxu0 %v800
    %807 = vmatprep.subr.mxu0 0.0
    %808 = vmatpush1.msra.mxu0 0.0
    %809 = vmatprep.subr.mxu0 0.0
    %810 = vmatpush1.msra.mxu0 0.0
    %811 = vmatprep.subr.mxu0 0.0
    %812 = vmatpush1.msra.mxu0 0.0
    %813 = vmatprep.subr.mxu0 0.0
    %814 = vmatpush1.msra.mxu0 0.0
    %815 = vmatprep.subr.mxu0 0.0
    %816 = vmatpush1.msra.mxu0 0.0
    %817 = vmatprep.subr.mxu0 0.0
    %818 = vmatpush1.msra.mxu0 0.0
    %819 = vmatprep.subr.mxu0 0.0
    %820 = vmatpush1.msra.mxu0 0.0
    %821 = vmatprep.subr.mxu0 0.0
    %822 = vmatpush1.msra.mxu0 0.0
    %823 = vmatprep.subr.mxu0 0.0
    %824 = vmatpush1.msra.mxu0 0.0
    %825 = vmatprep.subr.mxu0 0.0
    %826 = vmatpush1.msra.mxu0 0.0
    %827 = vmatprep.subr.mxu0 0.0
    %828 = vmatpush1.msra.mxu0 0.0
    %829 = vmatprep.subr.mxu0 0.0
    %830 = vmatpush1.msra.mxu0 0.0
    %831 = vmatprep.subr.mxu0 0.0
    %832 = vmatpush1.msra.mxu0 0.0
    %833 = vmatprep.subr.mxu0 0.0
    %834 = vmatpush1.msra.mxu0 0.0
    %835 = vmatprep.subr.mxu0 0.0
    %836 = vmatpush1.msra.mxu0 0.0
    %837 = vmatprep.subr.mxu0 0.0
    %838 = vmatpush1.msra.mxu0 0.0
    %839 = vmatprep.subr.mxu0 0.0
    %840 = vmatpush1.msra.mxu0 0.0
    %841 = vmatprep.subr.mxu0 0.0
    %842 = vmatpush1.msra.mxu0 0.0
    %843 = vmatprep.subr.mxu0 0.0
    %844 = vmatpush1.msra.mxu0 0.0
    %845 = vmatprep.subr.mxu0 0.0
    %846 = vmatpush1.msra.mxu0 0.0
    %847 = vmatprep.subr.mxu0 0.0
    %848 = vmatpush1.msra.mxu0 0.0
    %849 = vmatprep.subr.mxu0 0.0
    %850 = vmatpush1.msra.mxu0 0.0
    %851 = vmatprep.subr.mxu0 0.0
    %852 = vmatpush1.msra.mxu0 0.0
    %853 = vmatprep.subr.mxu0 0.0
    %854 = vmatpush1.msra.mxu0 0.0
    %855 = vmatprep.subr.mxu0 0.0
    %856 = vmatpush1.msra.mxu0 0.0
    %857 = vmatprep.subr.mxu0 0.0
    %858 = vmatpush1.msra.mxu0 0.0
    %859 = vmatprep.subr.mxu0 0.0
    %860 = vmatpush1.msra.mxu0 0.0
    %861 = vmatprep.subr.mxu0 0.0
    %862 = vmatpush1.msra.mxu0 0.0
    %863 = vmatprep.subr.mxu0 0.0
    %864 = vmatpush1.msra.mxu0 0.0
    %865 = vmatprep.subr.mxu0 0.0
    %866 = vmatpush1.msra.mxu0 0.0
    %867 = vmatprep.subr.mxu0 0.0
    %868 = vmatpush1.msra.mxu0 0.0
    %869 = vmatprep.mubr.f32.mxu0 0.0
    %870 = vmatmul.mubr.f32.gmra.mrb[0].mxu0 %v803
    %v871 = vpop.f32.mrb[0].mxu0
    %v872 = vadd.f32 0.0, %v871
    %v873 = vpop.f32.mrb[0].mxu0
    %874 = vdwg.mxu0
    %875 = vrot.lane.b32.xlu0 %v523, 112
    %v876 = vpop.permute.xlu0 %875
    %877 = vrot.lane.b32.xlu0 %v523, 80
    %v878 = vpop.permute.xlu0 %877
    %v879 = vsel %vm548, %v876, 0
    %v881 = vsel %vm548, %v878, 0
    %883 = vmatprep.subr.mxu0 0.0
    %884 = vmatpush1.xpose.msra.mxu0 %v881
    %885 = vmatprep.subr.mxu0 0.0
    %886 = vmatpush1.xpose.msra.mxu0 0.0
    %887 = vmatprep.subr.mxu0 0.0
    %888 = vmatpush1.xpose.msra.mxu0 0.0
    %889 = vmatprep.subr.mxu0 0.0
    %890 = vmatpush1.xpose.msra.mxu0 0.0
    %891 = vmatprep.subr.mxu0 0.0
    %892 = vmatpush1.xpose.msra.mxu0 0.0
    %893 = vmatprep.subr.mxu0 0.0
    %894 = vmatpush1.xpose.msra.mxu0 0.0
    %895 = vmatprep.subr.mxu0 0.0
    %896 = vmatpush1.xpose.msra.mxu0 0.0
    %897 = vmatprep.subr.mxu0 0.0
    %898 = vmatpush1.xpose.msra.mxu0 0.0
    %899 = vmatprep.subr.mxu0 0.0
    %900 = vmatpush1.xpose.msra.mxu0 0.0
    %901 = vmatprep.subr.mxu0 0.0
    %902 = vmatpush1.xpose.msra.mxu0 0.0
    %903 = vmatprep.subr.mxu0 0.0
    %904 = vmatpush1.xpose.msra.mxu0 0.0
    %905 = vmatprep.subr.mxu0 0.0
    %906 = vmatpush1.xpose.msra.mxu0 0.0
    %907 = vmatprep.subr.mxu0 0.0
    %908 = vmatpush1.xpose.msra.mxu0 0.0
    %909 = vmatprep.subr.mxu0 0.0
    %910 = vmatpush1.xpose.msra.mxu0 0.0
    %911 = vmatprep.subr.mxu0 0.0
    %912 = vmatpush1.xpose.msra.mxu0 0.0
    %913 = vmatprep.subr.mxu0 0.0
    %914 = vmatpush1.xpose.msra.mxu0 0.0
    %915 = vmatprep.subr.mxu0 0.0
    %916 = vmatpush1.xpose.msra.mxu0 0.0
    %917 = vmatprep.subr.mxu0 0.0
    %918 = vmatpush1.xpose.msra.mxu0 0.0
    %919 = vmatprep.subr.mxu0 0.0
    %920 = vmatpush1.xpose.msra.mxu0 0.0
    %921 = vmatprep.subr.mxu0 0.0
    %922 = vmatpush1.xpose.msra.mxu0 0.0
    %923 = vmatprep.subr.mxu0 0.0
    %924 = vmatpush1.xpose.msra.mxu0 0.0
    %925 = vmatprep.subr.mxu0 0.0
    %926 = vmatpush1.xpose.msra.mxu0 0.0
    %927 = vmatprep.subr.mxu0 0.0
    %928 = vmatpush1.xpose.msra.mxu0 0.0
    %929 = vmatprep.subr.mxu0 0.0
    %930 = vmatpush1.xpose.msra.mxu0 0.0
    %931 = vmatprep.subr.mxu0 0.0
    %932 = vmatpush1.xpose.msra.mxu0 0.0
    %933 = vmatprep.subr.mxu0 0.0
    %934 = vmatpush1.xpose.msra.mxu0 0.0
    %935 = vmatprep.subr.mxu0 0.0
    %936 = vmatpush1.xpose.msra.mxu0 0.0
    %937 = vmatprep.subr.mxu0 0.0
    %938 = vmatpush1.xpose.msra.mxu0 0.0
    %939 = vmatprep.subr.mxu0 0.0
    %940 = vmatpush1.xpose.msra.mxu0 0.0
    %941 = vmatprep.subr.mxu0 0.0
    %942 = vmatpush1.xpose.msra.mxu0 0.0
    %943 = vmatprep.subr.mxu0 0.0
    %944 = vmatpush1.xpose.msra.mxu0 0.0
    %945 = vmatprep.subr.mxu0 0.0
    %946 = vmatpush1.xpose.msra.mxu0 0.0
    %947 = vmatprep.mubr.f32.mxu0 0.0
    %948 = vmatmul.mubr.f32.gmra.mrb[0].mxu0 %v879
    %v949 = vpop.f32.mrb[0].mxu0
    %v950 = vadd.f32 %v538, %v949
    %v951 = vpop.f32.mrb[0].mxu0
    %952 = vdwg.mxu0
    %953 = vrot.lane.b32.xlu0 %v528, 112
    %v954 = vpop.permute.xlu0 %953
    %955 = vrot.lane.b32.xlu0 %v528, 80
    %v956 = vpop.permute.xlu0 %955
    %v957 = vsel %vm548, %v954, 0
    %v959 = vsel %vm548, %v956, 0
    %961 = vmatprep.subr.mxu0 0.0
    %962 = vmatpush1.xpose.msra.mxu0 %v959
    %963 = vmatprep.subr.mxu0 0.0
    %964 = vmatpush1.xpose.msra.mxu0 0.0
    %965 = vmatprep.subr.mxu0 0.0
    %966 = vmatpush1.xpose.msra.mxu0 0.0
    %967 = vmatprep.subr.mxu0 0.0
    %968 = vmatpush1.xpose.msra.mxu0 0.0
    %969 = vmatprep.subr.mxu0 0.0
    %970 = vmatpush1.xpose.msra.mxu0 0.0
    %971 = vmatprep.subr.mxu0 0.0
    %972 = vmatpush1.xpose.msra.mxu0 0.0
    %973 = vmatprep.subr.mxu0 0.0
    %974 = vmatpush1.xpose.msra.mxu0 0.0
    %975 = vmatprep.subr.mxu0 0.0
    %976 = vmatpush1.xpose.msra.mxu0 0.0
    %977 = vmatprep.subr.mxu0 0.0
    %978 = vmatpush1.xpose.msra.mxu0 0.0
    %979 = vmatprep.subr.mxu0 0.0
    %980 = vmatpush1.xpose.msra.mxu0 0.0
    %981 = vmatprep.subr.mxu0 0.0
    %982 = vmatpush1.xpose.msra.mxu0 0.0
    %983 = vmatprep.subr.mxu0 0.0
    %984 = vmatpush1.xpose.msra.mxu0 0.0
    %985 = vmatprep.subr.mxu0 0.0
    %986 = vmatpush1.xpose.msra.mxu0 0.0
    %987 = vmatprep.subr.mxu0 0.0
    %988 = vmatpush1.xpose.msra.mxu0 0.0
    %989 = vmatprep.subr.mxu0 0.0
    %990 = vmatpush1.xpose.msra.mxu0 0.0
    %991 = vmatprep.subr.mxu0 0.0
    %992 = vmatpush1.xpose.msra.mxu0 0.0
    %993 = vmatprep.subr.mxu0 0.0
    %994 = vmatpush1.xpose.msra.mxu0 0.0
    %995 = vmatprep.subr.mxu0 0.0
    %996 = vmatpush1.xpose.msra.mxu0 0.0
    %997 = vmatprep.subr.mxu0 0.0
    %998 = vmatpush1.xpose.msra.mxu0 0.0
    %999 = vmatprep.subr.mxu0 0.0
    %1000 = vmatpush1.xpose.msra.mxu0 0.0
    %1001 = vmatprep.subr.mxu0 0.0
    %1002 = vmatpush1.xpose.msra.mxu0 0.0
    %1003 = vmatprep.subr.mxu0 0.0
    %1004 = vmatpush1.xpose.msra.mxu0 0.0
    %1005 = vmatprep.subr.mxu0 0.0
    %1006 = vmatpush1.xpose.msra.mxu0 0.0
    %1007 = vmatprep.subr.mxu0 0.0
    %1008 = vmatpush1.xpose.msra.mxu0 0.0
    %1009 = vmatprep.subr.mxu0 0.0
    %1010 = vmatpush1.xpose.msra.mxu0 0.0
    %1011 = vmatprep.subr.mxu0 0.0
    %1012 = vmatpush1.xpose.msra.mxu0 0.0
    %1013 = vmatprep.subr.mxu0 0.0
    %1014 = vmatpush1.xpose.msra.mxu0 0.0
    %1015 = vmatprep.subr.mxu0 0.0
    %1016 = vmatpush1.xpose.msra.mxu0 0.0
    %1017 = vmatprep.subr.mxu0 0.0
    %1018 = vmatpush1.xpose.msra.mxu0 0.0
    %1019 = vmatprep.subr.mxu0 0.0
    %1020 = vmatpush1.xpose.msra.mxu0 0.0
    %1021 = vmatprep.subr.mxu0 0.0
    %1022 = vmatpush1.xpose.msra.mxu0 0.0
    %1023 = vmatprep.subr.mxu0 0.0
    %1024 = vmatpush1.xpose.msra.mxu0 0.0
    %1025 = vmatprep.mubr.f32.mxu0 0.0
    %1026 = vmatmul.mubr.f32.gmra.mrb[0].mxu0 %v957
    %v1027 = vpop.f32.mrb[0].mxu0
    %v1028 = vadd.f32 %v542, %v1027
    %v1029 = vpop.f32.mrb[0].mxu0
    %1030 = vdwg.mxu0
    %v1031 = vsel %vm700, %v950, -inf
    %1032 = vmax.xlane.f32.xlu0 %v1031
    %v1033 = vpop.xlane.xlu0 %1032
    %v1034 = vsel %vm700, %v1028, -inf
    %1035 = vmax.xlane.f32.xlu0 %v1034
    %v1036 = vpop.xlane.xlu0 %1035
    %v1037 = vsub.f32 %v950, %v1033
    %v1038 = vsub.f32 %v1028, %v1036
    %v1039 = vmul.f32 %v1037, 1.442695
    %v1040 = vpow.pop %v1039
    %v1041 = vmul.f32 %v1038, 1.442695
    %v1042 = vpow.pop %v1041
    %v1043 = vsel %vm700, %v1040, 0.0
    %1044 = vadd.xlane.f32.xlu0 %v1043
    %v1045 = vpop.xlane.xlu0 %1044
    %v1046 = vsel %vm700, %v1042, 0.0
    %1047 = vadd.xlane.f32.xlu0 %v1046
    %v1048 = vpop.xlane.xlu0 %1047
    %v1049 = vrcp.pop %v1045
    %v1050 = vmul.f32 %v1040, %v1049
    %v1051 = vrcp.pop %v1048
    %v1052 = vmul.f32 %v1042, %v1051
    %1053 = vrot.lane.b32.xlu0 %v523, 48
    %v1054 = vpop.permute.xlu0 %1053
    %v1057 = vsel %vm700, %v1050, 0
    %1059 = vmatprep.subr.mxu0 0.0
    %1060 = vmatpush1.msra.mxu0 %v1054
    %1061 = vmatprep.subr.mxu0 0.0
    %1062 = vmatpush1.msra.mxu0 0.0
    %1063 = vmatprep.subr.mxu0 0.0
    %1064 = vmatpush1.msra.mxu0 0.0
    %1065 = vmatprep.subr.mxu0 0.0
    %1066 = vmatpush1.msra.mxu0 0.0
    %1067 = vmatprep.subr.mxu0 0.0
    %1068 = vmatpush1.msra.mxu0 0.0
    %1069 = vmatprep.subr.mxu0 0.0
    %1070 = vmatpush1.msra.mxu0 0.0
    %1071 = vmatprep.subr.mxu0 0.0
    %1072 = vmatpush1.msra.mxu0 0.0
    %1073 = vmatprep.subr.mxu0 0.0
    %1074 = vmatpush1.msra.mxu0 0.0
    %1075 = vmatprep.subr.mxu0 0.0
    %1076 = vmatpush1.msra.mxu0 0.0
    %1077 = vmatprep.subr.mxu0 0.0
    %1078 = vmatpush1.msra.mxu0 0.0
    %1079 = vmatprep.subr.mxu0 0.0
    %1080 = vmatpush1.msra.mxu0 0.0
    %1081 = vmatprep.subr.mxu0 0.0
    %1082 = vmatpush1.msra.mxu0 0.0
    %1083 = vmatprep.subr.mxu0 0.0
    %1084 = vmatpush1.msra.mxu0 0.0
    %1085 = vmatprep.subr.mxu0 0.0
    %1086 = vmatpush1.msra.mxu0 0.0
    %1087 = vmatprep.subr.mxu0 0.0
    %1088 = vmatpush1.msra.mxu0 0.0
    %1089 = vmatprep.subr.mxu0 0.0
    %1090 = vmatpush1.msra.mxu0 0.0
    %1091 = vmatprep.subr.mxu0 0.0
    %1092 = vmatpush1.msra.mxu0 0.0
    %1093 = vmatprep.subr.mxu0 0.0
    %1094 = vmatpush1.msra.mxu0 0.0
    %1095 = vmatprep.subr.mxu0 0.0
    %1096 = vmatpush1.msra.mxu0 0.0
    %1097 = vmatprep.subr.mxu0 0.0
    %1098 = vmatpush1.msra.mxu0 0.0
    %1099 = vmatprep.subr.mxu0 0.0
    %1100 = vmatpush1.msra.mxu0 0.0
    %1101 = vmatprep.subr.mxu0 0.0
    %1102 = vmatpush1.msra.mxu0 0.0
    %1103 = vmatprep.subr.mxu0 0.0
    %1104 = vmatpush1.msra.mxu0 0.0
    %1105 = vmatprep.subr.mxu0 0.0
    %1106 = vmatpush1.msra.mxu0 0.0
    %1107 = vmatprep.subr.mxu0 0.0
    %1108 = vmatpush1.msra.mxu0 0.0
    %1109 = vmatprep.subr.mxu0 0.0
    %1110 = vmatpush1.msra.mxu0 0.0
    %1111 = vmatprep.subr.mxu0 0.0
    %1112 = vmatpush1.msra.mxu0 0.0
    %1113 = vmatprep.subr.mxu0 0.0
    %1114 = vmatpush1.msra.mxu0 0.0
    %1115 = vmatprep.subr.mxu0 0.0
    %1116 = vmatpush1.msra.mxu0 0.0
    %1117 = vmatprep.subr.mxu0 0.0
    %1118 = vmatpush1.msra.mxu0 0.0
    %1119 = vmatprep.subr.mxu0 0.0
    %1120 = vmatpush1.msra.mxu0 0.0
    %1121 = vmatprep.subr.mxu0 0.0
    %1122 = vmatpush1.msra.mxu0 0.0
    %1123 = vmatprep.mubr.f32.mxu0 0.0
    %1124 = vmatmul.mubr.f32.gmra.mrb[0].mxu0 %v1057
    %v1125 = vpop.f32.mrb[0].mxu0
    %v1126 = vadd.f32 0.0, %v1125
    %v1127 = vpop.f32.mrb[0].mxu0
    %1128 = vdwg.mxu0
    %1129 = vrot.lane.b32.xlu0 %v528, 48
    %v1130 = vpop.permute.xlu0 %1129
    %v1133 = vsel %vm700, %v1052, 0
    %1135 = vmatprep.subr.mxu0 0.0
    %1136 = vmatpush1.msra.mxu0 %v1130
    %1137 = vmatprep.subr.mxu0 0.0
    %1138 = vmatpush1.msra.mxu0 0.0
    %1139 = vmatprep.subr.mxu0 0.0
    %1140 = vmatpush1.msra.mxu0 0.0
    %1141 = vmatprep.subr.mxu0 0.0
    %1142 = vmatpush1.msra.mxu0 0.0
    %1143 = vmatprep.subr.mxu0 0.0
    %1144 = vmatpush1.msra.mxu0 0.0
    %1145 = vmatprep.subr.mxu0 0.0
    %1146 = vmatpush1.msra.mxu0 0.0
    %1147 = vmatprep.subr.mxu0 0.0
    %1148 = vmatpush1.msra.mxu0 0.0
    %1149 = vmatprep.subr.mxu0 0.0
    %1150 = vmatpush1.msra.mxu0 0.0
    %1151 = vmatprep.subr.mxu0 0.0
    %1152 = vmatpush1.msra.mxu0 0.0
    %1153 = vmatprep.subr.mxu0 0.0
    %1154 = vmatpush1.msra.mxu0 0.0
    %1155 = vmatprep.subr.mxu0 0.0
    %1156 = vmatpush1.msra.mxu0 0.0
    %1157 = vmatprep.subr.mxu0 0.0
    %1158 = vmatpush1.msra.mxu0 0.0
    %1159 = vmatprep.subr.mxu0 0.0
    %1160 = vmatpush1.msra.mxu0 0.0
    %1161 = vmatprep.subr.mxu0 0.0
    %1162 = vmatpush1.msra.mxu0 0.0
    %1163 = vmatprep.subr.mxu0 0.0
    %1164 = vmatpush1.msra.mxu0 0.0
    %1165 = vmatprep.subr.mxu0 0.0
    %1166 = vmatpush1.msra.mxu0 0.0
    %1167 = vmatprep.subr.mxu0 0.0
    %1168 = vmatpush1.msra.mxu0 0.0
    %1169 = vmatprep.subr.mxu0 0.0
    %1170 = vmatpush1.msra.mxu0 0.0
    %1171 = vmatprep.subr.mxu0 0.0
    %1172 = vmatpush1.msra.mxu0 0.0
    %1173 = vmatprep.subr.mxu0 0.0
    %1174 = vmatpush1.msra.mxu0 0.0
    %1175 = vmatprep.subr.mxu0 0.0
    %1176 = vmatpush1.msra.mxu0 0.0
    %1177 = vmatprep.subr.mxu0 0.0
    %1178 = vmatpush1.msra.mxu0 0.0
    %1179 = vmatprep.subr.mxu0 0.0
    %1180 = vmatpush1.msra.mxu0 0.0
    %1181 = vmatprep.subr.mxu0 0.0
    %1182 = vmatpush1.msra.mxu0 0.0
    %1183 = vmatprep.subr.mxu0 0.0
    %1184 = vmatpush1.msra.mxu0 0.0
    %1185 = vmatprep.subr.mxu0 0.0
    %1186 = vmatpush1.msra.mxu0 0.0
    %1187 = vmatprep.subr.mxu0 0.0
    %1188 = vmatpush1.msra.mxu0 0.0
    %1189 = vmatprep.subr.mxu0 0.0
    %1190 = vmatpush1.msra.mxu0 0.0
    %1191 = vmatprep.subr.mxu0 0.0
    %1192 = vmatpush1.msra.mxu0 0.0
    %1193 = vmatprep.subr.mxu0 0.0
    %1194 = vmatpush1.msra.mxu0 0.0
    %1195 = vmatprep.subr.mxu0 0.0
    %1196 = vmatpush1.msra.mxu0 0.0
    %1197 = vmatprep.subr.mxu0 0.0
    %1198 = vmatpush1.msra.mxu0 0.0
    %1199 = vmatprep.mubr.f32.mxu0 0.0
    %1200 = vmatmul.mubr.f32.gmra.mrb[0].mxu0 %v1133
    %v1201 = vpop.f32.mrb[0].mxu0
    %v1202 = vadd.f32 0.0, %v1201
    %v1203 = vpop.f32.mrb[0].mxu0
    %1204 = vdwg.mxu0
    %v1206 = vsel %vm548, %v1126, 0
    %v1209 = vsel %vm548, %v1202, 0
    %1211 = vmatprep.subr.mxu0 0.0
    %1212 = vmatpush1.msra.mxu0 %v533
    %1213 = vmatprep.subr.mxu0 0.0
    %1214 = vmatpush1.msra.mxu0 %v534
    %1215 = vmatprep.subr.mxu0 0.0
    %1216 = vmatpush1.msra.mxu0 0.0
    %1217 = vmatprep.subr.mxu0 0.0
    %1218 = vmatpush1.msra.mxu0 0.0
    %1219 = vmatprep.subr.mxu0 0.0
    %1220 = vmatpush1.msra.mxu0 0.0
    %1221 = vmatprep.subr.mxu0 0.0
    %1222 = vmatpush1.msra.mxu0 0.0
    %1223 = vmatprep.subr.mxu0 0.0
    %1224 = vmatpush1.msra.mxu0 0.0
    %1225 = vmatprep.subr.mxu0 0.0
    %1226 = vmatpush1.msra.mxu0 0.0
    %1227 = vmatprep.subr.mxu0 0.0
    %1228 = vmatpush1.msra.mxu0 0.0
    %1229 = vmatprep.subr.mxu0 0.0
    %1230 = vmatpush1.msra.mxu0 0.0
    %1231 = vmatprep.subr.mxu0 0.0
    %1232 = vmatpush1.msra.mxu0 0.0
    %1233 = vmatprep.subr.mxu0 0.0
    %1234 = vmatpush1.msra.mxu0 0.0
    %1235 = vmatprep.subr.mxu0 0.0
    %1236 = vmatpush1.msra.mxu0 0.0
    %1237 = vmatprep.subr.mxu0 0.0
    %1238 = vmatpush1.msra.mxu0 0.0
    %1239 = vmatprep.subr.mxu0 0.0
    %1240 = vmatpush1.msra.mxu0 0.0
    %1241 = vmatprep.subr.mxu0 0.0
    %1242 = vmatpush1.msra.mxu0 0.0
    %1243 = vmatprep.subr.mxu0 0.0
    %1244 = vmatpush1.msra.mxu0 0.0
    %1245 = vmatprep.subr.mxu0 0.0
    %1246 = vmatpush1.msra.mxu0 0.0
    %1247 = vmatprep.subr.mxu0 0.0
    %1248 = vmatpush1.msra.mxu0 0.0
    %1249 = vmatprep.subr.mxu0 0.0
    %1250 = vmatpush1.msra.mxu0 0.0
    %1251 = vmatprep.subr.mxu0 0.0
    %1252 = vmatpush1.msra.mxu0 0.0
    %1253 = vmatprep.subr.mxu0 0.0
    %1254 = vmatpush1.msra.mxu0 0.0
    %1255 = vmatprep.subr.mxu0 0.0
    %1256 = vmatpush1.msra.mxu0 0.0
    %1257 = vmatprep.subr.mxu0 0.0
    %1258 = vmatpush1.msra.mxu0 0.0
    %1259 = vmatprep.subr.mxu0 0.0
    %1260 = vmatpush1.msra.mxu0 0.0
    %1261 = vmatprep.subr.mxu0 0.0
    %1262 = vmatpush1.msra.mxu0 0.0
    %1263 = vmatprep.subr.mxu0 0.0
    %1264 = vmatpush1.msra.mxu0 0.0
    %1265 = vmatprep.subr.mxu0 0.0
    %1266 = vmatpush1.msra.mxu0 0.0
    %1267 = vmatprep.subr.mxu0 0.0
    %1268 = vmatpush1.msra.mxu0 0.0
    %1269 = vmatprep.subr.mxu0 0.0
    %1270 = vmatpush1.msra.mxu0 0.0
    %1271 = vmatprep.subr.mxu0 0.0
    %1272 = vmatpush1.msra.mxu0 0.0
    %1273 = vmatprep.subr.mxu0 0.0
    %1274 = vmatpush1.msra.mxu0 0.0
    %1275 = vmatprep.mubr.f32.mxu0 0.0
    %1276 = vmatmul.mubr.f32.gmra.mrb[0].mxu0 %v1206
    %v1277 = vpop.f32.mrb[0].mxu0
    %v1278 = vadd.f32 0.0, %v1277
    %v1279 = vpop.f32.mrb[0].mxu0
    %1280 = vmatprep.mubr.f32.mxu0 0.0
    %1281 = vmatmul.mubr.f32.gmra.mrb[0].mxu0 %v1209
    %v1282 = vpop.f32.mrb[0].mxu0
    %v1283 = vadd.f32 0.0, %v1282
    %v1284 = vpop.f32.mrb[0].mxu0
    %1285 = vdwg.mxu0
    %v1287 = vsel %vm548, %v796, 0
    %v1290 = vsel %vm548, %v872, 0
    %1292 = vmatprep.subr.mxu0 0.0
    %1293 = vmatpush1.msra.mxu0 %v531
    %1294 = vmatprep.subr.mxu0 0.0
    %1295 = vmatpush1.msra.mxu0 %v532
    %1296 = vmatprep.subr.mxu0 0.0
    %1297 = vmatpush1.msra.mxu0 0.0
    %1298 = vmatprep.subr.mxu0 0.0
    %1299 = vmatpush1.msra.mxu0 0.0
    %1300 = vmatprep.subr.mxu0 0.0
    %1301 = vmatpush1.msra.mxu0 0.0
    %1302 = vmatprep.subr.mxu0 0.0
    %1303 = vmatpush1.msra.mxu0 0.0
    %1304 = vmatprep.subr.mxu0 0.0
    %1305 = vmatpush1.msra.mxu0 0.0
    %1306 = vmatprep.subr.mxu0 0.0
    %1307 = vmatpush1.msra.mxu0 0.0
    %1308 = vmatprep.subr.mxu0 0.0
    %1309 = vmatpush1.msra.mxu0 0.0
    %1310 = vmatprep.subr.mxu0 0.0
    %1311 = vmatpush1.msra.mxu0 0.0
    %1312 = vmatprep.subr.mxu0 0.0
    %1313 = vmatpush1.msra.mxu0 0.0
    %1314 = vmatprep.subr.mxu0 0.0
    %1315 = vmatpush1.msra.mxu0 0.0
    %1316 = vmatprep.subr.mxu0 0.0
    %1317 = vmatpush1.msra.mxu0 0.0
    %1318 = vmatprep.subr.mxu0 0.0
    %1319 = vmatpush1.msra.mxu0 0.0
    %1320 = vmatprep.subr.mxu0 0.0
    %1321 = vmatpush1.msra.mxu0 0.0
    %1322 = vmatprep.subr.mxu0 0.0
    %1323 = vmatpush1.msra.mxu0 0.0
    %1324 = vmatprep.subr.mxu0 0.0
    %1325 = vmatpush1.msra.mxu0 0.0
    %1326 = vmatprep.subr.mxu0 0.0
    %1327 = vmatpush1.msra.mxu0 0.0
    %1328 = vmatprep.subr.mxu0 0.0
    %1329 = vmatpush1.msra.mxu0 0.0
    %1330 = vmatprep.subr.mxu0 0.0
    %1331 = vmatpush1.msra.mxu0 0.0
    %1332 = vmatprep.subr.mxu0 0.0
    %1333 = vmatpush1.msra.mxu0 0.0
    %1334 = vmatprep.subr.mxu0 0.0
    %1335 = vmatpush1.msra.mxu0 0.0
    %1336 = vmatprep.subr.mxu0 0.0
    %1337 = vmatpush1.msra.mxu0 0.0
    %1338 = vmatprep.subr.mxu0 0.0
    %1339 = vmatpush1.msra.mxu0 0.0
    %1340 = vmatprep.subr.mxu0 0.0
    %1341 = vmatpush1.msra.mxu0 0.0
    %1342 = vmatprep.subr.mxu0 0.0
    %1343 = vmatpush1.msra.mxu0 0.0
    %1344 = vmatprep.subr.mxu0 0.0
    %1345 = vmatpush1.msra.mxu0 0.0
    %1346 = vmatprep.subr.mxu0 0.0
    %1347 = vmatpush1.msra.mxu0 0.0
    %1348 = vmatprep.subr.mxu0 0.0
    %1349 = vmatpush1.msra.mxu0 0.0
    %1350 = vmatprep.subr.mxu0 0.0
    %1351 = vmatpush1.msra.mxu0 0.0
    %1352 = vmatprep.subr.mxu0 0.0
    %1353 = vmatpush1.msra.mxu0 0.0
    %1354 = vmatprep.subr.mxu0 0.0
    %1355 = vmatpush1.msra.mxu0 0.0
    %1356 = vmatprep.mubr.f32.mxu0 0.0
    %1357 = vmatmul.mubr.f32.gmra.mrb[0].mxu0 %v1287
    %v1358 = vpop.f32.mrb[0].mxu0
    %v1359 = vadd.f32 %v1278, %v1358
    %v1360 = vpop.f32.mrb[0].mxu0
    %1361 = vmatprep.mubr.f32.mxu0 0.0
    %1362 = vmatmul.mubr.f32.gmra.mrb[0].mxu0 %v1290
    %v1363 = vpop.f32.mrb[0].mxu0
    %v1364 = vadd.f32 %v1283, %v1363
    %v1365 = vpop.f32.mrb[0].mxu0
    %1366 = vdwg.mxu0
    %v1367 = vld [vmem:[%s10] sm:$0x1]
    %v1369 = vlaneseq
    %v1370 = vshrl.u32 %v1369, 7
    %v1371 = vsub.s32 0, %v1370
    %v1372 = vrot.slane %v1367, %v1371
    %v1374 = vadd.f32 %v1359, %v1372
    %v1375 = vadd.f32 %v1364, %v1372
    %v1376 = vadd.f32 %v410, %v1374
    %v1377 = vadd.f32 %v411, %v1375
    %v1378 = vld [vmem:[#allocation5] sm:$0x1]
    %v1379 = vld [vmem:[#allocation7] sm:$0x1]
    %v1380 = vsel %vm368, %v1376, 0.0
    %1381 = vadd.xlane.f32.xlu0 %v1380
    %v1382 = vpop.xlane.xlu0 %1381
    %v1383 = vsel %vm368, %v1377, 0.0
    %1384 = vadd.xlane.f32.xlu0 %v1383
    %v1385 = vpop.xlane.xlu0 %1384
    %v1386 = vmul.f32 %v1382, %v375
    %v1387 = vmul.f32 %v1385, %v375
    %v1388 = vsub.f32 %v1376, %v1386
    %v1389 = vsub.f32 %v1377, %v1387
    %v1390 = vmul.f32 %v1388, %v1388
    %v1391 = vmul.f32 %v1389, %v1389
    %v1392 = vsel %vm368, %v1390, 0.0
    %1393 = vadd.xlane.f32.xlu0 %v1392
    %v1394 = vpop.xlane.xlu0 %1393
    %v1395 = vsel %vm368, %v1391, 0.0
    %1396 = vadd.xlane.f32.xlu0 %v1395
    %v1397 = vpop.xlane.xlu0 %1396
    %v1398 = vmul.f32 %v1394, %v375
    %v1399 = vmul.f32 %v1397, %v375
    %v1400 = vadd.f32 %v1398, 1e-12
    %v1401 = vadd.f32 %v1399, 1e-12
    %v1402 = vrsqrt.pop %v1400
    %v1403 = vrsqrt.pop %v1401
    %v1404 = vmul.f32 %v1388, %v1402
    %v1405 = vmul.f32 %v1389, %v1403
    %v1407 = vlaneseq
    %v1408 = vshrl.u32 %v1407, 7
    %v1409 = vsub.s32 0, %v1408
    %v1410 = vrot.slane %v1378, %v1409
    %v1412 = vmul.f32 %v1404, %v1410
    %v1413 = vmul.f32 %v1405, %v1410
    %v1415 = vlaneseq
    %v1416 = vshrl.u32 %v1415, 7
    %v1417 = vsub.s32 0, %v1416
    %v1418 = vrot.slane %v1379, %v1417
    %v1420 = vadd.f32 %v1412, %v1418
    %v1421 = vadd.f32 %v1413, %v1418
    %v1422 = vld [vmem:[#allocation8] sm:$0xff]
    %v1423 = vld [vmem:[#allocation8 + $0x8] sm:$0xff]
    %v1424 = vld [vmem:[#allocation8 + $0x10] sm:$0xff]
    %v1425 = vld [vmem:[#allocation8 + $0x18] sm:$0xff]
    %v1426 = vld [vmem:[#allocation10] sm:$0x1]
    %v1428 = vlaneseq
    %v1429 = vshrl.u32 %v1428, 7
    %v1430 = vsub.s32 0, %v1429
    %v1431 = vrot.slane %v1426, %v1430
    %v1434 = vsel %vm368, %v1420, 0
    %v1437 = vsel %vm368, %v1421, 0
    %1439 = vmatprep.subr.mxu0 0.0
    %1440 = vmatpush1.msra.mxu0 %v1422
    %1441 = vmatprep.subr.mxu0 0.0
    %1442 = vmatpush1.msra.mxu0 %v1423
    %1443 = vmatprep.subr.mxu0 0.0
    %1444 = vmatpush1.msra.mxu0 %v1424
    %1445 = vmatprep.subr.mxu0 0.0
    %1446 = vmatpush1.msra.mxu0 %v1425
    %1447 = vmatprep.subr.mxu0 0.0
    %1448 = vmatpush1.msra.mxu0 0.0
    %1449 = vmatprep.subr.mxu0 0.0
    %1450 = vmatpush1.msra.mxu0 0.0
    %1451 = vmatprep.subr.mxu0 0.0
    %1452 = vmatpush1.msra.mxu0 0.0
    %1453 = vmatprep.subr.mxu0 0.0
    %1454 = vmatpush1.msra.mxu0 0.0
    %1455 = vmatprep.subr.mxu0 0.0
    %1456 = vmatpush1.msra.mxu0 0.0
    %1457 = vmatprep.subr.mxu0 0.0
    %1458 = vmatpush1.msra.mxu0 0.0
    %1459 = vmatprep.subr.mxu0 0.0
    %1460 = vmatpush1.msra.mxu0 0.0
    %1461 = vmatprep.subr.mxu0 0.0
    %1462 = vmatpush1.msra.mxu0 0.0
    %1463 = vmatprep.subr.mxu0 0.0
    %1464 = vmatpush1.msra.mxu0 0.0
    %1465 = vmatprep.subr.mxu0 0.0
    %1466 = vmatpush1.msra.mxu0 0.0
    %1467 = vmatprep.subr.mxu0 0.0
    %1468 = vmatpush1.msra.mxu0 0.0
    %1469 = vmatprep.subr.mxu0 0.0
    %1470 = vmatpush1.msra.mxu0 0.0
    %1471 = vmatprep.subr.mxu0 0.0
    %1472 = vmatpush1.msra.mxu0 0.0
    %1473 = vmatprep.subr.mxu0 0.0
    %1474 = vmatpush1.msra.mxu0 0.0
    %1475 = vmatprep.subr.mxu0 0.0
    %1476 = vmatpush1.msra.mxu0 0.0
    %1477 = vmatprep.subr.mxu0 0.0
    %1478 = vmatpush1.msra.mxu0 0.0
    %1479 = vmatprep.subr.mxu0 0.0
    %1480 = vmatpush1.msra.mxu0 0.0
    %1481 = vmatprep.subr.mxu0 0.0
    %1482 = vmatpush1.msra.mxu0 0.0
    %1483 = vmatprep.subr.mxu0 0.0
    %1484 = vmatpush1.msra.mxu0 0.0
    %1485 = vmatprep.subr.mxu0 0.0
    %1486 = vmatpush1.msra.mxu0 0.0
    %1487 = vmatprep.subr.mxu0 0.0
    %1488 = vmatpush1.msra.mxu0 0.0
    %1489 = vmatprep.subr.mxu0 0.0
    %1490 = vmatpush1.msra.mxu0 0.0
    %1491 = vmatprep.subr.mxu0 0.0
    %1492 = vmatpush1.msra.mxu0 0.0
    %1493 = vmatprep.subr.mxu0 0.0
    %1494 = vmatpush1.msra.mxu0 0.0
    %1495 = vmatprep.subr.mxu0 0.0
    %1496 = vmatpush1.msra.mxu0 0.0
    %1497 = vmatprep.subr.mxu0 0.0
    %1498 = vmatpush1.msra.mxu0 0.0
    %1499 = vmatprep.subr.mxu0 0.0
    %1500 = vmatpush1.msra.mxu0 0.0
    %1501 = vmatprep.subr.mxu0 0.0
    %1502 = vmatpush1.msra.mxu0 0.0
    %1503 = vmatprep.mubr.f32.mxu0 0.0
    %1504 = vmatmul.mubr.f32.gmra.mrb[0].mxu0 %v1434
    %v1505 = vpop.f32.mrb[0].mxu0
    %v1506 = vadd.f32 %v1431, %v1505
    %v1507 = vpop.f32.mrb[0].mxu0
    %1508 = vmatprep.mubr.f32.mxu0 0.0
    %1509 = vmatmul.mubr.f32.gmra.mrb[0].mxu0 %v1437
    %v1510 = vpop.f32.mrb[0].mxu0
    %v1511 = vadd.f32 %v1431, %v1510
    %v1512 = vpop.f32.mrb[0].mxu0
    %1513 = vdwg.mxu0
    %v1514 = vmul.f32 %v1506, 0.5
    %v1515 = vmul.f32 %v1511, 0.5
    %v1516 = vmul.f32 %v1506, 0.044715
    %v1517 = vmul.f32 %v1511, 0.044715
    %v1518 = vmul.f32 %v1516, %v1506
    %v1519 = vmul.f32 %v1517, %v1511
    %v1520 = vmul.f32 %v1518, %v1506
    %v1521 = vmul.f32 %v1519, %v1511
    %v1522 = vadd.f32 %v1506, %v1520
    %v1523 = vadd.f32 %v1511, %v1521
    %v1524 = vmul.f32 %v1522, 0.7978846
    %v1525 = vmul.f32 %v1523, 0.7978846
    %v1526 = vtanh.pop %v1524
    %v1527 = vtanh.pop %v1525
    %v1528 = vadd.f32 %v1526, 1.0
    %v1529 = vadd.f32 %v1527, 1.0
    %v1530 = vmul.f32 %v1514, %v1528
    %v1531 = vmul.f32 %v1515, %v1529
    %v1532 = vld [vmem:[%s15] sm:$0xff]
    %v1533 = vld [vmem:[%s15 + $0x8] sm:$0xff]
    %v1534 = vld [vmem:[%s15 + $0x10] sm:$0xff]
    %v1535 = vld [vmem:[%s15 + $0x18] sm:$0xff]
    %v1536 = vld [vmem:[%s15 + $0x20] sm:$0xff]
    %v1537 = vld [vmem:[%s15 + $0x28] sm:$0xff]
    %v1538 = vld [vmem:[%s15 + $0x30] sm:$0xff]
    %v1539 = vld [vmem:[%s15 + $0x38] sm:$0xff]
    %v1540 = vld [vmem:[#allocation11] sm:$0x1]
    %v1542 = vlaneseq
    %v1543 = vshrl.u32 %v1542, 7
    %v1544 = vsub.s32 0, %v1543
    %v1545 = vrot.slane %v1540, %v1544
    %vm1547 = vcmask 523264
    %v1549 = vsel %vm1547, %v1530, 0
    %v1552 = vsel %vm1547, %v1531, 0
    %1554 = vmatprep.subr.mxu0 0.0
    %1555 = vmatpush1.msra.mxu0 %v1532
    %1556 = vmatprep.subr.mxu0 0.0
    %1557 = vmatpush1.msra.mxu0 %v1533
    %1558 = vmatprep.subr.mxu0 0.0
    %1559 = vmatpush1.msra.mxu0 %v1534
    %1560 = vmatprep.subr.mxu0 0.0
    %1561 = vmatpush1.msra.mxu0 %v1535
    %1562 = vmatprep.subr.mxu0 0.0
    %1563 = vmatpush1.msra.mxu0 %v1536
    %1564 = vmatprep.subr.mxu0 0.0
    %1565 = vmatpush1.msra.mxu0 %v1537
    %1566 = vmatprep.subr.mxu0 0.0
    %1567 = vmatpush1.msra.mxu0 %v1538
    %1568 = vmatprep.subr.mxu0 0.0
    %1569 = vmatpush1.msra.mxu0 %v1539
    %1570 = vmatprep.subr.mxu0 0.0
    %1571 = vmatpush1.msra.mxu0 0.0
    %1572 = vmatprep.subr.mxu0 0.0
    %1573 = vmatpush1.msra.mxu0 0.0
    %1574 = vmatprep.subr.mxu0 0.0
    %1575 = vmatpush1.msra.mxu0 0.0
    %1576 = vmatprep.subr.mxu0 0.0
    %1577 = vmatpush1.msra.mxu0 0.0
    %1578 = vmatprep.subr.mxu0 0.0
    %1579 = vmatpush1.msra.mxu0 0.0
    %1580 = vmatprep.subr.mxu0 0.0
    %1581 = vmatpush1.msra.mxu0 0.0
    %1582 = vmatprep.subr.mxu0 0.0
    %1583 = vmatpush1.msra.mxu0 0.0
    %1584 = vmatprep.subr.mxu0 0.0
    %1585 = vmatpush1.msra.mxu0 0.0
    %1586 = vmatprep.subr.mxu0 0.0
    %1587 = vmatpush1.msra.mxu0 0.0
    %1588 = vmatprep.subr.mxu0 0.0
    %1589 = vmatpush1.msra.mxu0 0.0
    %1590 = vmatprep.subr.mxu0 0.0
    %1591 = vmatpush1.msra.mxu0 0.0
    %1592 = vmatprep.subr.mxu0 0.0
    %1593 = vmatpush1.msra.mxu0 0.0
    %1594 = vmatprep.subr.mxu0 0.0
    %1595 = vmatpush1.msra.mxu0 0.0
    %1596 = vmatprep.subr.mxu0 0.0
    %1597 = vmatpush1.msra.mxu0 0.0
    %1598 = vmatprep.subr.mxu0 0.0
    %1599 = vmatpush1.msra.mxu0 0.0
    %1600 = vmatprep.subr.mxu0 0.0
    %1601 = vmatpush1.msra.mxu0 0.0
    %1602 = vmatprep.subr.mxu0 0.0
    %1603 = vmatpush1.msra.mxu0 0.0
    %1604 = vmatprep.subr.mxu0 0.0
    %1605 = vmatpush1.msra.mxu0 0.0
    %1606 = vmatprep.subr.mxu0 0.0
    %1607 = vmatpush1.msra.mxu0 0.0
    %1608 = vmatprep.subr.mxu0 0.0
    %1609 = vmatpush1.msra.mxu0 0.0
    %1610 = vmatprep.subr.mxu0 0.0
    %1611 = vmatpush1.msra.mxu0 0.0
    %1612 = vmatprep.subr.mxu0 0.0
    %1613 = vmatpush1.msra.mxu0 0.0
    %1614 = vmatprep.subr.mxu0 0.0
    %1615 = vmatpush1.msra.mxu0 0.0
    %1616 = vmatprep.subr.mxu0 0.0
    %1617 = vmatpush1.msra.mxu0 0.0
    %1618 = vmatprep.mubr.f32.mxu0 0.0
    %1619 = vmatmul.mubr.f32.gmra.mrb[0].mxu0 %v1549
    %v1620 = vpop.f32.mrb[0].mxu0
    %v1621 = vadd.f32 %v1545, %v1620
    %v1622 = vpop.f32.mrb[0].mxu0
    %1623 = vmatprep.mubr.f32.mxu0 0.0
    %1624 = vmatmul.mubr.f32.gmra.mrb[0].mxu0 %v1552
    %v1625 = vpop.f32.mrb[0].mxu0
    %v1626 = vadd.f32 %v1545, %v1625
    %v1627 = vpop.f32.mrb[0].mxu0
    %1628 = vdwg.mxu0
    %v1629 = vadd.f32 %v1420, %v1621
    %v1630 = vadd.f32 %v1421, %v1626
    %v1631 = vld [vmem:[#allocation13] sm:$0x1]
    %v1632 = vld [vmem:[#allocation14] sm:$0x1]
    %v1633 = vsel %vm368, %v1629, 0.0
    %1634 = vadd.xlane.f32.xlu0 %v1633
    %v1635 = vpop.xlane.xlu0 %1634
    %v1636 = vsel %vm368, %v1630, 0.0
    %1637 = vadd.xlane.f32.xlu0 %v1636
    %v1638 = vpop.xlane.xlu0 %1637
    %v1639 = vmul.f32 %v1635, %v375
    %v1640 = vmul.f32 %v1638, %v375
    %v1641 = vsub.f32 %v1629, %v1639
    %v1642 = vsub.f32 %v1630, %v1640
    %v1643 = vmul.f32 %v1641, %v1641
    %v1644 = vmul.f32 %v1642, %v1642
    %v1645 = vsel %vm368, %v1643, 0.0
    %1646 = vadd.xlane.f32.xlu0 %v1645
    %v1647 = vpop.xlane.xlu0 %1646
    %v1648 = vsel %vm368, %v1644, 0.0
    %1649 = vadd.xlane.f32.xlu0 %v1648
    %v1650 = vpop.xlane.xlu0 %1649
    %v1651 = vmul.f32 %v1647, %v375
    %v1652 = vmul.f32 %v1650, %v375
    %v1653 = vadd.f32 %v1651, 1e-12
    %v1654 = vadd.f32 %v1652, 1e-12
    %v1655 = vrsqrt.pop %v1653
    %v1656 = vrsqrt.pop %v1654
    %v1657 = vmul.f32 %v1641, %v1655
    %v1658 = vmul.f32 %v1642, %v1656
    %v1660 = vlaneseq
    %v1661 = vshrl.u32 %v1660, 7
    %v1662 = vsub.s32 0, %v1661
    %v1663 = vrot.slane %v1631, %v1662
    %v1665 = vmul.f32 %v1657, %v1663
    %v1666 = vmul.f32 %v1658, %v1663
    %v1668 = vlaneseq
    %v1669 = vshrl.u32 %v1668, 7
    %v1670 = vsub.s32 0, %v1669
    %v1671 = vrot.slane %v1632, %v1670
    %v1673 = vadd.f32 %v1665, %v1671
    %v1674 = vadd.f32 %v1666, %v1671
    %s1675 = scalar_lea.vmem %s7, 32
    %v1676 = vld [vmem:[%s1675] sm:$0xff]
    %v1677 = vld [vmem:[%s1675 + $0x8] sm:$0xff]
    %v1678 = vld [vmem:[%s1675 + $0x10] sm:$0xff]
    %v1679 = vld [vmem:[%s1675 + $0x18] sm:$0xff]
    %s1680 = scalar_lea.vmem %s8, 1
    %v1681 = vld [vmem:[%s1680] sm:$0x1]
    %v1683 = vlaneseq
    %v1684 = vshrl.u32 %v1683, 7
    %v1685 = vsub.s32 0, %v1684
    %v1686 = vrot.slane %v1681, %v1685
    %v1689 = vsel %vm368, %v1673, 0
    %v1692 = vsel %vm368, %v1674, 0
    %1694 = vmatprep.subr.mxu0 0.0
    %1695 = vmatpush1.msra.mxu0 %v1676
    %1696 = vmatprep.subr.mxu0 0.0
    %1697 = vmatpush1.msra.mxu0 %v1677
    %1698 = vmatprep.subr.mxu0 0.0
    %1699 = vmatpush1.msra.mxu0 %v1678
    %1700 = vmatprep.subr.mxu0 0.0
    %1701 = vmatpush1.msra.mxu0 %v1679
    %1702 = vmatprep.subr.mxu0 0.0
    %1703 = vmatpush1.msra.mxu0 0.0
    %1704 = vmatprep.subr.mxu0 0.0
    %1705 = vmatpush1.msra.mxu0 0.0
    %1706 = vmatprep.subr.mxu0 0.0
    %1707 = vmatpush1.msra.mxu0 0.0
    %1708 = vmatprep.subr.mxu0 0.0
    %1709 = vmatpush1.msra.mxu0 0.0
    %1710 = vmatprep.subr.mxu0 0.0
    %1711 = vmatpush1.msra.mxu0 0.0
    %1712 = vmatprep.subr.mxu0 0.0
    %1713 = vmatpush1.msra.mxu0 0.0
    %1714 = vmatprep.subr.mxu0 0.0
    %1715 = vmatpush1.msra.mxu0 0.0
    %1716 = vmatprep.subr.mxu0 0.0
    %1717 = vmatpush1.msra.mxu0 0.0
    %1718 = vmatprep.subr.mxu0 0.0
    %1719 = vmatpush1.msra.mxu0 0.0
    %1720 = vmatprep.subr.mxu0 0.0
    %1721 = vmatpush1.msra.mxu0 0.0
    %1722 = vmatprep.subr.mxu0 0.0
    %1723 = vmatpush1.msra.mxu0 0.0
    %1724 = vmatprep.subr.mxu0 0.0
    %1725 = vmatpush1.msra.mxu0 0.0
    %1726 = vmatprep.subr.mxu0 0.0
    %1727 = vmatpush1.msra.mxu0 0.0
    %1728 = vmatprep.subr.mxu0 0.0
    %1729 = vmatpush1.msra.mxu0 0.0
    %1730 = vmatprep.subr.mxu0 0.0
    %1731 = vmatpush1.msra.mxu0 0.0
    %1732 = vmatprep.subr.mxu0 0.0
    %1733 = vmatpush1.msra.mxu0 0.0
    %1734 = vmatprep.subr.mxu0 0.0
    %1735 = vmatpush1.msra.mxu0 0.0
    %1736 = vmatprep.subr.mxu0 0.0
    %1737 = vmatpush1.msra.mxu0 0.0
    %1738 = vmatprep.subr.mxu0 0.0
    %1739 = vmatpush1.msra.mxu0 0.0
    %1740 = vmatprep.subr.mxu0 0.0
    %1741 = vmatpush1.msra.mxu0 0.0
    %1742 = vmatprep.subr.mxu0 0.0
    %1743 = vmatpush1.msra.mxu0 0.0
    %1744 = vmatprep.subr.mxu0 0.0
    %1745 = vmatpush1.msra.mxu0 0.0
    %1746 = vmatprep.subr.mxu0 0.0
    %1747 = vmatpush1.msra.mxu0 0.0
    %1748 = vmatprep.subr.mxu0 0.0
    %1749 = vmatpush1.msra.mxu0 0.0
    %1750 = vmatprep.subr.mxu0 0.0
    %1751 = vmatpush1.msra.mxu0 0.0
    %1752 = vmatprep.subr.mxu0 0.0
    %1753 = vmatpush1.msra.mxu0 0.0
    %1754 = vmatprep.subr.mxu0 0.0
    %1755 = vmatpush1.msra.mxu0 0.0
    %1756 = vmatprep.subr.mxu0 0.0
    %1757 = vmatpush1.msra.mxu0 0.0
    %1758 = vmatprep.mubr.f32.mxu0 0.0
    %1759 = vmatmul.mubr.f32.gmra.mrb[0].mxu0 %v1689
    %v1760 = vpop.f32.mrb[0].mxu0
    %v1761 = vadd.f32 %v1686, %v1760
    %v1762 = vpop.f32.mrb[0].mxu0
    %1763 = vmatprep.mubr.f32.mxu0 0.0
    %1764 = vmatmul.mubr.f32.gmra.mrb[0].mxu0 %v1692
    %v1765 = vpop.f32.mrb[0].mxu0
    %v1766 = vadd.f32 %v1686, %v1765
    %v1767 = vpop.f32.mrb[0].mxu0
    %1768 = vdwg.mxu0
    %s1769 = scalar_lea.vmem %s9, 32
    %v1770 = vld [vmem:[%s1769] sm:$0xff]
    %v1771 = vld [vmem:[%s1769 + $0x8] sm:$0xff]
    %v1772 = vld [vmem:[%s1769 + $0x10] sm:$0xff]
    %v1773 = vld [vmem:[%s1769 + $0x18] sm:$0xff]
    %1775 = vrot.lane.b32.xlu0 %v1761, 96
    %v1776 = vpop.permute.xlu0 %1775
    %v1777 = vsel %vm548, %v1761, 0
    %v1779 = vsel %vm548, %v1776, 0
    %1781 = vmatprep.subr.mxu0 0.0
    %1782 = vmatpush1.xpose.msra.mxu0 %v1779
    %1783 = vmatprep.subr.mxu0 0.0
    %1784 = vmatpush1.xpose.msra.mxu0 0.0
    %1785 = vmatprep.subr.mxu0 0.0
    %1786 = vmatpush1.xpose.msra.mxu0 0.0
    %1787 = vmatprep.subr.mxu0 0.0
    %1788 = vmatpush1.xpose.msra.mxu0 0.0
    %1789 = vmatprep.subr.mxu0 0.0
    %1790 = vmatpush1.xpose.msra.mxu0 0.0
    %1791 = vmatprep.subr.mxu0 0.0
    %1792 = vmatpush1.xpose.msra.mxu0 0.0
    %1793 = vmatprep.subr.mxu0 0.0
    %1794 = vmatpush1.xpose.msra.mxu0 0.0
    %1795 = vmatprep.subr.mxu0 0.0
    %1796 = vmatpush1.xpose.msra.mxu0 0.0
    %1797 = vmatprep.subr.mxu0 0.0
    %1798 = vmatpush1.xpose.msra.mxu0 0.0
    %1799 = vmatprep.subr.mxu0 0.0
    %1800 = vmatpush1.xpose.msra.mxu0 0.0
    %1801 = vmatprep.subr.mxu0 0.0
    %1802 = vmatpush1.xpose.msra.mxu0 0.0
    %1803 = vmatprep.subr.mxu0 0.0
    %1804 = vmatpush1.xpose.msra.mxu0 0.0
    %1805 = vmatprep.subr.mxu0 0.0
    %1806 = vmatpush1.xpose.msra.mxu0 0.0
    %1807 = vmatprep.subr.mxu0 0.0
    %1808 = vmatpush1.xpose.msra.mxu0 0.0
    %1809 = vmatprep.subr.mxu0 0.0
    %1810 = vmatpush1.xpose.msra.mxu0 0.0
    %1811 = vmatprep.subr.mxu0 0.0
    %1812 = vmatpush1.xpose.msra.mxu0 0.0
    %1813 = vmatprep.subr.mxu0 0.0
    %1814 = vmatpush1.xpose.msra.mxu0 0.0
    %1815 = vmatprep.subr.mxu0 0.0
    %1816 = vmatpush1.xpose.msra.mxu0 0.0
    %1817 = vmatprep.subr.mxu0 0.0
    %1818 = vmatpush1.xpose.msra.mxu0 0.0
    %1819 = vmatprep.subr.mxu0 0.0
    %1820 = vmatpush1.xpose.msra.mxu0 0.0
    %1821 = vmatprep.subr.mxu0 0.0
    %1822 = vmatpush1.xpose.msra.mxu0 0.0
    %1823 = vmatprep.subr.mxu0 0.0
    %1824 = vmatpush1.xpose.msra.mxu0 0.0
    %1825 = vmatprep.subr.mxu0 0.0
    %1826 = vmatpush1.xpose.msra.mxu0 0.0
    %1827 = vmatprep.subr.mxu0 0.0
    %1828 = vmatpush1.xpose.msra.mxu0 0.0
    %1829 = vmatprep.subr.mxu0 0.0
    %1830 = vmatpush1.xpose.msra.mxu0 0.0
    %1831 = vmatprep.subr.mxu0 0.0
    %1832 = vmatpush1.xpose.msra.mxu0 0.0
    %1833 = vmatprep.subr.mxu0 0.0
    %1834 = vmatpush1.xpose.msra.mxu0 0.0
    %1835 = vmatprep.subr.mxu0 0.0
    %1836 = vmatpush1.xpose.msra.mxu0 0.0
    %1837 = vmatprep.subr.mxu0 0.0
    %1838 = vmatpush1.xpose.msra.mxu0 0.0
    %1839 = vmatprep.subr.mxu0 0.0
    %1840 = vmatpush1.xpose.msra.mxu0 0.0
    %1841 = vmatprep.subr.mxu0 0.0
    %1842 = vmatpush1.xpose.msra.mxu0 0.0
    %1843 = vmatprep.subr.mxu0 0.0
    %1844 = vmatpush1.xpose.msra.mxu0 0.0
    %1845 = vmatprep.mubr.f32.mxu0 0.0
    %1846 = vmatmul.mubr.f32.gmra.mrb[0].mxu0 %v1777
    %v1847 = vpop.f32.mrb[0].mxu0
    %v1848 = vadd.f32 %v538, %v1847
    %v1849 = vpop.f32.mrb[0].mxu0
    %1850 = vdwg.mxu0
    %1852 = vrot.lane.b32.xlu0 %v1766, 96
    %v1853 = vpop.permute.xlu0 %1852
    %v1854 = vsel %vm548, %v1766, 0
    %v1856 = vsel %vm548, %v1853, 0
    %1858 = vmatprep.subr.mxu0 0.0
    %1859 = vmatpush1.xpose.msra.mxu0 %v1856
    %1860 = vmatprep.subr.mxu0 0.0
    %1861 = vmatpush1.xpose.msra.mxu0 0.0
    %1862 = vmatprep.subr.mxu0 0.0
    %1863 = vmatpush1.xpose.msra.mxu0 0.0
    %1864 = vmatprep.subr.mxu0 0.0
    %1865 = vmatpush1.xpose.msra.mxu0 0.0
    %1866 = vmatprep.subr.mxu0 0.0
    %1867 = vmatpush1.xpose.msra.mxu0 0.0
    %1868 = vmatprep.subr.mxu0 0.0
    %1869 = vmatpush1.xpose.msra.mxu0 0.0
    %1870 = vmatprep.subr.mxu0 0.0
    %1871 = vmatpush1.xpose.msra.mxu0 0.0
    %1872 = vmatprep.subr.mxu0 0.0
    %1873 = vmatpush1.xpose.msra.mxu0 0.0
    %1874 = vmatprep.subr.mxu0 0.0
    %1875 = vmatpush1.xpose.msra.mxu0 0.0
    %1876 = vmatprep.subr.mxu0 0.0
    %1877 = vmatpush1.xpose.msra.mxu0 0.0
    %1878 = vmatprep.subr.mxu0 0.0
    %1879 = vmatpush1.xpose.msra.mxu0 0.0
    %1880 = vmatprep.subr.mxu0 0.0
    %1881 = vmatpush1.xpose.msra.mxu0 0.0
    %1882 = vmatprep.subr.mxu0 0.0
    %1883 = vmatpush1.xpose.msra.mxu0 0.0
    %1884 = vmatprep.subr.mxu0 0.0
    %1885 = vmatpush1.xpose.msra.mxu0 0.0
    %1886 = vmatprep.subr.mxu0 0.0
    %1887 = vmatpush1.xpose.msra.mxu0 0.0
    %1888 = vmatprep.subr.mxu0 0.0
    %1889 = vmatpush1.xpose.msra.mxu0 0.0
    %1890 = vmatprep.subr.mxu0 0.0
    %1891 = vmatpush1.xpose.msra.mxu0 0.0
    %1892 = vmatprep.subr.mxu0 0.0
    %1893 = vmatpush1.xpose.msra.mxu0 0.0
    %1894 = vmatprep.subr.mxu0 0.0
    %1895 = vmatpush1.xpose.msra.mxu0 0.0
    %1896 = vmatprep.subr.mxu0 0.0
    %1897 = vmatpush1.xpose.msra.mxu0 0.0
    %1898 = vmatprep.subr.mxu0 0.0
    %1899 = vmatpush1.xpose.msra.mxu0 0.0
    %1900 = vmatprep.subr.mxu0 0.0
    %1901 = vmatpush1.xpose.msra.mxu0 0.0
    %1902 = vmatprep.subr.mxu0 0.0
    %1903 = vmatpush1.xpose.msra.mxu0 0.0
    %1904 = vmatprep.subr.mxu0 0.0
    %1905 = vmatpush1.xpose.msra.mxu0 0.0
    %1906 = vmatprep.subr.mxu0 0.0
    %1907 = vmatpush1.xpose.msra.mxu0 0.0
    %1908 = vmatprep.subr.mxu0 0.0
    %1909 = vmatpush1.xpose.msra.mxu0 0.0
    %1910 = vmatprep.subr.mxu0 0.0
    %1911 = vmatpush1.xpose.msra.mxu0 0.0
    %1912 = vmatprep.subr.mxu0 0.0
    %1913 = vmatpush1.xpose.msra.mxu0 0.0
    %1914 = vmatprep.subr.mxu0 0.0
    %1915 = vmatpush1.xpose.msra.mxu0 0.0
    %1916 = vmatprep.subr.mxu0 0.0
    %1917 = vmatpush1.xpose.msra.mxu0 0.0
    %1918 = vmatprep.subr.mxu0 0.0
    %1919 = vmatpush1.xpose.msra.mxu0 0.0
    %1920 = vmatprep.subr.mxu0 0.0
    %1921 = vmatpush1.xpose.msra.mxu0 0.0
    %1922 = vmatprep.mubr.f32.mxu0 0.0
    %1923 = vmatmul.mubr.f32.gmra.mrb[0].mxu0 %v1854
    %v1924 = vpop.f32.mrb[0].mxu0
    %v1925 = vadd.f32 %v542, %v1924
    %v1926 = vpop.f32.mrb[0].mxu0
    %1927 = vdwg.mxu0
    %v1928 = vsel %vm700, %v1848, -inf
    %1929 = vmax.xlane.f32.xlu0 %v1928
    %v1930 = vpop.xlane.xlu0 %1929
    %v1931 = vsel %vm700, %v1925, -inf
    %1932 = vmax.xlane.f32.xlu0 %v1931
    %v1933 = vpop.xlane.xlu0 %1932
    %v1934 = vsub.f32 %v1848, %v1930
    %v1935 = vsub.f32 %v1925, %v1933
    %v1936 = vmul.f32 %v1934, 1.442695
    %v1937 = vpow.pop %v1936
    %v1938 = vmul.f32 %v1935, 1.442695
    %v1939 = vpow.pop %v1938
    %v1940 = vsel %vm700, %v1937, 0.0
    %1941 = vadd.xlane.f32.xlu0 %v1940
    %v1942 = vpop.xlane.xlu0 %1941
    %v1943 = vsel %vm700, %v1939, 0.0
    %1944 = vadd.xlane.f32.xlu0 %v1943
    %v1945 = vpop.xlane.xlu0 %1944
    %v1946 = vrcp.pop %v1942
    %v1947 = vmul.f32 %v1937, %v1946
    %v1948 = vrcp.pop %v1945
    %v1949 = vmul.f32 %v1939, %v1948
    %1950 = vrot.lane.b32.xlu0 %v1761, 64
    %v1951 = vpop.permute.xlu0 %1950
    %v1954 = vsel %vm700, %v1947, 0
    %1956 = vmatprep.subr.mxu0 0.0
    %1957 = vmatpush1.msra.mxu0 %v1951
    %1958 = vmatprep.subr.mxu0 0.0
    %1959 = vmatpush1.msra.mxu0 0.0
    %1960 = vmatprep.subr.mxu0 0.0
    %1961 = vmatpush1.msra.mxu0 0.0
    %1962 = vmatprep.subr.mxu0 0.0
    %1963 = vmatpush1.msra.mxu0 0.0
    %1964 = vmatprep.subr.mxu0 0.0
    %1965 = vmatpush1.msra.mxu0 0.0
    %1966 = vmatprep.subr.mxu0 0.0
    %1967 = vmatpush1.msra.mxu0 0.0
    %1968 = vmatprep.subr.mxu0 0.0
    %1969 = vmatpush1.msra.mxu0 0.0
    %1970 = vmatprep.subr.mxu0 0.0
    %1971 = vmatpush1.msra.mxu0 0.0
    %1972 = vmatprep.subr.mxu0 0.0
    %1973 = vmatpush1.msra.mxu0 0.0
    %1974 = vmatprep.subr.mxu0 0.0
    %1975 = vmatpush1.msra.mxu0 0.0
    %1976 = vmatprep.subr.mxu0 0.0
    %1977 = vmatpush1.msra.mxu0 0.0
    %1978 = vmatprep.subr.mxu0 0.0
    %1979 = vmatpush1.msra.mxu0 0.0
    %1980 = vmatprep.subr.mxu0 0.0
    %1981 = vmatpush1.msra.mxu0 0.0
    %1982 = vmatprep.subr.mxu0 0.0
    %1983 = vmatpush1.msra.mxu0 0.0
    %1984 = vmatprep.subr.mxu0 0.0
    %1985 = vmatpush1.msra.mxu0 0.0
    %1986 = vmatprep.subr.mxu0 0.0
    %1987 = vmatpush1.msra.mxu0 0.0
    %1988 = vmatprep.subr.mxu0 0.0
    %1989 = vmatpush1.msra.mxu0 0.0
    %1990 = vmatprep.subr.mxu0 0.0
    %1991 = vmatpush1.msra.mxu0 0.0
    %1992 = vmatprep.subr.mxu0 0.0
    %1993 = vmatpush1.msra.mxu0 0.0
    %1994 = vmatprep.subr.mxu0 0.0
    %1995 = vmatpush1.msra.mxu0 0.0
    %1996 = vmatprep.subr.mxu0 0.0
    %1997 = vmatpush1.msra.mxu0 0.0
    %1998 = vmatprep.subr.mxu0 0.0
    %1999 = vmatpush1.msra.mxu0 0.0
    %2000 = vmatprep.subr.mxu0 0.0
    %2001 = vmatpush1.msra.mxu0 0.0
    %2002 = vmatprep.subr.mxu0 0.0
    %2003 = vmatpush1.msra.mxu0 0.0
    %2004 = vmatprep.subr.mxu0 0.0
    %2005 = vmatpush1.msra.mxu0 0.0
    %2006 = vmatprep.subr.mxu0 0.0
    %2007 = vmatpush1.msra.mxu0 0.0
    %2008 = vmatprep.subr.mxu0 0.0
    %2009 = vmatpush1.msra.mxu0 0.0
    %2010 = vmatprep.subr.mxu0 0.0
    %2011 = vmatpush1.msra.mxu0 0.0
    %2012 = vmatprep.subr.mxu0 0.0
    %2013 = vmatpush1.msra.mxu0 0.0
    %2014 = vmatprep.subr.mxu0 0.0
    %2015 = vmatpush1.msra.mxu0 0.0
    %2016 = vmatprep.subr.mxu0 0.0
    %2017 = vmatpush1.msra.mxu0 0.0
    %2018 = vmatprep.subr.mxu0 0.0
    %2019 = vmatpush1.msra.mxu0 0.0
    %2020 = vmatprep.mubr.f32.mxu0 0.0
    %2021 = vmatmul.mubr.f32.gmra.mrb[0].mxu0 %v1954
    %v2022 = vpop.f32.mrb[0].mxu0
    %v2023 = vadd.f32 0.0, %v2022
    %v2024 = vpop.f32.mrb[0].mxu0
    %2025 = vdwg.mxu0
    %2026 = vrot.lane.b32.xlu0 %v1766, 64
    %v2027 = vpop.permute.xlu0 %2026
    %v2030 = vsel %vm700, %v1949, 0
    %2032 = vmatprep.subr.mxu0 0.0
    %2033 = vmatpush1.msra.mxu0 %v2027
    %2034 = vmatprep.subr.mxu0 0.0
    %2035 = vmatpush1.msra.mxu0 0.0
    %2036 = vmatprep.subr.mxu0 0.0
    %2037 = vmatpush1.msra.mxu0 0.0
    %2038 = vmatprep.subr.mxu0 0.0
    %2039 = vmatpush1.msra.mxu0 0.0
    %2040 = vmatprep.subr.mxu0 0.0
    %2041 = vmatpush1.msra.mxu0 0.0
    %2042 = vmatprep.subr.mxu0 0.0
    %2043 = vmatpush1.msra.mxu0 0.0
    %2044 = vmatprep.subr.mxu0 0.0
    %2045 = vmatpush1.msra.mxu0 0.0
    %2046 = vmatprep.subr.mxu0 0.0
    %2047 = vmatpush1.msra.mxu0 0.0
    %2048 = vmatprep.subr.mxu0 0.0
    %2049 = vmatpush1.msra.mxu0 0.0
    %2050 = vmatprep.subr.mxu0 0.0
    %2051 = vmatpush1.msra.mxu0 0.0
    %2052 = vmatprep.subr.mxu0 0.0
    %2053 = vmatpush1.msra.mxu0 0.0
    %2054 = vmatprep.subr.mxu0 0.0
    %2055 = vmatpush1.msra.mxu0 0.0
    %2056 = vmatprep.subr.mxu0 0.0
    %2057 = vmatpush1.msra.mxu0 0.0
    %2058 = vmatprep.subr.mxu0 0.0
    %2059 = vmatpush1.msra.mxu0 0.0
    %2060 = vmatprep.subr.mxu0 0.0
    %2061 = vmatpush1.msra.mxu0 0.0
    %2062 = vmatprep.subr.mxu0 0.0
    %2063 = vmatpush1.msra.mxu0 0.0
    %2064 = vmatprep.subr.mxu0 0.0
    %2065 = vmatpush1.msra.mxu0 0.0
    %2066 = vmatprep.subr.mxu0 0.0
    %2067 = vmatpush1.msra.mxu0 0.0
    %2068 = vmatprep.subr.mxu0 0.0
    %2069 = vmatpush1.msra.mxu0 0.0
    %2070 = vmatprep.subr.mxu0 0.0
    %2071 = vmatpush1.msra.mxu0 0.0
    %2072 = vmatprep.subr.mxu0 0.0
    %2073 = vmatpush1.msra.mxu0 0.0
    %2074 = vmatprep.subr.mxu0 0.0
    %2075 = vmatpush1.msra.mxu0 0.0
    %2076 = vmatprep.subr.mxu0 0.0
    %2077 = vmatpush1.msra.mxu0 0.0
    %2078 = vmatprep.subr.mxu0 0.0
    %2079 = vmatpush1.msra.mxu0 0.0
    %2080 = vmatprep.subr.mxu0 0.0
    %2081 = vmatpush1.msra.mxu0 0.0
    %2082 = vmatprep.subr.mxu0 0.0
    %2083 = vmatpush1.msra.mxu0 0.0
    %2084 = vmatprep.subr.mxu0 0.0
    %2085 = vmatpush1.msra.mxu0 0.0
    %2086 = vmatprep.subr.mxu0 0.0
    %2087 = vmatpush1.msra.mxu0 0.0
    %2088 = vmatprep.subr.mxu0 0.0
    %2089 = vmatpush1.msra.mxu0 0.0
    %2090 = vmatprep.subr.mxu0 0.0
    %2091 = vmatpush1.msra.mxu0 0.0
    %2092 = vmatprep.subr.mxu0 0.0
    %2093 = vmatpush1.msra.mxu0 0.0
    %2094 = vmatprep.subr.mxu0 0.0
    %2095 = vmatpush1.msra.mxu0 0.0
    %2096 = vmatprep.mubr.f32.mxu0 0.0
    %2097 = vmatmul.mubr.f32.gmra.mrb[0].mxu0 %v2030
    %v2098 = vpop.f32.mrb[0].mxu0
    %v2099 = vadd.f32 0.0, %v2098
    %v2100 = vpop.f32.mrb[0].mxu0
    %2101 = vdwg.mxu0
    %2102 = vrot.lane.b32.xlu0 %v1761, 112
    %v2103 = vpop.permute.xlu0 %2102
    %2104 = vrot.lane.b32.xlu0 %v1761, 80
    %v2105 = vpop.permute.xlu0 %2104
    %v2106 = vsel %vm548, %v2103, 0
    %v2108 = vsel %vm548, %v2105, 0
    %2110 = vmatprep.subr.mxu0 0.0
    %2111 = vmatpush1.xpose.msra.mxu0 %v2108
    %2112 = vmatprep.subr.mxu0 0.0
    %2113 = vmatpush1.xpose.msra.mxu0 0.0
    %2114 = vmatprep.subr.mxu0 0.0
    %2115 = vmatpush1.xpose.msra.mxu0 0.0
    %2116 = vmatprep.subr.mxu0 0.0
    %2117 = vmatpush1.xpose.msra.mxu0 0.0
    %2118 = vmatprep.subr.mxu0 0.0
    %2119 = vmatpush1.xpose.msra.mxu0 0.0
    %2120 = vmatprep.subr.mxu0 0.0
    %2121 = vmatpush1.xpose.msra.mxu0 0.0
    %2122 = vmatprep.subr.mxu0 0.0
    %2123 = vmatpush1.xpose.msra.mxu0 0.0
    %2124 = vmatprep.subr.mxu0 0.0
    %2125 = vmatpush1.xpose.msra.mxu0 0.0
    %2126 = vmatprep.subr.mxu0 0.0
    %2127 = vmatpush1.xpose.msra.mxu0 0.0
    %2128 = vmatprep.subr.mxu0 0.0
    %2129 = vmatpush1.xpose.msra.mxu0 0.0
    %2130 = vmatprep.subr.mxu0 0.0
    %2131 = vmatpush1.xpose.msra.mxu0 0.0
    %2132 = vmatprep.subr.mxu0 0.0
    %2133 = vmatpush1.xpose.msra.mxu0 0.0
    %2134 = vmatprep.subr.mxu0 0.0
    %2135 = vmatpush1.xpose.msra.mxu0 0.0
    %2136 = vmatprep.subr.mxu0 0.0
    %2137 = vmatpush1.xpose.msra.mxu0 0.0
    %2138 = vmatprep.subr.mxu0 0.0
    %2139 = vmatpush1.xpose.msra.mxu0 0.0
    %2140 = vmatprep.subr.mxu0 0.0
    %2141 = vmatpush1.xpose.msra.mxu0 0.0
    %2142 = vmatprep.subr.mxu0 0.0
    %2143 = vmatpush1.xpose.msra.mxu0 0.0
    %2144 = vmatprep.subr.mxu0 0.0
    %2145 = vmatpush1.xpose.msra.mxu0 0.0
    %2146 = vmatprep.subr.mxu0 0.0
    %2147 = vmatpush1.xpose.msra.mxu0 0.0
    %2148 = vmatprep.subr.mxu0 0.0
    %2149 = vmatpush1.xpose.msra.mxu0 0.0
    %2150 = vmatprep.subr.mxu0 0.0
    %2151 = vmatpush1.xpose.msra.mxu0 0.0
    %2152 = vmatprep.subr.mxu0 0.0
    %2153 = vmatpush1.xpose.msra.mxu0 0.0
    %2154 = vmatprep.subr.mxu0 0.0
    %2155 = vmatpush1.xpose.msra.mxu0 0.0
    %2156 = vmatprep.subr.mxu0 0.0
    %2157 = vmatpush1.xpose.msra.mxu0 0.0
    %2158 = vmatprep.subr.mxu0 0.0
    %2159 = vmatpush1.xpose.msra.mxu0 0.0
    %2160 = vmatprep.subr.mxu0 0.0
    %2161 = vmatpush1.xpose.msra.mxu0 0.0
    %2162 = vmatprep.subr.mxu0 0.0
    %2163 = vmatpush1.xpose.msra.mxu0 0.0
    %2164 = vmatprep.subr.mxu0 0.0
    %2165 = vmatpush1.xpose.msra.mxu0 0.0
    %2166 = vmatprep.subr.mxu0 0.0
    %2167 = vmatpush1.xpose.msra.mxu0 0.0
    %2168 = vmatprep.subr.mxu0 0.0
    %2169 = vmatpush1.xpose.msra.mxu0 0.0
    %2170 = vmatprep.subr.mxu0 0.0
    %2171 = vmatpush1.xpose.msra.mxu0 0.0
    %2172 = vmatprep.subr.mxu0 0.0
    %2173 = vmatpush1.xpose.msra.mxu0 0.0
    %2174 = vmatprep.mubr.f32.mxu0 0.0
    %2175 = vmatmul.mubr.f32.gmra.mrb[0].mxu0 %v2106
    %v2176 = vpop.f32.mrb[0].mxu0
    %v2177 = vadd.f32 %v538, %v2176
    %v2178 = vpop.f32.mrb[0].mxu0
    %2179 = vdwg.mxu0
    %2180 = vrot.lane.b32.xlu0 %v1766, 112
    %v2181 = vpop.permute.xlu0 %2180
    %2182 = vrot.lane.b32.xlu0 %v1766, 80
    %v2183 = vpop.permute.xlu0 %2182
    %v2184 = vsel %vm548, %v2181, 0
    %v2186 = vsel %vm548, %v2183, 0
    %2188 = vmatprep.subr.mxu0 0.0
    %2189 = vmatpush1.xpose.msra.mxu0 %v2186
    %2190 = vmatprep.subr.mxu0 0.0
    %2191 = vmatpush1.xpose.msra.mxu0 0.0
    %2192 = vmatprep.subr.mxu0 0.0
    %2193 = vmatpush1.xpose.msra.mxu0 0.0
    %2194 = vmatprep.subr.mxu0 0.0
    %2195 = vmatpush1.xpose.msra.mxu0 0.0
    %2196 = vmatprep.subr.mxu0 0.0
    %2197 = vmatpush1.xpose.msra.mxu0 0.0
    %2198 = vmatprep.subr.mxu0 0.0
    %2199 = vmatpush1.xpose.msra.mxu0 0.0
    %2200 = vmatprep.subr.mxu0 0.0
    %2201 = vmatpush1.xpose.msra.mxu0 0.0
    %2202 = vmatprep.subr.mxu0 0.0
    %2203 = vmatpush1.xpose.msra.mxu0 0.0
    %2204 = vmatprep.subr.mxu0 0.0
    %2205 = vmatpush1.xpose.msra.mxu0 0.0
    %2206 = vmatprep.subr.mxu0 0.0
    %2207 = vmatpush1.xpose.msra.mxu0 0.0
    %2208 = vmatprep.subr.mxu0 0.0
    %2209 = vmatpush1.xpose.msra.mxu0 0.0
    %2210 = vmatprep.subr.mxu0 0.0
    %2211 = vmatpush1.xpose.msra.mxu0 0.0
    %2212 = vmatprep.subr.mxu0 0.0
    %2213 = vmatpush1.xpose.msra.mxu0 0.0
    %2214 = vmatprep.subr.mxu0 0.0
    %2215 = vmatpush1.xpose.msra.mxu0 0.0
    %2216 = vmatprep.subr.mxu0 0.0
    %2217 = vmatpush1.xpose.msra.mxu0 0.0
    %2218 = vmatprep.subr.mxu0 0.0
    %2219 = vmatpush1.xpose.msra.mxu0 0.0
    %2220 = vmatprep.subr.mxu0 0.0
    %2221 = vmatpush1.xpose.msra.mxu0 0.0
    %2222 = vmatprep.subr.mxu0 0.0
    %2223 = vmatpush1.xpose.msra.mxu0 0.0
    %2224 = vmatprep.subr.mxu0 0.0
    %2225 = vmatpush1.xpose.msra.mxu0 0.0
    %2226 = vmatprep.subr.mxu0 0.0
    %2227 = vmatpush1.xpose.msra.mxu0 0.0
    %2228 = vmatprep.subr.mxu0 0.0
    %2229 = vmatpush1.xpose.msra.mxu0 0.0
    %2230 = vmatprep.subr.mxu0 0.0
    %2231 = vmatpush1.xpose.msra.mxu0 0.0
    %2232 = vmatprep.subr.mxu0 0.0
    %2233 = vmatpush1.xpose.msra.mxu0 0.0
    %2234 = vmatprep.subr.mxu0 0.0
    %2235 = vmatpush1.xpose.msra.mxu0 0.0
    %2236 = vmatprep.subr.mxu0 0.0
    %2237 = vmatpush1.xpose.msra.mxu0 0.0
    %2238 = vmatprep.subr.mxu0 0.0
    %2239 = vmatpush1.xpose.msra.mxu0 0.0
    %2240 = vmatprep.subr.mxu0 0.0
    %2241 = vmatpush1.xpose.msra.mxu0 0.0
    %2242 = vmatprep.subr.mxu0 0.0
    %2243 = vmatpush1.xpose.msra.mxu0 0.0
    %2244 = vmatprep.subr.mxu0 0.0
    %2245 = vmatpush1.xpose.msra.mxu0 0.0
    %2246 = vmatprep.subr.mxu0 0.0
    %2247 = vmatpush1.xpose.msra.mxu0 0.0
    %2248 = vmatprep.subr.mxu0 0.0
    %2249 = vmatpush1.xpose.msra.mxu0 0.0
    %2250 = vmatprep.subr.mxu0 0.0
    %2251 = vmatpush1.xpose.msra.mxu0 0.0
    %2252 = vmatprep.mubr.f32.mxu0 0.0
    %2253 = vmatmul.mubr.f32.gmra.mrb[0].mxu0 %v2184
    %v2254 = vpop.f32.mrb[0].mxu0
    %v2255 = vadd.f32 %v542, %v2254
    %v2256 = vpop.f32.mrb[0].mxu0
    %2257 = vdwg.mxu0
    %v2258 = vsel %vm700, %v2177, -inf
    %2259 = vmax.xlane.f32.xlu0 %v2258
    %v2260 = vpop.xlane.xlu0 %2259
    %v2261 = vsel %vm700, %v2255, -inf
    %2262 = vmax.xlane.f32.xlu0 %v2261
    %v2263 = vpop.xlane.xlu0 %2262
    %v2264 = vsub.f32 %v2177, %v2260
    %v2265 = vsub.f32 %v2255, %v2263
    %v2266 = vmul.f32 %v2264, 1.442695
    %v2267 = vpow.pop %v2266
    %v2268 = vmul.f32 %v2265, 1.442695
    %v2269 = vpow.pop %v2268
    %v2270 = vsel %vm700, %v2267, 0.0
    %2271 = vadd.xlane.f32.xlu0 %v2270
    %v2272 = vpop.xlane.xlu0 %2271
    %v2273 = vsel %vm700, %v2269, 0.0
    %2274 = vadd.xlane.f32.xlu0 %v2273
    %v2275 = vpop.xlane.xlu0 %2274
    %v2276 = vrcp.pop %v2272
    %v2277 = vmul.f32 %v2267, %v2276
    %v2278 = vrcp.pop %v2275
    %v2279 = vmul.f32 %v2269, %v2278
    %2280 = vrot.lane.b32.xlu0 %v1761, 48
    %v2281 = vpop.permute.xlu0 %2280
    %v2284 = vsel %vm700, %v2277, 0
    %2286 = vmatprep.subr.mxu0 0.0
    %2287 = vmatpush1.msra.mxu0 %v2281
    %2288 = vmatprep.subr.mxu0 0.0
    %2289 = vmatpush1.msra.mxu0 0.0
    %2290 = vmatprep.subr.mxu0 0.0
    %2291 = vmatpush1.msra.mxu0 0.0
    %2292 = vmatprep.subr.mxu0 0.0
    %2293 = vmatpush1.msra.mxu0 0.0
    %2294 = vmatprep.subr.mxu0 0.0
    %2295 = vmatpush1.msra.mxu0 0.0
    %2296 = vmatprep.subr.mxu0 0.0
    %2297 = vmatpush1.msra.mxu0 0.0
    %2298 = vmatprep.subr.mxu0 0.0
    %2299 = vmatpush1.msra.mxu0 0.0
    %2300 = vmatprep.subr.mxu0 0.0
    %2301 = vmatpush1.msra.mxu0 0.0
    %2302 = vmatprep.subr.mxu0 0.0
    %2303 = vmatpush1.msra.mxu0 0.0
    %2304 = vmatprep.subr.mxu0 0.0
    %2305 = vmatpush1.msra.mxu0 0.0
    %2306 = vmatprep.subr.mxu0 0.0
    %2307 = vmatpush1.msra.mxu0 0.0
    %2308 = vmatprep.subr.mxu0 0.0
    %2309 = vmatpush1.msra.mxu0 0.0
    %2310 = vmatprep.subr.mxu0 0.0
    %2311 = vmatpush1.msra.mxu0 0.0
    %2312 = vmatprep.subr.mxu0 0.0
    %2313 = vmatpush1.msra.mxu0 0.0
    %2314 = vmatprep.subr.mxu0 0.0
    %2315 = vmatpush1.msra.mxu0 0.0
    %2316 = vmatprep.subr.mxu0 0.0
    %2317 = vmatpush1.msra.mxu0 0.0
    %2318 = vmatprep.subr.mxu0 0.0
    %2319 = vmatpush1.msra.mxu0 0.0
    %2320 = vmatprep.subr.mxu0 0.0
    %2321 = vmatpush1.msra.mxu0 0.0
    %2322 = vmatprep.subr.mxu0 0.0
    %2323 = vmatpush1.msra.mxu0 0.0
    %2324 = vmatprep.subr.mxu0 0.0
    %2325 = vmatpush1.msra.mxu0 0.0
    %2326 = vmatprep.subr.mxu0 0.0
    %2327 = vmatpush1.msra.mxu0 0.0
    %2328 = vmatprep.subr.mxu0 0.0
    %2329 = vmatpush1.msra.mxu0 0.0
    %2330 = vmatprep.subr.mxu0 0.0
    %2331 = vmatpush1.msra.mxu0 0.0
    %2332 = vmatprep.subr.mxu0 0.0
    %2333 = vmatpush1.msra.mxu0 0.0
    %2334 = vmatprep.subr.mxu0 0.0
    %2335 = vmatpush1.msra.mxu0 0.0
    %2336 = vmatprep.subr.mxu0 0.0
    %2337 = vmatpush1.msra.mxu0 0.0
    %2338 = vmatprep.subr.mxu0 0.0
    %2339 = vmatpush1.msra.mxu0 0.0
    %2340 = vmatprep.subr.mxu0 0.0
    %2341 = vmatpush1.msra.mxu0 0.0
    %2342 = vmatprep.subr.mxu0 0.0
    %2343 = vmatpush1.msra.mxu0 0.0
    %2344 = vmatprep.subr.mxu0 0.0
    %2345 = vmatpush1.msra.mxu0 0.0
    %2346 = vmatprep.subr.mxu0 0.0
    %2347 = vmatpush1.msra.mxu0 0.0
    %2348 = vmatprep.subr.mxu0 0.0
    %2349 = vmatpush1.msra.mxu0 0.0
    %2350 = vmatprep.mubr.f32.mxu0 0.0
    %2351 = vmatmul.mubr.f32.gmra.mrb[0].mxu0 %v2284
    %v2352 = vpop.f32.mrb[0].mxu0
    %v2353 = vadd.f32 0.0, %v2352
    %v2354 = vpop.f32.mrb[0].mxu0
    %2355 = vdwg.mxu0
    %2356 = vrot.lane.b32.xlu0 %v1766, 48
    %v2357 = vpop.permute.xlu0 %2356
    %v2360 = vsel %vm700, %v2279, 0
    %2362 = vmatprep.subr.mxu0 0.0
    %2363 = vmatpush1.msra.mxu0 %v2357
    %2364 = vmatprep.subr.mxu0 0.0
    %2365 = vmatpush1.msra.mxu0 0.0
    %2366 = vmatprep.subr.mxu0 0.0
    %2367 = vmatpush1.msra.mxu0 0.0
    %2368 = vmatprep.subr.mxu0 0.0
    %2369 = vmatpush1.msra.mxu0 0.0
    %2370 = vmatprep.subr.mxu0 0.0
    %2371 = vmatpush1.msra.mxu0 0.0
    %2372 = vmatprep.subr.mxu0 0.0
    %2373 = vmatpush1.msra.mxu0 0.0
    %2374 = vmatprep.subr.mxu0 0.0
    %2375 = vmatpush1.msra.mxu0 0.0
    %2376 = vmatprep.subr.mxu0 0.0
    %2377 = vmatpush1.msra.mxu0 0.0
    %2378 = vmatprep.subr.mxu0 0.0
    %2379 = vmatpush1.msra.mxu0 0.0
    %2380 = vmatprep.subr.mxu0 0.0
    %2381 = vmatpush1.msra.mxu0 0.0
    %2382 = vmatprep.subr.mxu0 0.0
    %2383 = vmatpush1.msra.mxu0 0.0
    %2384 = vmatprep.subr.mxu0 0.0
    %2385 = vmatpush1.msra.mxu0 0.0
    %2386 = vmatprep.subr.mxu0 0.0
    %2387 = vmatpush1.msra.mxu0 0.0
    %2388 = vmatprep.subr.mxu0 0.0
    %2389 = vmatpush1.msra.mxu0 0.0
    %2390 = vmatprep.subr.mxu0 0.0
    %2391 = vmatpush1.msra.mxu0 0.0
    %2392 = vmatprep.subr.mxu0 0.0
    %2393 = vmatpush1.msra.mxu0 0.0
    %2394 = vmatprep.subr.mxu0 0.0
    %2395 = vmatpush1.msra.mxu0 0.0
    %2396 = vmatprep.subr.mxu0 0.0
    %2397 = vmatpush1.msra.mxu0 0.0
    %2398 = vmatprep.subr.mxu0 0.0
    %2399 = vmatpush1.msra.mxu0 0.0
    %2400 = vmatprep.subr.mxu0 0.0
    %2401 = vmatpush1.msra.mxu0 0.0
    %2402 = vmatprep.subr.mxu0 0.0
    %2403 = vmatpush1.msra.mxu0 0.0
    %2404 = vmatprep.subr.mxu0 0.0
    %2405 = vmatpush1.msra.mxu0 0.0
    %2406 = vmatprep.subr.mxu0 0.0
    %2407 = vmatpush1.msra.mxu0 0.0
    %2408 = vmatprep.subr.mxu0 0.0
    %2409 = vmatpush1.msra.mxu0 0.0
    %2410 = vmatprep.subr.mxu0 0.0
    %2411 = vmatpush1.msra.mxu0 0.0
    %2412 = vmatprep.subr.mxu0 0.0
    %2413 = vmatpush1.msra.mxu0 0.0
    %2414 = vmatprep.subr.mxu0 0.0
    %2415 = vmatpush1.msra.mxu0 0.0
    %2416 = vmatprep.subr.mxu0 0.0
    %2417 = vmatpush1.msra.mxu0 0.0
    %2418 = vmatprep.subr.mxu0 0.0
    %2419 = vmatpush1.msra.mxu0 0.0
    %2420 = vmatprep.subr.mxu0 0.0
    %2421 = vmatpush1.msra.mxu0 0.0
    %2422 = vmatprep.subr.mxu0 0.0
    %2423 = vmatpush1.msra.mxu0 0.0
    %2424 = vmatprep.subr.mxu0 0.0
    %2425 = vmatpush1.msra.mxu0 0.0
    %2426 = vmatprep.mubr.f32.mxu0 0.0
    %2427 = vmatmul.mubr.f32.gmra.mrb[0].mxu0 %v2360
    %v2428 = vpop.f32.mrb[0].mxu0
    %v2429 = vadd.f32 0.0, %v2428
    %v2430 = vpop.f32.mrb[0].mxu0
    %2431 = vdwg.mxu0
    %v2433 = vsel %vm548, %v2353, 0
    %v2436 = vsel %vm548, %v2429, 0
    %2438 = vmatprep.subr.mxu0 0.0
    %2439 = vmatpush1.msra.mxu0 %v1772
    %2440 = vmatprep.subr.mxu0 0.0
    %2441 = vmatpush1.msra.mxu0 %v1773
    %2442 = vmatprep.subr.mxu0 0.0
    %2443 = vmatpush1.msra.mxu0 0.0
    %2444 = vmatprep.subr.mxu0 0.0
    %2445 = vmatpush1.msra.mxu0 0.0
    %2446 = vmatprep.subr.mxu0 0.0
    %2447 = vmatpush1.msra.mxu0 0.0
    %2448 = vmatprep.subr.mxu0 0.0
    %2449 = vmatpush1.msra.mxu0 0.0
    %2450 = vmatprep.subr.mxu0 0.0
    %2451 = vmatpush1.msra.mxu0 0.0
    %2452 = vmatprep.subr.mxu0 0.0
    %2453 = vmatpush1.msra.mxu0 0.0
    %2454 = vmatprep.subr.mxu0 0.0
    %2455 = vmatpush1.msra.mxu0 0.0
    %2456 = vmatprep.subr.mxu0 0.0
    %2457 = vmatpush1.msra.mxu0 0.0
    %2458 = vmatprep.subr.mxu0 0.0
    %2459 = vmatpush1.msra.mxu0 0.0
    %2460 = vmatprep.subr.mxu0 0.0
    %2461 = vmatpush1.msra.mxu0 0.0
    %2462 = vmatprep.subr.mxu0 0.0
    %2463 = vmatpush1.msra.mxu0 0.0
    %2464 = vmatprep.subr.mxu0 0.0
    %2465 = vmatpush1.msra.mxu0 0.0
    %2466 = vmatprep.subr.mxu0 0.0
    %2467 = vmatpush1.msra.mxu0 0.0
    %2468 = vmatprep.subr.mxu0 0.0
    %2469 = vmatpush1.msra.mxu0 0.0
    %2470 = vmatprep.subr.mxu0 0.0
    %2471 = vmatpush1.msra.mxu0 0.0
    %2472 = vmatprep.subr.mxu0 0.0
    %2473 = vmatpush1.msra.mxu0 0.0
    %2474 = vmatprep.subr.mxu0 0.0
    %2475 = vmatpush1.msra.mxu0 0.0
    %2476 = vmatprep.subr.mxu0 0.0
    %2477 = vmatpush1.msra.mxu0 0.0
    %2478 = vmatprep.subr.mxu0 0.0
    %2479 = vmatpush1.msra.mxu0 0.0
    %2480 = vmatprep.subr.mxu0 0.0
    %2481 = vmatpush1.msra.mxu0 0.0
    %2482 = vmatprep.subr.mxu0 0.0
    %2483 = vmatpush1.msra.mxu0 0.0
    %2484 = vmatprep.subr.mxu0 0.0
    %2485 = vmatpush1.msra.mxu0 0.0
    %2486 = vmatprep.subr.mxu0 0.0
    %2487 = vmatpush1.msra.mxu0 0.0
    %2488 = vmatprep.subr.mxu0 0.0
    %2489 = vmatpush1.msra.mxu0 0.0
    %2490 = vmatprep.subr.mxu0 0.0
    %2491 = vmatpush1.msra.mxu0 0.0
    %2492 = vmatprep.subr.mxu0 0.0
    %2493 = vmatpush1.msra.mxu0 0.0
    %2494 = vmatprep.subr.mxu0 0.0
    %2495 = vmatpush1.msra.mxu0 0.0
    %2496 = vmatprep.subr.mxu0 0.0
    %2497 = vmatpush1.msra.mxu0 0.0
    %2498 = vmatprep.subr.mxu0 0.0
    %2499 = vmatpush1.msra.mxu0 0.0
    %2500 = vmatprep.subr.mxu0 0.0
    %2501 = vmatpush1.msra.mxu0 0.0
    %2502 = vmatprep.mubr.f32.mxu0 0.0
    %2503 = vmatmul.mubr.f32.gmra.mrb[0].mxu0 %v2433
    %v2504 = vpop.f32.mrb[0].mxu0
    %v2505 = vadd.f32 0.0, %v2504
    %v2506 = vpop.f32.mrb[0].mxu0
    %2507 = vmatprep.mubr.f32.mxu0 0.0
    %2508 = vmatmul.mubr.f32.gmra.mrb[0].mxu0 %v2436
    %v2509 = vpop.f32.mrb[0].mxu0
    %v2510 = vadd.f32 0.0, %v2509
    %v2511 = vpop.f32.mrb[0].mxu0
    %2512 = vdwg.mxu0
    %v2514 = vsel %vm548, %v2023, 0
    %v2517 = vsel %vm548, %v2099, 0
    %2519 = vmatprep.subr.mxu0 0.0
    %2520 = vmatpush1.msra.mxu0 %v1770
    %2521 = vmatprep.subr.mxu0 0.0
    %2522 = vmatpush1.msra.mxu0 %v1771
    %2523 = vmatprep.subr.mxu0 0.0
    %2524 = vmatpush1.msra.mxu0 0.0
    %2525 = vmatprep.subr.mxu0 0.0
    %2526 = vmatpush1.msra.mxu0 0.0
    %2527 = vmatprep.subr.mxu0 0.0
    %2528 = vmatpush1.msra.mxu0 0.0
    %2529 = vmatprep.subr.mxu0 0.0
    %2530 = vmatpush1.msra.mxu0 0.0
    %2531 = vmatprep.subr.mxu0 0.0
    %2532 = vmatpush1.msra.mxu0 0.0
    %2533 = vmatprep.subr.mxu0 0.0
    %2534 = vmatpush1.msra.mxu0 0.0
    %2535 = vmatprep.subr.mxu0 0.0
    %2536 = vmatpush1.msra.mxu0 0.0
    %2537 = vmatprep.subr.mxu0 0.0
    %2538 = vmatpush1.msra.mxu0 0.0
    %2539 = vmatprep.subr.mxu0 0.0
    %2540 = vmatpush1.msra.mxu0 0.0
    %2541 = vmatprep.subr.mxu0 0.0
    %2542 = vmatpush1.msra.mxu0 0.0
    %2543 = vmatprep.subr.mxu0 0.0
    %2544 = vmatpush1.msra.mxu0 0.0
    %2545 = vmatprep.subr.mxu0 0.0
    %2546 = vmatpush1.msra.mxu0 0.0
    %2547 = vmatprep.subr.mxu0 0.0
    %2548 = vmatpush1.msra.mxu0 0.0
    %2549 = vmatprep.subr.mxu0 0.0
    %2550 = vmatpush1.msra.mxu0 0.0
    %2551 = vmatprep.subr.mxu0 0.0
    %2552 = vmatpush1.msra.mxu0 0.0
    %2553 = vmatprep.subr.mxu0 0.0
    %2554 = vmatpush1.msra.mxu0 0.0
    %2555 = vmatprep.subr.mxu0 0.0
    %2556 = vmatpush1.msra.mxu0 0.0
    %2557 = vmatprep.subr.mxu0 0.0
    %2558 = vmatpush1.msra.mxu0 0.0
    %2559 = vmatprep.subr.mxu0 0.0
    %2560 = vmatpush1.msra.mxu0 0.0
    %2561 = vmatprep.subr.mxu0 0.0
    %2562 = vmatpush1.msra.mxu0 0.0
    %2563 = vmatprep.subr.mxu0 0.0
    %2564 = vmatpush1.msra.mxu0 0.0
    %2565 = vmatprep.subr.mxu0 0.0
    %2566 = vmatpush1.msra.mxu0 0.0
    %2567 = vmatprep.subr.mxu0 0.0
    %2568 = vmatpush1.msra.mxu0 0.0
    %2569 = vmatprep.subr.mxu0 0.0
    %2570 = vmatpush1.msra.mxu0 0.0
    %2571 = vmatprep.subr.mxu0 0.0
    %2572 = vmatpush1.msra.mxu0 0.0
    %2573 = vmatprep.subr.mxu0 0.0
    %2574 = vmatpush1.msra.mxu0 0.0
    %2575 = vmatprep.subr.mxu0 0.0
    %2576 = vmatpush1.msra.mxu0 0.0
    %2577 = vmatprep.subr.mxu0 0.0
    %2578 = vmatpush1.msra.mxu0 0.0
    %2579 = vmatprep.subr.mxu0 0.0
    %2580 = vmatpush1.msra.mxu0 0.0
    %2581 = vmatprep.subr.mxu0 0.0
    %2582 = vmatpush1.msra.mxu0 0.0
    %2583 = vmatprep.mubr.f32.mxu0 0.0
    %2584 = vmatmul.mubr.f32.gmra.mrb[0].mxu0 %v2514
    %v2585 = vpop.f32.mrb[0].mxu0
    %v2586 = vadd.f32 %v2505, %v2585
    %v2587 = vpop.f32.mrb[0].mxu0
    %2588 = vmatprep.mubr.f32.mxu0 0.0
    %2589 = vmatmul.mubr.f32.gmra.mrb[0].mxu0 %v2517
    %v2590 = vpop.f32.mrb[0].mxu0
    %v2591 = vadd.f32 %v2510, %v2590
    %v2592 = vpop.f32.mrb[0].mxu0
    %2593 = vdwg.mxu0
    %s2594 = scalar_lea.vmem %s10, 1
    %v2595 = vld [vmem:[%s2594] sm:$0x1]
    %v2597 = vlaneseq
    %v2598 = vshrl.u32 %v2597, 7
    %v2599 = vsub.s32 0, %v2598
    %v2600 = vrot.slane %v2595, %v2599
    %v2602 = vadd.f32 %v2586, %v2600
    %v2603 = vadd.f32 %v2591, %v2600
    %v2604 = vadd.f32 %v1673, %v2602
    %v2605 = vadd.f32 %v1674, %v2603
    %s2606 = scalar_lea.vmem [#allocation5], 1
    %v2607 = vld [vmem:[%s2606] sm:$0x1]
    %s2608 = scalar_lea.vmem [#allocation7], 1
    %v2609 = vld [vmem:[%s2608] sm:$0x1]
    %v2610 = vsel %vm368, %v2604, 0.0
    %2611 = vadd.xlane.f32.xlu0 %v2610
    %v2612 = vpop.xlane.xlu0 %2611
    %v2613 = vsel %vm368, %v2605, 0.0
    %2614 = vadd.xlane.f32.xlu0 %v2613
    %v2615 = vpop.xlane.xlu0 %2614
    %v2616 = vmul.f32 %v2612, %v375
    %v2617 = vmul.f32 %v2615, %v375
    %v2618 = vsub.f32 %v2604, %v2616
    %v2619 = vsub.f32 %v2605, %v2617
    %v2620 = vmul.f32 %v2618, %v2618
    %v2621 = vmul.f32 %v2619, %v2619
    %v2622 = vsel %vm368, %v2620, 0.0
    %2623 = vadd.xlane.f32.xlu0 %v2622
    %v2624 = vpop.xlane.xlu0 %2623
    %v2625 = vsel %vm368, %v2621, 0.0
    %2626 = vadd.xlane.f32.xlu0 %v2625
    %v2627 = vpop.xlane.xlu0 %2626
    %v2628 = vmul.f32 %v2624, %v375
    %v2629 = vmul.f32 %v2627, %v375
    %v2630 = vadd.f32 %v2628, 1e-12
    %v2631 = vadd.f32 %v2629, 1e-12
    %v2632 = vrsqrt.pop %v2630
    %v2633 = vrsqrt.pop %v2631
    %v2634 = vmul.f32 %v2618, %v2632
    %v2635 = vmul.f32 %v2619, %v2633
    %v2637 = vlaneseq
    %v2638 = vshrl.u32 %v2637, 7
    %v2639 = vsub.s32 0, %v2638
    %v2640 = vrot.slane %v2607, %v2639
    %v2642 = vmul.f32 %v2634, %v2640
    %v2643 = vmul.f32 %v2635, %v2640
    %v2645 = vlaneseq
    %v2646 = vshrl.u32 %v2645, 7
    %v2647 = vsub.s32 0, %v2646
    %v2648 = vrot.slane %v2609, %v2647
    %v2650 = vadd.f32 %v2642, %v2648
    %v2651 = vadd.f32 %v2643, %v2648
    %s2652 = scalar_lea.vmem [#allocation8], 32
    %v2653 = vld [vmem:[%s2652] sm:$0xff]
    %v2654 = vld [vmem:[%s2652 + $0x8] sm:$0xff]
    %v2655 = vld [vmem:[%s2652 + $0x10] sm:$0xff]
    %v2656 = vld [vmem:[%s2652 + $0x18] sm:$0xff]
    %s2657 = scalar_lea.vmem [#allocation10], 1
    %v2658 = vld [vmem:[%s2657] sm:$0x1]
    %v2660 = vlaneseq
    %v2661 = vshrl.u32 %v2660, 7
    %v2662 = vsub.s32 0, %v2661
    %v2663 = vrot.slane %v2658, %v2662
    %v2666 = vsel %vm368, %v2650, 0
    %v2669 = vsel %vm368, %v2651, 0
    %2671 = vmatprep.subr.mxu0 0.0
    %2672 = vmatpush1.msra.mxu0 %v2653
    %2673 = vmatprep.subr.mxu0 0.0
    %2674 = vmatpush1.msra.mxu0 %v2654
    %2675 = vmatprep.subr.mxu0 0.0
    %2676 = vmatpush1.msra.mxu0 %v2655
    %2677 = vmatprep.subr.mxu0 0.0
    %2678 = vmatpush1.msra.mxu0 %v2656
    %2679 = vmatprep.subr.mxu0 0.0
    %2680 = vmatpush1.msra.mxu0 0.0
    %2681 = vmatprep.subr.mxu0 0.0
    %2682 = vmatpush1.msra.mxu0 0.0
    %2683 = vmatprep.subr.mxu0 0.0
    %2684 = vmatpush1.msra.mxu0 0.0
    %2685 = vmatprep.subr.mxu0 0.0
    %2686 = vmatpush1.msra.mxu0 0.0
    %2687 = vmatprep.subr.mxu0 0.0
    %2688 = vmatpush1.msra.mxu0 0.0
    %2689 = vmatprep.subr.mxu0 0.0
    %2690 = vmatpush1.msra.mxu0 0.0
    %2691 = vmatprep.subr.mxu0 0.0
    %2692 = vmatpush1.msra.mxu0 0.0
    %2693 = vmatprep.subr.mxu0 0.0
    %2694 = vmatpush1.msra.mxu0 0.0
    %2695 = vmatprep.subr.mxu0 0.0
    %2696 = vmatpush1.msra.mxu0 0.0
    %2697 = vmatprep.subr.mxu0 0.0
    %2698 = vmatpush1.msra.mxu0 0.0
    %2699 = vmatprep.subr.mxu0 0.0
    %2700 = vmatpush1.msra.mxu0 0.0
    %2701 = vmatprep.subr.mxu0 0.0
    %2702 = vmatpush1.msra.mxu0 0.0
    %2703 = vmatprep.subr.mxu0 0.0
    %2704 = vmatpush1.msra.mxu0 0.0
    %2705 = vmatprep.subr.mxu0 0.0
    %2706 = vmatpush1.msra.mxu0 0.0
    %2707 = vmatprep.subr.mxu0 0.0
    %2708 = vmatpush1.msra.mxu0 0.0
    %2709 = vmatprep.subr.mxu0 0.0
    %2710 = vmatpush1.msra.mxu0 0.0
    %2711 = vmatprep.subr.mxu0 0.0
    %2712 = vmatpush1.msra.mxu0 0.0
    %2713 = vmatprep.subr.mxu0 0.0
    %2714 = vmatpush1.msra.mxu0 0.0
    %2715 = vmatprep.subr.mxu0 0.0
    %2716 = vmatpush1.msra.mxu0 0.0
    %2717 = vmatprep.subr.mxu0 0.0
    %2718 = vmatpush1.msra.mxu0 0.0
    %2719 = vmatprep.subr.mxu0 0.0
    %2720 = vmatpush1.msra.mxu0 0.0
    %2721 = vmatprep.subr.mxu0 0.0
    %2722 = vmatpush1.msra.mxu0 0.0
    %2723 = vmatprep.subr.mxu0 0.0
    %2724 = vmatpush1.msra.mxu0 0.0
    %2725 = vmatprep.subr.mxu0 0.0
    %2726 = vmatpush1.msra.mxu0 0.0
    %2727 = vmatprep.subr.mxu0 0.0
    %2728 = vmatpush1.msra.mxu0 0.0
    %2729 = vmatprep.subr.mxu0 0.0
    %2730 = vmatpush1.msra.mxu0 0.0
    %2731 = vmatprep.subr.mxu0 0.0
    %2732 = vmatpush1.msra.mxu0 0.0
    %2733 = vmatprep.subr.mxu0 0.0
    %2734 = vmatpush1.msra.mxu0 0.0
    %2735 = vmatprep.mubr.f32.mxu0 0.0
    %2736 = vmatmul.mubr.f32.gmra.mrb[0].mxu0 %v2666
    %v2737 = vpop.f32.mrb[0].mxu0
    %v2738 = vadd.f32 %v2663, %v2737
    %v2739 = vpop.f32.mrb[0].mxu0
    %2740 = vmatprep.mubr.f32.mxu0 0.0
    %2741 = vmatmul.mubr.f32.gmra.mrb[0].mxu0 %v2669
    %v2742 = vpop.f32.mrb[0].mxu0
    %v2743 = vadd.f32 %v2663, %v2742
    %v2744 = vpop.f32.mrb[0].mxu0
    %2745 = vdwg.mxu0
    %v2746 = vmul.f32 %v2738, 0.5
    %v2747 = vmul.f32 %v2743, 0.5
    %v2748 = vmul.f32 %v2738, 0.044715
    %v2749 = vmul.f32 %v2743, 0.044715
    %v2750 = vmul.f32 %v2748, %v2738
    %v2751 = vmul.f32 %v2749, %v2743
    %v2752 = vmul.f32 %v2750, %v2738
    %v2753 = vmul.f32 %v2751, %v2743
    %v2754 = vadd.f32 %v2738, %v2752
    %v2755 = vadd.f32 %v2743, %v2753
    %v2756 = vmul.f32 %v2754, 0.7978846
    %v2757 = vmul.f32 %v2755, 0.7978846
    %v2758 = vtanh.pop %v2756
    %v2759 = vtanh.pop %v2757
    %v2760 = vadd.f32 %v2758, 1.0
    %v2761 = vadd.f32 %v2759, 1.0
    %v2762 = vmul.f32 %v2746, %v2760
    %v2763 = vmul.f32 %v2747, %v2761
    %s2764 = scalar_lea.vmem %s15, 64
    %v2765 = vld [vmem:[%s2764] sm:$0xff]
    %v2766 = vld [vmem:[%s2764 + $0x8] sm:$0xff]
    %v2767 = vld [vmem:[%s2764 + $0x10] sm:$0xff]
    %v2768 = vld [vmem:[%s2764 + $0x18] sm:$0xff]
    %v2769 = vld [vmem:[%s2764 + $0x20] sm:$0xff]
    %v2770 = vld [vmem:[%s2764 + $0x28] sm:$0xff]
    %v2771 = vld [vmem:[%s2764 + $0x30] sm:$0xff]
    %v2772 = vld [vmem:[%s2764 + $0x38] sm:$0xff]
    %s2773 = scalar_lea.vmem [#allocation11], 1
    %v2774 = vld [vmem:[%s2773] sm:$0x1]
    %v2776 = vlaneseq
    %v2777 = vshrl.u32 %v2776, 7
    %v2778 = vsub.s32 0, %v2777
    %v2779 = vrot.slane %v2774, %v2778
    %v2782 = vsel %vm1547, %v2762, 0
    %v2785 = vsel %vm1547, %v2763, 0
    %2787 = vmatprep.subr.mxu0 0.0
    %2788 = vmatpush1.msra.mxu0 %v2765
    %2789 = vmatprep.subr.mxu0 0.0
    %2790 = vmatpush1.msra.mxu0 %v2766
    %2791 = vmatprep.subr.mxu0 0.0
    %2792 = vmatpush1.msra.mxu0 %v2767
    %2793 = vmatprep.subr.mxu0 0.0
    %2794 = vmatpush1.msra.mxu0 %v2768
    %2795 = vmatprep.subr.mxu0 0.0
    %2796 = vmatpush1.msra.mxu0 %v2769
    %2797 = vmatprep.subr.mxu0 0.0
    %2798 = vmatpush1.msra.mxu0 %v2770
    %2799 = vmatprep.subr.mxu0 0.0
    %2800 = vmatpush1.msra.mxu0 %v2771
    %2801 = vmatprep.subr.mxu0 0.0
    %2802 = vmatpush1.msra.mxu0 %v2772
    %2803 = vmatprep.subr.mxu0 0.0
    %2804 = vmatpush1.msra.mxu0 0.0
    %2805 = vmatprep.subr.mxu0 0.0
    %2806 = vmatpush1.msra.mxu0 0.0
    %2807 = vmatprep.subr.mxu0 0.0
    %2808 = vmatpush1.msra.mxu0 0.0
    %2809 = vmatprep.subr.mxu0 0.0
    %2810 = vmatpush1.msra.mxu0 0.0
    %2811 = vmatprep.subr.mxu0 0.0
    %2812 = vmatpush1.msra.mxu0 0.0
    %2813 = vmatprep.subr.mxu0 0.0
    %2814 = vmatpush1.msra.mxu0 0.0
    %2815 = vmatprep.subr.mxu0 0.0
    %2816 = vmatpush1.msra.mxu0 0.0
    %2817 = vmatprep.subr.mxu0 0.0
    %2818 = vmatpush1.msra.mxu0 0.0
    %2819 = vmatprep.subr.mxu0 0.0
    %2820 = vmatpush1.msra.mxu0 0.0
    %2821 = vmatprep.subr.mxu0 0.0
    %2822 = vmatpush1.msra.mxu0 0.0
    %2823 = vmatprep.subr.mxu0 0.0
    %2824 = vmatpush1.msra.mxu0 0.0
    %2825 = vmatprep.subr.mxu0 0.0
    %2826 = vmatpush1.msra.mxu0 0.0
    %2827 = vmatprep.subr.mxu0 0.0
    %2828 = vmatpush1.msra.mxu0 0.0
    %2829 = vmatprep.subr.mxu0 0.0
    %2830 = vmatpush1.msra.mxu0 0.0
    %2831 = vmatprep.subr.mxu0 0.0
    %2832 = vmatpush1.msra.mxu0 0.0
    %2833 = vmatprep.subr.mxu0 0.0
    %2834 = vmatpush1.msra.mxu0 0.0
    %2835 = vmatprep.subr.mxu0 0.0
    %2836 = vmatpush1.msra.mxu0 0.0
    %2837 = vmatprep.subr.mxu0 0.0
    %2838 = vmatpush1.msra.mxu0 0.0
    %2839 = vmatprep.subr.mxu0 0.0
    %2840 = vmatpush1.msra.mxu0 0.0
    %2841 = vmatprep.subr.mxu0 0.0
    %2842 = vmatpush1.msra.mxu0 0.0
    %2843 = vmatprep.subr.mxu0 0.0
    %2844 = vmatpush1.msra.mxu0 0.0
    %2845 = vmatprep.subr.mxu0 0.0
    %2846 = vmatpush1.msra.mxu0 0.0
    %2847 = vmatprep.subr.mxu0 0.0
    %2848 = vmatpush1.msra.mxu0 0.0
    %2849 = vmatprep.subr.mxu0 0.0
    %2850 = vmatpush1.msra.mxu0 0.0
    %2851 = vmatprep.mubr.f32.mxu0 0.0
    %2852 = vmatmul.mubr.f32.gmra.mrb[0].mxu0 %v2782
    %v2853 = vpop.f32.mrb[0].mxu0
    %v2854 = vadd.f32 %v2779, %v2853
    %v2855 = vpop.f32.mrb[0].mxu0
    %2856 = vmatprep.mubr.f32.mxu0 0.0
    %2857 = vmatmul.mubr.f32.gmra.mrb[0].mxu0 %v2785
    %v2858 = vpop.f32.mrb[0].mxu0
    %v2859 = vadd.f32 %v2779, %v2858
    %v2860 = vpop.f32.mrb[0].mxu0
    %2861 = vdwg.mxu0
    %v2862 = vadd.f32 %v2650, %v2854
    %v2863 = vadd.f32 %v2651, %v2859
    %s2864 = scalar_lea.vmem [#allocation13], 1
    %v2865 = vld [vmem:[%s2864] sm:$0x1]
    %s2866 = scalar_lea.vmem [#allocation14], 1
    %v2867 = vld [vmem:[%s2866] sm:$0x1]
    %v2868 = vsel %vm368, %v2862, 0.0
    %2869 = vadd.xlane.f32.xlu0 %v2868
    %v2870 = vpop.xlane.xlu0 %2869
    %v2871 = vsel %vm368, %v2863, 0.0
    %2872 = vadd.xlane.f32.xlu0 %v2871
    %v2873 = vpop.xlane.xlu0 %2872
    %v2874 = vmul.f32 %v2870, %v375
    %v2875 = vmul.f32 %v2873, %v375
    %v2876 = vsub.f32 %v2862, %v2874
    %v2877 = vsub.f32 %v2863, %v2875
    %v2878 = vmul.f32 %v2876, %v2876
    %v2879 = vmul.f32 %v2877, %v2877
    %v2880 = vsel %vm368, %v2878, 0.0
    %2881 = vadd.xlane.f32.xlu0 %v2880
    %v2882 = vpop.xlane.xlu0 %2881
    %v2883 = vsel %vm368, %v2879, 0.0
    %2884 = vadd.xlane.f32.xlu0 %v2883
    %v2885 = vpop.xlane.xlu0 %2884
    %v2886 = vmul.f32 %v2882, %v375
    %v2887 = vmul.f32 %v2885, %v375
    %v2888 = vadd.f32 %v2886, 1e-12
    %v2889 = vadd.f32 %v2887, 1e-12
    %v2890 = vrsqrt.pop %v2888
    %v2891 = vrsqrt.pop %v2889
    %v2892 = vmul.f32 %v2876, %v2890
    %v2893 = vmul.f32 %v2877, %v2891
    %v2895 = vlaneseq
    %v2896 = vshrl.u32 %v2895, 7
    %v2897 = vsub.s32 0, %v2896
    %v2898 = vrot.slane %v2865, %v2897
    %v2900 = vmul.f32 %v2892, %v2898
    %v2901 = vmul.f32 %v2893, %v2898
    %v2903 = vlaneseq
    %v2904 = vshrl.u32 %v2903, 7
    %v2905 = vsub.s32 0, %v2904
    %v2906 = vrot.slane %v2867, %v2905
    %v2908 = vadd.f32 %v2900, %v2906
    %v2909 = vadd.f32 %v2901, %v2906
    %v2910 = vld [vmem:[#allocation16] sm:$0xff]
    %v2911 = vld [vmem:[#allocation16 + $0x8] sm:$0xff]
    %v2912 = vld [vmem:[#allocation16 + $0x10] sm:$0xff]
    %v2913 = vld [vmem:[#allocation16 + $0x18] sm:$0xff]
    %v2914 = vld [vmem:[#allocation17] sm:$0x1]
    %v2916 = vlaneseq
    %v2917 = vshrl.u32 %v2916, 7
    %v2918 = vsub.s32 0, %v2917
    %v2919 = vrot.slane %v2914, %v2918
    %v2923 = vrot.slane %v2909, 7
    %vm2924 = vcmask 1041409
    %v2925 = vsel %vm2924, %v2923, %v2908
    %v2926 = vsel %vm368, %v2925, 0
    %2928 = vmatprep.subr.mxu0 0.0
    %2929 = vmatpush1.msra.mxu0 %v2910
    %2930 = vmatprep.subr.mxu0 0.0
    %2931 = vmatpush1.msra.mxu0 %v2911
    %2932 = vmatprep.subr.mxu0 0.0
    %2933 = vmatpush1.msra.mxu0 %v2912
    %2934 = vmatprep.subr.mxu0 0.0
    %2935 = vmatpush1.msra.mxu0 %v2913
    %2936 = vmatprep.subr.mxu0 0.0
    %2937 = vmatpush1.msra.mxu0 0.0
    %2938 = vmatprep.subr.mxu0 0.0
    %2939 = vmatpush1.msra.mxu0 0.0
    %2940 = vmatprep.subr.mxu0 0.0
    %2941 = vmatpush1.msra.mxu0 0.0
    %2942 = vmatprep.subr.mxu0 0.0
    %2943 = vmatpush1.msra.mxu0 0.0
    %2944 = vmatprep.subr.mxu0 0.0
    %2945 = vmatpush1.msra.mxu0 0.0
    %2946 = vmatprep.subr.mxu0 0.0
    %2947 = vmatpush1.msra.mxu0 0.0
    %2948 = vmatprep.subr.mxu0 0.0
    %2949 = vmatpush1.msra.mxu0 0.0
    %2950 = vmatprep.subr.mxu0 0.0
    %2951 = vmatpush1.msra.mxu0 0.0
    %2952 = vmatprep.subr.mxu0 0.0
    %2953 = vmatpush1.msra.mxu0 0.0
    %2954 = vmatprep.subr.mxu0 0.0
    %2955 = vmatpush1.msra.mxu0 0.0
    %2956 = vmatprep.subr.mxu0 0.0
    %2957 = vmatpush1.msra.mxu0 0.0
    %2958 = vmatprep.subr.mxu0 0.0
    %2959 = vmatpush1.msra.mxu0 0.0
    %2960 = vmatprep.subr.mxu0 0.0
    %2961 = vmatpush1.msra.mxu0 0.0
    %2962 = vmatprep.subr.mxu0 0.0
    %2963 = vmatpush1.msra.mxu0 0.0
    %2964 = vmatprep.subr.mxu0 0.0
    %2965 = vmatpush1.msra.mxu0 0.0
    %2966 = vmatprep.subr.mxu0 0.0
    %2967 = vmatpush1.msra.mxu0 0.0
    %2968 = vmatprep.subr.mxu0 0.0
    %2969 = vmatpush1.msra.mxu0 0.0
    %2970 = vmatprep.subr.mxu0 0.0
    %2971 = vmatpush1.msra.mxu0 0.0
    %2972 = vmatprep.subr.mxu0 0.0
    %2973 = vmatpush1.msra.mxu0 0.0
    %2974 = vmatprep.subr.mxu0 0.0
    %2975 = vmatpush1.msra.mxu0 0.0
    %2976 = vmatprep.subr.mxu0 0.0
    %2977 = vmatpush1.msra.mxu0 0.0
    %2978 = vmatprep.subr.mxu0 0.0
    %2979 = vmatpush1.msra.mxu0 0.0
    %2980 = vmatprep.subr.mxu0 0.0
    %2981 = vmatpush1.msra.mxu0 0.0
    %2982 = vmatprep.subr.mxu0 0.0
    %2983 = vmatpush1.msra.mxu0 0.0
    %2984 = vmatprep.subr.mxu0 0.0
    %2985 = vmatpush1.msra.mxu0 0.0
    %2986 = vmatprep.subr.mxu0 0.0
    %2987 = vmatpush1.msra.mxu0 0.0
    %2988 = vmatprep.subr.mxu0 0.0
    %2989 = vmatpush1.msra.mxu0 0.0
    %2990 = vmatprep.subr.mxu0 0.0
    %2991 = vmatpush1.msra.mxu0 0.0
    %2992 = vmatprep.mubr.f32.mxu0 0.0
    %2993 = vmatmul.mubr.f32.gmra.mrb[0].mxu0 %v2926
    %v2994 = vpop.f32.mrb[0].mxu0
    %v2995 = vadd.f32 %v2919, %v2994
    %v2996 = vpop.f32.mrb[0].mxu0
    %2997 = vdwg.mxu0
    %v2998 = vtanh.pop %v2995
    %v2999 = vld [vmem:[#allocation19] sm:$0xff]
    %v3000 = vld [vmem:[#allocation19 + $0x8] sm:$0xff]
    %v3001 = vld [vmem:[#allocation19 + $0x10] sm:$0xff]
    %v3002 = vld [vmem:[#allocation19 + $0x18] sm:$0xff]
    %v3003 = vld [vmem:[#allocation19 + $0x20] sm:$0xff]
    %v3004 = vld [vmem:[#allocation19 + $0x28] sm:$0xff]
    %v3005 = vld [vmem:[#allocation19 + $0x30] sm:$0xff]
    %v3006 = vld [vmem:[#allocation19 + $0x38] sm:$0xff]
    %v3007 = vld [vmem:[#allocation20] sm:$0x3]
    %v3009 = vlaneseq
    %v3010 = vshrl.u32 %v3009, 7
    %v3011 = vsub.s32 0, %v3010
    %v3012 = vrot.slane %v3007, %v3011
    %v3013 = vlaneseq
    %v3014 = vshrl.u32 %v3013, 7
    %v3015 = vsub.s32 1, %v3014
    %v3016 = vrot.slane %v3007, %v3015
    %v3020 = vsel %vm368, %v2998, 0
    %3022 = vmatprep.subr.mxu0 %v3000
    %3023 = vmatpush1.msra.mxu0 %v2999
    %3024 = vmatprep.subr.mxu0 %v3002
    %3025 = vmatpush1.msra.mxu0 %v3001
    %3026 = vmatprep.subr.mxu0 %v3004
    %3027 = vmatpush1.msra.mxu0 %v3003
    %3028 = vmatprep.subr.mxu0 %v3006
    %3029 = vmatpush1.msra.mxu0 %v3005
    %3030 = vmatprep.subr.mxu0 0.0
    %3031 = vmatpush1.msra.mxu0 0.0
    %3032 = vmatprep.subr.mxu0 0.0
    %3033 = vmatpush1.msra.mxu0 0.0
    %3034 = vmatprep.subr.mxu0 0.0
    %3035 = vmatpush1.msra.mxu0 0.0
    %3036 = vmatprep.subr.mxu0 0.0
    %3037 = vmatpush1.msra.mxu0 0.0
    %3038 = vmatprep.subr.mxu0 0.0
    %3039 = vmatpush1.msra.mxu0 0.0
    %3040 = vmatprep.subr.mxu0 0.0
    %3041 = vmatpush1.msra.mxu0 0.0
    %3042 = vmatprep.subr.mxu0 0.0
    %3043 = vmatpush1.msra.mxu0 0.0
    %3044 = vmatprep.subr.mxu0 0.0
    %3045 = vmatpush1.msra.mxu0 0.0
    %3046 = vmatprep.subr.mxu0 0.0
    %3047 = vmatpush1.msra.mxu0 0.0
    %3048 = vmatprep.subr.mxu0 0.0
    %3049 = vmatpush1.msra.mxu0 0.0
    %3050 = vmatprep.subr.mxu0 0.0
    %3051 = vmatpush1.msra.mxu0 0.0
    %3052 = vmatprep.subr.mxu0 0.0
    %3053 = vmatpush1.msra.mxu0 0.0
    %3054 = vmatprep.subr.mxu0 0.0
    %3055 = vmatpush1.msra.mxu0 0.0
    %3056 = vmatprep.subr.mxu0 0.0
    %3057 = vmatpush1.msra.mxu0 0.0
    %3058 = vmatprep.subr.mxu0 0.0
    %3059 = vmatpush1.msra.mxu0 0.0
    %3060 = vmatprep.subr.mxu0 0.0
    %3061 = vmatpush1.msra.mxu0 0.0
    %3062 = vmatprep.subr.mxu0 0.0
    %3063 = vmatpush1.msra.mxu0 0.0
    %3064 = vmatprep.subr.mxu0 0.0
    %3065 = vmatpush1.msra.mxu0 0.0
    %3066 = vmatprep.subr.mxu0 0.0
    %3067 = vmatpush1.msra.mxu0 0.0
    %3068 = vmatprep.subr.mxu0 0.0
    %3069 = vmatpush1.msra.mxu0 0.0
    %3070 = vmatprep.subr.mxu0 0.0
    %3071 = vmatpush1.msra.mxu0 0.0
    %3072 = vmatprep.subr.mxu0 0.0
    %3073 = vmatpush1.msra.mxu0 0.0
    %3074 = vmatprep.subr.mxu0 0.0
    %3075 = vmatpush1.msra.mxu0 0.0
    %3076 = vmatprep.subr.mxu0 0.0
    %3077 = vmatpush1.msra.mxu0 0.0
    %3078 = vmatprep.subr.mxu0 0.0
    %3079 = vmatpush1.msra.mxu0 0.0
    %3080 = vmatprep.subr.mxu0 0.0
    %3081 = vmatpush1.msra.mxu0 0.0
    %3082 = vmatprep.subr.mxu0 0.0
    %3083 = vmatpush1.msra.mxu0 0.0
    %3084 = vmatprep.subr.mxu0 0.0
    %3085 = vmatpush1.msra.mxu0 0.0
    %3086 = vmatprep.mubr.f32.mxu0 0.0
    %3087 = vmatmul.mubr.f32.gmra.mrb[0].mxu0 %v3020
    %v3088 = vpop.f32.mrb[0].mxu0
    %v3089 = vadd.f32 %v3012, %v3088
    %v3090 = vpop.f32.mrb[0].mxu0
    %v3091 = vadd.f32 %v3016, %v3090
    %3092 = vdwg.mxu0
    %v3093 = vmax.f32 %v3089, 0.0
    %v3094 = vmax.f32 %v3091, 0.0
    %v3095 = vld [vmem:[%s23] sm:$0xff]
    %v3096 = vld [vmem:[%s23 + $0x8] sm:$0xff]
    %v3097 = vld [vmem:[%s23 + $0x10] sm:$0xff]
    %v3098 = vld [vmem:[%s23 + $0x18] sm:$0xff]
    %v3099 = vld [vmem:[%s23 + $0x20] sm:$0xff]
    %v3100 = vld [vmem:[%s23 + $0x28] sm:$0xff]
    %v3101 = vld [vmem:[%s23 + $0x30] sm:$0xff]
    %v3102 = vld [vmem:[%s23 + $0x38] sm:$0xff]
    %v3103 = vld [vmem:[%s23 + $0x40] sm:$0xff]
    %v3104 = vld [vmem:[%s23 + $0x48] sm:$0xff]
    %v3105 = vld [vmem:[%s23 + $0x50] sm:$0xff]
    %v3106 = vld [vmem:[%s23 + $0x58] sm:$0xff]
    %v3107 = vld [vmem:[%s23 + $0x60] sm:$0xff]
    %v3108 = vld [vmem:[%s23 + $0x68] sm:$0xff]
    %v3109 = vld [vmem:[%s23 + $0x70] sm:$0xff]
    %v3110 = vld [vmem:[%s23 + $0x78] sm:$0xff]
    %v3111 = vld [vmem:[%s23 + $0x80] sm:$0xff]
    %v3112 = vld [vmem:[%s23 + $0x88] sm:$0xff]
    %v3113 = vld [vmem:[%s23 + $0x90] sm:$0xff]
    %v3114 = vld [vmem:[%s23 + $0x98] sm:$0xff]
    %v3115 = vld [vmem:[%s23 + $0xa0] sm:$0xff]
    %v3116 = vld [vmem:[%s23 + $0xa8] sm:$0xff]
    %v3117 = vld [vmem:[%s23 + $0xb0] sm:$0xff]
    %v3118 = vld [vmem:[%s23 + $0xb8] sm:$0xff]
    %v3119 = vld [vmem:[%s23 + $0xc0] sm:$0xff]
    %v3120 = vld [vmem:[%s23 + $0xc8] sm:$0xff]
    %v3121 = vld [vmem:[%s23 + $0xd0] sm:$0xff]
    %v3122 = vld [vmem:[%s23 + $0xd8] sm:$0xff]
    %v3123 = vld [vmem:[%s23 + $0xe0] sm:$0xff]
    %v3124 = vld [vmem:[%s23 + $0xe8] sm:$0xff]
    %v3125 = vld [vmem:[%s23 + $0xf0] sm:$0xff]
    %v3126 = vld [vmem:[%s23 + $0xf8] sm:$0xff]
    %v3127 = vld [vmem:[#allocation22] sm:$0x1]
    %v3129 = vlaneseq
    %v3130 = vshrl.u32 %v3129, 7
    %v3131 = vsub.s32 0, %v3130
    %v3132 = vrot.slane %v3127, %v3131
    %3134 = vmatprep.subr.mxu0 0.0
    %3135 = vmatpush1.msra.mxu0 %v3095
    %3136 = vmatprep.subr.mxu0 0.0
    %3137 = vmatpush1.msra.mxu0 %v3096
    %3138 = vmatprep.subr.mxu0 0.0
    %3139 = vmatpush1.msra.mxu0 %v3097
    %3140 = vmatprep.subr.mxu0 0.0
    %3141 = vmatpush1.msra.mxu0 %v3098
    %3142 = vmatprep.subr.mxu0 0.0
    %3143 = vmatpush1.msra.mxu0 %v3099
    %3144 = vmatprep.subr.mxu0 0.0
    %3145 = vmatpush1.msra.mxu0 %v3100
    %3146 = vmatprep.subr.mxu0 0.0
    %3147 = vmatpush1.msra.mxu0 %v3101
    %3148 = vmatprep.subr.mxu0 0.0
    %3149 = vmatpush1.msra.mxu0 %v3102
    %3150 = vmatprep.subr.mxu0 0.0
    %3151 = vmatpush1.msra.mxu0 %v3103
    %3152 = vmatprep.subr.mxu0 0.0
    %3153 = vmatpush1.msra.mxu0 %v3104
    %3154 = vmatprep.subr.mxu0 0.0
    %3155 = vmatpush1.msra.mxu0 %v3105
    %3156 = vmatprep.subr.mxu0 0.0
    %3157 = vmatpush1.msra.mxu0 %v3106
    %3158 = vmatprep.subr.mxu0 0.0
    %3159 = vmatpush1.msra.mxu0 %v3107
    %3160 = vmatprep.subr.mxu0 0.0
    %3161 = vmatpush1.msra.mxu0 %v3108
    %3162 = vmatprep.subr.mxu0 0.0
    %3163 = vmatpush1.msra.mxu0 %v3109
    %3164 = vmatprep.subr.mxu0 0.0
    %3165 = vmatpush1.msra.mxu0 %v3110
    %3166 = vmatprep.subr.mxu0 0.0
    %3167 = vmatpush1.msra.mxu0 %v3111
    %3168 = vmatprep.subr.mxu0 0.0
    %3169 = vmatpush1.msra.mxu0 %v3112
    %3170 = vmatprep.subr.mxu0 0.0
    %3171 = vmatpush1.msra.mxu0 %v3113
    %3172 = vmatprep.subr.mxu0 0.0
    %3173 = vmatpush1.msra.mxu0 %v3114
    %3174 = vmatprep.subr.mxu0 0.0
    %3175 = vmatpush1.msra.mxu0 %v3115
    %3176 = vmatprep.subr.mxu0 0.0
    %3177 = vmatpush1.msra.mxu0 %v3116
    %3178 = vmatprep.subr.mxu0 0.0
    %3179 = vmatpush1.msra.mxu0 %v3117
    %3180 = vmatprep.subr.mxu0 0.0
    %3181 = vmatpush1.msra.mxu0 %v3118
    %3182 = vmatprep.subr.mxu0 0.0
    %3183 = vmatpush1.msra.mxu0 %v3119
    %3184 = vmatprep.subr.mxu0 0.0
    %3185 = vmatpush1.msra.mxu0 %v3120
    %3186 = vmatprep.subr.mxu0 0.0
    %3187 = vmatpush1.msra.mxu0 %v3121
    %3188 = vmatprep.subr.mxu0 0.0
    %3189 = vmatpush1.msra.mxu0 %v3122
    %3190 = vmatprep.subr.mxu0 0.0
    %3191 = vmatpush1.msra.mxu0 %v3123
    %3192 = vmatprep.subr.mxu0 0.0
    %3193 = vmatpush1.msra.mxu0 %v3124
    %3194 = vmatprep.subr.mxu0 0.0
    %3195 = vmatpush1.msra.mxu0 %v3125
    %3196 = vmatprep.subr.mxu0 0.0
    %3197 = vmatpush1.msra.mxu0 %v3126
    %3198 = vmatprep.mubr.f32.mxu0 %v3094
    %3199 = vmatmul.mubr.f32.gmra.mrb[0].mxu0 %v3093
    %v3200 = vpop.f32.mrb[0].mxu0
    %v3201 = vadd.f32 %v3132, %v3200
    %v3202 = vpop.f32.mrb[0].mxu0
    %3203 = vdwg.mxu0
    %3204 = vst [vmem:[#allocation23] sm:$0x3] %v3201
    // Predicated region
    $region154: #{bert_classifier_forward.1} parent=1 // pred_check
      _
    $region155: #{bert_classifier_forward.1} parent=1 // pred_check_branch
      %3206 = sbr.rel (0) target = $region157
    $region156: #{bert_classifier_forward.1} parent=1 // pred_region
      %s3208 = ssub.s32 32, 32
      %3209 = vsyncadd [#allocation4], %s3208
      %s3211 = sshll.u32 [#allocation23], 4
      %s3212 = int_to_ptr.vmem [resolvable:$true] %s3211
      %3214 = dma.vmem_to_hbm [thread:$0]  %s3212, 32, %s25, [#allocation4]
    $region157: #{bert_classifier_forward.1} parent=1 // pred_fallthru
      _
    // Predicated region
    $region158: #{bert_classifier_forward.1} parent=1 // pred_check
      _
    $region159: #{bert_classifier_forward.1} parent=1 // pred_check_branch
      %3216 = sbr.rel (0) target = $region161
    $region160: #{bert_classifier_forward.1} parent=1 // pred_region
      %3217 = dma.done [#allocation4], 32
    $region161: #{bert_classifier_forward.1} parent=1 // pred_fallthru
      _
    %3218 = vsyncpa [#allocation3], 1
    %3219 = vsyncpa [#allocation6], 1
    %3220 = vsyncpa [#allocation9], 1
    %3221 = vsyncpa [#allocation12], 1
    %3222 = vsyncpa [#allocation15], 1
    %3223 = vsyncpa [#allocation18], 1
    %3224 = vsyncpa [#allocation21], 1
    %3225 = vsyncpa [#allocation4], 1

</llo_original>
